<compile_context>
chip_gen: v6e
topology: v6e:2x2x1
jax: 0.10.0
libtpu: 0.0.40
codegen_flags: <defaults>
</compile_context>

<pallas_src>
import functools

import jax
import jax.numpy as jnp
from jax import lax
from jax.experimental import pallas as pl
from jax.experimental.pallas import tpu as pltpu


# ----------------------------------------------------------------------------
# Fused Pallas kernel (all layers, one grid step per TensorCore)
# ----------------------------------------------------------------------------
def _fused_kernel(x_ref, w_ref, m_ref, o_ref, p_ref, *, n_dcl, stride, W):
    """Whole DC_branchl forward; activations stay lane-dense (C, N) in VMEM/vregs.

    x_ref : (C, N) input block, N = images_per_step * H * W (batch-major on lanes)
    w_ref : (n_layers*C, K5*K5*C + 1) f32 packed weight rows; last column = bias
    m_ref : (K5*K5 + 9, N) f32 per-tap boundary-validity masks (5x5 rows, then 3x3)
    o_ref : (C, N) output block
    p_ref : (>=K5*K5*C, N) bf16 im2col patch scratch
    """
    C, N = x_ref.shape
    K5 = 2 * stride - 1
    bias_col = w_ref.shape[1] - 1
    # taps per patch store so every bf16 store is aligned to the (16, 128) tile
    group = 1 if C % 16 == 0 else 2

    def layer_w(i, width):           # (C, width) bf16 weight rows for layer i
        return w_ref[i * C:(i + 1) * C, :width].astype(jnp.bfloat16)

    def layer_b(i):                  # (C, 1) f32 bias column for layer i
        return w_ref[i * C:(i + 1) * C, bias_col:bias_col + 1]

    def conv1x1(i, act):
        y = jnp.dot(layer_w(i, C), act.astype(jnp.bfloat16),
                    preferred_element_type=jnp.float32)
        return y + layer_b(i)

    def spatial_conv(i, act, K, dilation, mrow0):
        """'same' KxK (dilated) conv: pltpu.roll windows -> bf16 patches -> one MXU dot."""
        pad = dilation * (K - 1) // 2
        KK = K * K
        pending = []

        def flush(first_tap):
            blk = pending[0] if len(pending) == 1 else jnp.concatenate(pending, axis=0)
            p_ref[first_tap * C:(first_tap + len(pending)) * C, :] = blk.astype(p_ref.dtype)
            pending.clear()

        for kh in range(K):
            for kw in range(K):
                t = kh * K + kw
                dh, dw = kh * dilation - pad, kw * dilation - pad
                s = dh * W + dw
                # Static circular lane rotation (XLU); wrapped / out-of-image pixels
                # are zeroed by the precomputed validity mask.
                win = act if s == 0 else pltpu.roll(act, shift=(-s) % N, axis=1)
                if dh == 0 and dw == 0:
                    pending.append(win)                       # center mask is all-ones
                else:
                    pending.append(win * m_ref[mrow0 + t:mrow0 + t + 1, :])
                if len(pending) == group:
                    flush(t - group + 1)
        if pending:                                           # odd tap count: pad the pair
            first = KK - len(pending)
            while len(pending) < group:
                pending.append(jnp.zeros_like(act))
            flush(first)

        y = jnp.dot(layer_w(i, KK * C), p_ref[:KK * C, :],
                    preferred_element_type=jnp.float32)
        return y + layer_b(i)

    act = x_ref[...].astype(jnp.float32)                      # (C, N)

    # Masked (blind-spot) 5x5 conv + ReLU
    act = jnp.maximum(spatial_conv(0, act, K5, 1, 0), 0.0)
    # Two 1x1 convs + ReLU
    act = jnp.maximum(conv1x1(1, act), 0.0)
    act = jnp.maximum(conv1x1(2, act), 0.0)
    # DCl blocks: x + Conv1x1(ReLU(DilatedConv3x3(x)))
    # (static unroll is fine at small n_dcl; switch to stacked weights + fori_loop
    #  if n_dcl grows large)
    li = 3
    for _ in range(n_dcl):
        h = jnp.maximum(spatial_conv(li, act, 3, stride, K5 * K5), 0.0)
        act = act + conv1x1(li + 1, h)
        li += 2
    # Tail 1x1 + ReLU
    act = jnp.maximum(conv1x1(li, act), 0.0)

    o_ref[...] = act.astype(o_ref.dtype)


# ----------------------------------------------------------------------------
# Host-side helpers (weight packing, boundary masks) + wrapper
# ----------------------------------------------------------------------------
def _tap_masks(H, W, K, dilation):
    """(K*K, H*W) {0,1} validity mask per conv tap (zero-padding boundary handling)."""
    pad = dilation * (K - 1) // 2
    hh, ww = jnp.meshgrid(jnp.arange(H), jnp.arange(W), indexing="ij")
    rows = []
    for kh in range(K):
        for kw in range(K):
            dh = kh * dilation - pad
            dw = kw * dilation - pad
            valid = (hh + dh >= 0) & (hh + dh < H) & (ww + dw >= 0) & (ww + dw < W)
            rows.append(valid.reshape(-1))
    return jnp.stack(rows).astype(jnp.float32)


def _conv_weight_rows(w_hwio):
    """HWIO (K,K,Cin,Cout) -> (Cout, K*K*Cin) matching im2col row order (kh,kw,cin)."""
    K, _, Cin, Cout = w_hwio.shape
    return jnp.transpose(w_hwio, (3, 0, 1, 2)).reshape(Cout, K * K * Cin)


def _pack_weights(params, C, K5, n_dcl):
    """All layer weights + biases -> one (n_layers*C, K5*K5*C + 1) f32 slab."""
    width = K5 * K5 * C

    def row_block(w_rows, b):
        blk = jnp.zeros((C, width + 1), jnp.float32)
        blk = blk.at[:, :w_rows.shape[1]].set(w_rows.astype(jnp.float32))
        blk = blk.at[:, width].set(b.astype(jnp.float32))
        return blk

    blocks = [row_block(_conv_weight_rows(params["w_mask"]), params["b_mask"]),
              row_block(params["w_a"].T, params["b_a"]),
              row_block(params["w_b"].T, params["b_b"])]
    for (w3, b3, w1, b1) in params["dcl"]:
        blocks.append(row_block(_conv_weight_rows(w3), b3))
        blocks.append(row_block(w1.T, b1))
    blocks.append(row_block(params["w_tail"].T, params["b_tail"]))
    return jnp.concatenate(blocks, axis=0)


def _grid_steps(batch):
    """#grid steps == #TensorCores sharable by a 'parallel' axis (2 on v4/v5p/v7x)."""
    try:
        kind = jax.devices()[0].device_kind.lower()
    except Exception:
        kind = ""
    two_tc = ("v4" in kind) or ("v5p" in kind) or ("7" in kind)
    return 2 if (two_tc and batch % 2 == 0) else 1


def dc_branchl_forward(x_nchw, params, *, stride=3):
    B, C, H, W = x_nchw.shape
    assert C % 8 == 0, "kernel assumes channel count is a multiple of 8 (sublane tile)"
    HW = H * W
    K5 = 2 * stride - 1
    n_dcl = len(params["dcl"])

    n_steps = _grid_steps(B)
    Bs = B // n_steps
    N = Bs * HW                                      # lane width per grid step

    # (B,C,H,W) -> (C, B*HW): channels on sublanes, pixels (batch-major) on lanes.
    x_cn = jnp.transpose(x_nchw.reshape(B, C, HW), (1, 0, 2)).reshape(C, B * HW)

    wpack = _pack_weights(params, C, K5, n_dcl)      # (n_layers*C, K5*K5*C + 1) f32
    mpack = jnp.concatenate([jnp.tile(_tap_masks(H, W, K5, 1), (1, Bs)),
                             jnp.tile(_tap_masks(H, W, 3, stride), (1, Bs))], axis=0)

    # bf16 patch scratch rows, rounded so grouped stores stay (16,128)-tile aligned.
    group = 1 if C % 16 == 0 else 2
    p_rows = (-(-(K5 * K5) // group) * group) * C

    kern = functools.partial(_fused_kernel, n_dcl=n_dcl, stride=stride, W=W)
    out = pl.pallas_call(
        kern,
        out_shape=jax.ShapeDtypeStruct((C, B * HW), x_nchw.dtype),
        grid=(n_steps,),
        in_specs=[
            pl.BlockSpec((C, N), lambda g: (0, g)),              # activations
            pl.BlockSpec(wpack.shape, lambda g: (0, 0)),         # packed weights+biases
            pl.BlockSpec(mpack.shape, lambda g: (0, 0)),         # packed tap masks
        ],
        out_specs=pl.BlockSpec((C, N), lambda g: (0, g)),
        scratch_shapes=[pltpu.VMEM((p_rows, N), jnp.bfloat16)],  # im2col patches
        compiler_params=pltpu.CompilerParams(dimension_semantics=("parallel",)),
    )(x_cn, wpack, mpack)

    return jnp.transpose(out.reshape(C, B, HW), (1, 0, 2)).reshape(B, C, H, W)


# ----------------------------------------------------------------------------
# Parameter init (reference-friendly layouts: HWIO convs, (Cin,Cout) 1x1s)
# ----------------------------------------------------------------------------
def init_params(key, in_ch, num_module, stride=3):
    C, K = in_ch, 2 * stride - 1  # 5x5 masked conv for stride=3
    n_dcl = num_module - 3
    keys = jax.random.split(key, 16 + 4 * n_dcl)

    def w(k, shape, scale=0.1):
        return jax.random.normal(k, shape, jnp.float32) * scale

    # blind-spot mask: zero the center tap of the KxK conv (stand-in, see TODO)
    mask = jnp.ones((K, K, 1, 1), jnp.float32).at[K // 2, K // 2, 0, 0].set(0.0)
    params = {
        "w_mask": w(keys[0], (K, K, C, C)) * mask,
        "b_mask": w(keys[1], (C,)),
        "w_a": w(keys[2], (C, C)), "b_a": w(keys[3], (C,)),
        "w_b": w(keys[4], (C, C)), "b_b": w(keys[5], (C,)),
        "w_tail": w(keys[6], (C, C)), "b_tail": w(keys[7], (C,)),
        "dcl": [],
    }
    for i in range(n_dcl):
        ks = keys[8 + 4 * i: 12 + 4 * i]
        params["dcl"].append((w(ks[0], (3, 3, C, C)), w(ks[1], (C,)),
                              w(ks[2], (C, C)), w(ks[3], (C,))))
    return params


# ----------------------------------------------------------------------------
# Pure-JAX reference (bf16 matmul inputs / f32 accumulation, matching the kernel)
# ----------------------------------------------------------------------------
def dc_branchl_reference(x_nchw, params, *, stride=3):
    bf16 = jnp.bfloat16

    def conv(x, w, b, dilation=1):
        p = dilation * (w.shape[0] - 1) // 2
        y = lax.conv_general_dilated(
            x.astype(bf16), w.astype(bf16), window_strides=(1, 1),
            padding=[(p, p), (p, p)], rhs_dilation=(dilation, dilation),
            dimension_numbers=("NHWC", "HWIO", "NHWC"),
            preferred_element_type=jnp.float32)
        return y + b

    def mm(x, w, b):
        y = jnp.einsum("bhwc,cd->bhwd", x.astype(bf16), w.astype(bf16),
                       preferred_element_type=jnp.float32)
        return y + b

    x = jnp.transpose(x_nchw, (0, 2, 3, 1)).astype(jnp.float32)
    out = jnp.maximum(conv(x, params["w_mask"], params["b_mask"]), 0.0)
    out = jnp.maximum(mm(out, params["w_a"], params["b_a"]), 0.0)
    out = jnp.maximum(mm(out, params["w_b"], params["b_b"]), 0.0)
    for (w3, b3, w1, b1) in params["dcl"]:
        h = jnp.maximum(conv(out, w3, b3, dilation=stride), 0.0)
        out = out + mm(h, w1, b1)
    out = jnp.maximum(mm(out, params["w_tail"], params["b_tail"]), 0.0)
    return jnp.transpose(out, (0, 3, 1, 2))


# ----------------------------------------------------------------------------
if __name__ == "__main__":
    B, C, H, W = 2, 8, 16, 16
    stride, num_module = 3, 5  # -> 2 DCl blocks

    key = jax.random.PRNGKey(0)
    kx, kp = jax.random.split(key)
    x = jax.random.normal(kx, (B, C, H, W), jnp.float32)  # PyTorch NCHW input
    params = init_params(kp, C, num_module, stride=stride)

    fwd = jax.jit(functools.partial(dc_branchl_forward, stride=stride))
    out = jax.block_until_ready(fwd(x, params))

    ref = jax.block_until_ready(dc_branchl_reference(x, params, stride=stride))
    assert out.shape == (B, C, H, W)
    max_err = float(jnp.max(jnp.abs(out - ref)))
    assert jnp.allclose(out, ref, atol=1e-2, rtol=1e-2), f"mismatch vs reference (max abs err {max_err})"

    print("KERNEL_OK")
</pallas_src>

<mosaic_0001>
module attributes {stable_mosaic.version = 11 : i64} {
  func.func @_fused_kernel(%arg0: i32, %arg1: memref<8x512xf32, #tpu.memory_space<vmem>>, %arg2: memref<64x201xf32, #tpu.memory_space<vmem>>, %arg3: memref<34x512xf32, #tpu.memory_space<vmem>>, %arg4: memref<8x512xf32, #tpu.memory_space<vmem>>, %arg5: memref<208x512xbf16, #tpu.memory_space<vmem>>) attributes {dimension_semantics = [#tpu.dimension_semantics<parallel>], iteration_bounds = array<i64: 1>, scalar_prefetch = 0 : i64, scratch_operands = 1 : i64, tpu.core_type = #tpu.core_type<tc>, window_params = [{transform_indices = @transform_0, window_bounds = array<i64: 8, 512>}, {pipeline_mode = #tpu.pipeline_mode<synchronous>, transform_indices = @transform_1, window_bounds = array<i64: 64, 201>}, {pipeline_mode = #tpu.pipeline_mode<synchronous>, transform_indices = @transform_2, window_bounds = array<i64: 34, 512>}, {transform_indices = @transform_3, window_bounds = array<i64: 8, 512>}]} {
    %c0 = arith.constant 0 : index
    %c0_0 = arith.constant 0 : index
    %0 = vector.load %arg1[%c0, %c0_0] : memref<8x512xf32, #tpu.memory_space<vmem>>, vector<8x512xf32>
    %c34_i32 = arith.constant 34 : i32
    %1 = tpu.dynamic_rotate %0 by %c34_i32 dim 1 : vector<8x512xf32>, i32 -> vector<8x512xf32>
    %c0_1 = arith.constant 0 : index
    %c0_2 = arith.constant 0 : index
    %2 = vector.load %arg3[%c0_1, %c0_2] : memref<34x512xf32, #tpu.memory_space<vmem>>, vector<1x512xf32>
    %3 = vector.broadcast %2 : vector<1x512xf32> to vector<8x512xf32>
    %4 = arith.mulf %1, %3 : vector<8x512xf32>
    %c33_i32 = arith.constant 33 : i32
    %5 = tpu.dynamic_rotate %0 by %c33_i32 dim 1 : vector<8x512xf32>, i32 -> vector<8x512xf32>
    %c1 = arith.constant 1 : index
    %c0_3 = arith.constant 0 : index
    %6 = vector.load %arg3[%c1, %c0_3] : memref<34x512xf32, #tpu.memory_space<vmem>>, vector<1x512xf32>
    %7 = vector.broadcast %6 : vector<1x512xf32> to vector<8x512xf32>
    %8 = arith.mulf %5, %7 : vector<8x512xf32>
    %9 = tpu.concatenate %4, %8 in 0 : vector<8x512xf32>, vector<8x512xf32> -> vector<16x512xf32>
    %10 = arith.truncf %9 : vector<16x512xf32> to vector<16x512xbf16>
    %c0_4 = arith.constant 0 : index
    %c0_5 = arith.constant 0 : index
    %11 = vector.load %arg5[%c0_4, %c0_5] : memref<208x512xbf16, #tpu.memory_space<vmem>>, vector<16x512xbf16>
    tpu.vector_store %arg5[%c0_4, %c0_5], %10 {strides = array<i32>} : memref<208x512xbf16, #tpu.memory_space<vmem>>, vector<16x512xbf16>,
    %c32_i32 = arith.constant 32 : i32
    %12 = tpu.dynamic_rotate %0 by %c32_i32 dim 1 : vector<8x512xf32>, i32 -> vector<8x512xf32>
    %c2 = arith.constant 2 : index
    %c0_6 = arith.constant 0 : index
    %13 = vector.load %arg3[%c2, %c0_6] : memref<34x512xf32, #tpu.memory_space<vmem>>, vector<1x512xf32>
    %14 = vector.broadcast %13 : vector<1x512xf32> to vector<8x512xf32>
    %15 = arith.mulf %12, %14 : vector<8x512xf32>
    %c31_i32 = arith.constant 31 : i32
    %16 = tpu.dynamic_rotate %0 by %c31_i32 dim 1 : vector<8x512xf32>, i32 -> vector<8x512xf32>
    %c3 = arith.constant 3 : index
    %c0_7 = arith.constant 0 : index
    %17 = vector.load %arg3[%c3, %c0_7] : memref<34x512xf32, #tpu.memory_space<vmem>>, vector<1x512xf32>
    %18 = vector.broadcast %17 : vector<1x512xf32> to vector<8x512xf32>
    %19 = arith.mulf %16, %18 : vector<8x512xf32>
    %20 = tpu.concatenate %15, %19 in 0 : vector<8x512xf32>, vector<8x512xf32> -> vector<16x512xf32>
    %21 = arith.truncf %20 : vector<16x512xf32> to vector<16x512xbf16>
    %c16 = arith.constant 16 : index
    %c0_8 = arith.constant 0 : index
    %22 = vector.load %arg5[%c16, %c0_8] : memref<208x512xbf16, #tpu.memory_space<vmem>>, vector<16x512xbf16>
    tpu.vector_store %arg5[%c16, %c0_8], %21 {strides = array<i32>} : memref<208x512xbf16, #tpu.memory_space<vmem>>, vector<16x512xbf16>,
    %c30_i32 = arith.constant 30 : i32
    %23 = tpu.dynamic_rotate %0 by %c30_i32 dim 1 : vector<8x512xf32>, i32 -> vector<8x512xf32>
    %c4 = arith.constant 4 : index
    %c0_9 = arith.constant 0 : index
    %24 = vector.load %arg3[%c4, %c0_9] : memref<34x512xf32, #tpu.memory_space<vmem>>, vector<1x512xf32>
    %25 = vector.broadcast %24 : vector<1x512xf32> to vector<8x512xf32>
    %26 = arith.mulf %23, %25 : vector<8x512xf32>
    %c18_i32 = arith.constant 18 : i32
    %27 = tpu.dynamic_rotate %0 by %c18_i32 dim 1 : vector<8x512xf32>, i32 -> vector<8x512xf32>
    %c5 = arith.constant 5 : index
    %c0_10 = arith.constant 0 : index
    %28 = vector.load %arg3[%c5, %c0_10] : memref<34x512xf32, #tpu.memory_space<vmem>>, vector<1x512xf32>
    %29 = vector.broadcast %28 : vector<1x512xf32> to vector<8x512xf32>
    %30 = arith.mulf %27, %29 : vector<8x512xf32>
    %31 = tpu.concatenate %26, %30 in 0 : vector<8x512xf32>, vector<8x512xf32> -> vector<16x512xf32>
    %32 = arith.truncf %31 : vector<16x512xf32> to vector<16x512xbf16>
    %c32 = arith.constant 32 : index
    %c0_11 = arith.constant 0 : index
    %33 = vector.load %arg5[%c32, %c0_11] : memref<208x512xbf16, #tpu.memory_space<vmem>>, vector<16x512xbf16>
    tpu.vector_store %arg5[%c32, %c0_11], %32 {strides = array<i32>} : memref<208x512xbf16, #tpu.memory_space<vmem>>, vector<16x512xbf16>,
    %c17_i32 = arith.constant 17 : i32
    %34 = tpu.dynamic_rotate %0 by %c17_i32 dim 1 : vector<8x512xf32>, i32 -> vector<8x512xf32>
    %c6 = arith.constant 6 : index
    %c0_12 = arith.constant 0 : index
    %35 = vector.load %arg3[%c6, %c0_12] : memref<34x512xf32, #tpu.memory_space<vmem>>, vector<1x512xf32>
    %36 = vector.broadcast %35 : vector<1x512xf32> to vector<8x512xf32>
    %37 = arith.mulf %34, %36 : vector<8x512xf32>
    %c16_i32 = arith.constant 16 : i32
    %38 = tpu.dynamic_rotate %0 by %c16_i32 dim 1 : vector<8x512xf32>, i32 -> vector<8x512xf32>
    %c7 = arith.constant 7 : index
    %c0_13 = arith.constant 0 : index
    %39 = vector.load %arg3[%c7, %c0_13] : memref<34x512xf32, #tpu.memory_space<vmem>>, vector<1x512xf32>
    %40 = vector.broadcast %39 : vector<1x512xf32> to vector<8x512xf32>
    %41 = arith.mulf %38, %40 : vector<8x512xf32>
    %42 = tpu.concatenate %37, %41 in 0 : vector<8x512xf32>, vector<8x512xf32> -> vector<16x512xf32>
    %43 = arith.truncf %42 : vector<16x512xf32> to vector<16x512xbf16>
    %c48 = arith.constant 48 : index
    %c0_14 = arith.constant 0 : index
    %44 = vector.load %arg5[%c48, %c0_14] : memref<208x512xbf16, #tpu.memory_space<vmem>>, vector<16x512xbf16>
    tpu.vector_store %arg5[%c48, %c0_14], %43 {strides = array<i32>} : memref<208x512xbf16, #tpu.memory_space<vmem>>, vector<16x512xbf16>,
    %c15_i32 = arith.constant 15 : i32
    %45 = tpu.dynamic_rotate %0 by %c15_i32 dim 1 : vector<8x512xf32>, i32 -> vector<8x512xf32>
    %c8 = arith.constant 8 : index
    %c0_15 = arith.constant 0 : index
    %46 = vector.load %arg3[%c8, %c0_15] : memref<34x512xf32, #tpu.memory_space<vmem>>, vector<1x512xf32>
    %47 = vector.broadcast %46 : vector<1x512xf32> to vector<8x512xf32>
    %48 = arith.mulf %45, %47 : vector<8x512xf32>
    %c14_i32 = arith.constant 14 : i32
    %49 = tpu.dynamic_rotate %0 by %c14_i32 dim 1 : vector<8x512xf32>, i32 -> vector<8x512xf32>
    %c9 = arith.constant 9 : index
    %c0_16 = arith.constant 0 : index
    %50 = vector.load %arg3[%c9, %c0_16] : memref<34x512xf32, #tpu.memory_space<vmem>>, vector<1x512xf32>
    %51 = vector.broadcast %50 : vector<1x512xf32> to vector<8x512xf32>
    %52 = arith.mulf %49, %51 : vector<8x512xf32>
    %53 = tpu.concatenate %48, %52 in 0 : vector<8x512xf32>, vector<8x512xf32> -> vector<16x512xf32>
    %54 = arith.truncf %53 : vector<16x512xf32> to vector<16x512xbf16>
    %c64 = arith.constant 64 : index
    %c0_17 = arith.constant 0 : index
    %55 = vector.load %arg5[%c64, %c0_17] : memref<208x512xbf16, #tpu.memory_space<vmem>>, vector<16x512xbf16>
    tpu.vector_store %arg5[%c64, %c0_17], %54 {strides = array<i32>} : memref<208x512xbf16, #tpu.memory_space<vmem>>, vector<16x512xbf16>,
    %c2_i32 = arith.constant 2 : i32
    %56 = tpu.dynamic_rotate %0 by %c2_i32 dim 1 : vector<8x512xf32>, i32 -> vector<8x512xf32>
    %c10 = arith.constant 10 : index
    %c0_18 = arith.constant 0 : index
    %57 = vector.load %arg3[%c10, %c0_18] : memref<34x512xf32, #tpu.memory_space<vmem>>, vector<1x512xf32>
    %58 = vector.broadcast %57 : vector<1x512xf32> to vector<8x512xf32>
    %59 = arith.mulf %56, %58 : vector<8x512xf32>
    %c1_i32 = arith.constant 1 : i32
    %60 = tpu.dynamic_rotate %0 by %c1_i32 dim 1 : vector<8x512xf32>, i32 -> vector<8x512xf32>
    %c11 = arith.constant 11 : index
    %c0_19 = arith.constant 0 : index
    %61 = vector.load %arg3[%c11, %c0_19] : memref<34x512xf32, #tpu.memory_space<vmem>>, vector<1x512xf32>
    %62 = vector.broadcast %61 : vector<1x512xf32> to vector<8x512xf32>
    %63 = arith.mulf %60, %62 : vector<8x512xf32>
    %64 = tpu.concatenate %59, %63 in 0 : vector<8x512xf32>, vector<8x512xf32> -> vector<16x512xf32>
    %65 = arith.truncf %64 : vector<16x512xf32> to vector<16x512xbf16>
    %c80 = arith.constant 80 : index
    %c0_20 = arith.constant 0 : index
    %66 = vector.load %arg5[%c80, %c0_20] : memref<208x512xbf16, #tpu.memory_space<vmem>>, vector<16x512xbf16>
    tpu.vector_store %arg5[%c80, %c0_20], %65 {strides = array<i32>} : memref<208x512xbf16, #tpu.memory_space<vmem>>, vector<16x512xbf16>,
    %c511_i32 = arith.constant 511 : i32
    %67 = tpu.dynamic_rotate %0 by %c511_i32 dim 1 : vector<8x512xf32>, i32 -> vector<8x512xf32>
    %c13 = arith.constant 13 : index
    %c0_21 = arith.constant 0 : index
    %68 = vector.load %arg3[%c13, %c0_21] : memref<34x512xf32, #tpu.memory_space<vmem>>, vector<1x512xf32>
    %69 = vector.broadcast %68 : vector<1x512xf32> to vector<8x512xf32>
    %70 = arith.mulf %67, %69 : vector<8x512xf32>
    %71 = tpu.concatenate %0, %70 in 0 : vector<8x512xf32>, vector<8x512xf32> -> vector<16x512xf32>
    %72 = arith.truncf %71 : vector<16x512xf32> to vector<16x512xbf16>
    %c96 = arith.constant 96 : index
    %c0_22 = arith.constant 0 : index
    %73 = vector.load %arg5[%c96, %c0_22] : memref<208x512xbf16, #tpu.memory_space<vmem>>, vector<16x512xbf16>
    tpu.vector_store %arg5[%c96, %c0_22], %72 {strides = array<i32>} : memref<208x512xbf16, #tpu.memory_space<vmem>>, vector<16x512xbf16>,
    %c510_i32 = arith.constant 510 : i32
    %74 = tpu.dynamic_rotate %0 by %c510_i32 dim 1 : vector<8x512xf32>, i32 -> vector<8x512xf32>
    %c14 = arith.constant 14 : index
    %c0_23 = arith.constant 0 : index
    %75 = vector.load %arg3[%c14, %c0_23] : memref<34x512xf32, #tpu.memory_space<vmem>>, vector<1x512xf32>
    %76 = vector.broadcast %75 : vector<1x512xf32> to vector<8x512xf32>
    %77 = arith.mulf %74, %76 : vector<8x512xf32>
    %c498_i32 = arith.constant 498 : i32
    %78 = tpu.dynamic_rotate %0 by %c498_i32 dim 1 : vector<8x512xf32>, i32 -> vector<8x512xf32>
    %c15 = arith.constant 15 : index
    %c0_24 = arith.constant 0 : index
    %79 = vector.load %arg3[%c15, %c0_24] : memref<34x512xf32, #tpu.memory_space<vmem>>, vector<1x512xf32>
    %80 = vector.broadcast %79 : vector<1x512xf32> to vector<8x512xf32>
    %81 = arith.mulf %78, %80 : vector<8x512xf32>
    %82 = tpu.concatenate %77, %81 in 0 : vector<8x512xf32>, vector<8x512xf32> -> vector<16x512xf32>
    %83 = arith.truncf %82 : vector<16x512xf32> to vector<16x512xbf16>
    %c112 = arith.constant 112 : index
    %c0_25 = arith.constant 0 : index
    %84 = vector.load %arg5[%c112, %c0_25] : memref<208x512xbf16, #tpu.memory_space<vmem>>, vector<16x512xbf16>
    tpu.vector_store %arg5[%c112, %c0_25], %83 {strides = array<i32>} : memref<208x512xbf16, #tpu.memory_space<vmem>>, vector<16x512xbf16>,
    %c497_i32 = arith.constant 497 : i32
    %85 = tpu.dynamic_rotate %0 by %c497_i32 dim 1 : vector<8x512xf32>, i32 -> vector<8x512xf32>
    %c16_26 = arith.constant 16 : index
    %c0_27 = arith.constant 0 : index
    %86 = vector.load %arg3[%c16_26, %c0_27] : memref<34x512xf32, #tpu.memory_space<vmem>>, vector<1x512xf32>
    %87 = vector.broadcast %86 : vector<1x512xf32> to vector<8x512xf32>
    %88 = arith.mulf %85, %87 : vector<8x512xf32>
    %c496_i32 = arith.constant 496 : i32
    %89 = tpu.dynamic_rotate %0 by %c496_i32 dim 1 : vector<8x512xf32>, i32 -> vector<8x512xf32>
    %c17 = arith.constant 17 : index
    %c0_28 = arith.constant 0 : index
    %90 = vector.load %arg3[%c17, %c0_28] : memref<34x512xf32, #tpu.memory_space<vmem>>, vector<1x512xf32>
    %91 = vector.broadcast %90 : vector<1x512xf32> to vector<8x512xf32>
    %92 = arith.mulf %89, %91 : vector<8x512xf32>
    %93 = tpu.concatenate %88, %92 in 0 : vector<8x512xf32>, vector<8x512xf32> -> vector<16x512xf32>
    %94 = arith.truncf %93 : vector<16x512xf32> to vector<16x512xbf16>
    %c128 = arith.constant 128 : index
    %c0_29 = arith.constant 0 : index
    %95 = vector.load %arg5[%c128, %c0_29] : memref<208x512xbf16, #tpu.memory_space<vmem>>, vector<16x512xbf16>
    tpu.vector_store %arg5[%c128, %c0_29], %94 {strides = array<i32>} : memref<208x512xbf16, #tpu.memory_space<vmem>>, vector<16x512xbf16>,
    %c495_i32 = arith.constant 495 : i32
    %96 = tpu.dynamic_rotate %0 by %c495_i32 dim 1 : vector<8x512xf32>, i32 -> vector<8x512xf32>
    %c18 = arith.constant 18 : index
    %c0_30 = arith.constant 0 : index
    %97 = vector.load %arg3[%c18, %c0_30] : memref<34x512xf32, #tpu.memory_space<vmem>>, vector<1x512xf32>
    %98 = vector.broadcast %97 : vector<1x512xf32> to vector<8x512xf32>
    %99 = arith.mulf %96, %98 : vector<8x512xf32>
    %c494_i32 = arith.constant 494 : i32
    %100 = tpu.dynamic_rotate %0 by %c494_i32 dim 1 : vector<8x512xf32>, i32 -> vector<8x512xf32>
    %c19 = arith.constant 19 : index
    %c0_31 = arith.constant 0 : index
    %101 = vector.load %arg3[%c19, %c0_31] : memref<34x512xf32, #tpu.memory_space<vmem>>, vector<1x512xf32>
    %102 = vector.broadcast %101 : vector<1x512xf32> to vector<8x512xf32>
    %103 = arith.mulf %100, %102 : vector<8x512xf32>
    %104 = tpu.concatenate %99, %103 in 0 : vector<8x512xf32>, vector<8x512xf32> -> vector<16x512xf32>
    %105 = arith.truncf %104 : vector<16x512xf32> to vector<16x512xbf16>
    %c144 = arith.constant 144 : index
    %c0_32 = arith.constant 0 : index
    %106 = vector.load %arg5[%c144, %c0_32] : memref<208x512xbf16, #tpu.memory_space<vmem>>, vector<16x512xbf16>
    tpu.vector_store %arg5[%c144, %c0_32], %105 {strides = array<i32>} : memref<208x512xbf16, #tpu.memory_space<vmem>>, vector<16x512xbf16>,
    %c482_i32 = arith.constant 482 : i32
    %107 = tpu.dynamic_rotate %0 by %c482_i32 dim 1 : vector<8x512xf32>, i32 -> vector<8x512xf32>
    %c20 = arith.constant 20 : index
    %c0_33 = arith.constant 0 : index
    %108 = vector.load %arg3[%c20, %c0_33] : memref<34x512xf32, #tpu.memory_space<vmem>>, vector<1x512xf32>
    %109 = vector.broadcast %108 : vector<1x512xf32> to vector<8x512xf32>
    %110 = arith.mulf %107, %109 : vector<8x512xf32>
    %c481_i32 = arith.constant 481 : i32
    %111 = tpu.dynamic_rotate %0 by %c481_i32 dim 1 : vector<8x512xf32>, i32 -> vector<8x512xf32>
    %c21 = arith.constant 21 : index
    %c0_34 = arith.constant 0 : index
    %112 = vector.load %arg3[%c21, %c0_34] : memref<34x512xf32, #tpu.memory_space<vmem>>, vector<1x512xf32>
    %113 = vector.broadcast %112 : vector<1x512xf32> to vector<8x512xf32>
    %114 = arith.mulf %111, %113 : vector<8x512xf32>
    %115 = tpu.concatenate %110, %114 in 0 : vector<8x512xf32>, vector<8x512xf32> -> vector<16x512xf32>
    %116 = arith.truncf %115 : vector<16x512xf32> to vector<16x512xbf16>
    %c160 = arith.constant 160 : index
    %c0_35 = arith.constant 0 : index
    %117 = vector.load %arg5[%c160, %c0_35] : memref<208x512xbf16, #tpu.memory_space<vmem>>, vector<16x512xbf16>
    tpu.vector_store %arg5[%c160, %c0_35], %116 {strides = array<i32>} : memref<208x512xbf16, #tpu.memory_space<vmem>>, vector<16x512xbf16>,
    %c480_i32 = arith.constant 480 : i32
    %118 = tpu.dynamic_rotate %0 by %c480_i32 dim 1 : vector<8x512xf32>, i32 -> vector<8x512xf32>
    %c22 = arith.constant 22 : index
    %c0_36 = arith.constant 0 : index
    %119 = vector.load %arg3[%c22, %c0_36] : memref<34x512xf32, #tpu.memory_space<vmem>>, vector<1x512xf32>
    %120 = vector.broadcast %119 : vector<1x512xf32> to vector<8x512xf32>
    %121 = arith.mulf %118, %120 : vector<8x512xf32>
    %c479_i32 = arith.constant 479 : i32
    %122 = tpu.dynamic_rotate %0 by %c479_i32 dim 1 : vector<8x512xf32>, i32 -> vector<8x512xf32>
    %c23 = arith.constant 23 : index
    %c0_37 = arith.constant 0 : index
    %123 = vector.load %arg3[%c23, %c0_37] : memref<34x512xf32, #tpu.memory_space<vmem>>, vector<1x512xf32>
    %124 = vector.broadcast %123 : vector<1x512xf32> to vector<8x512xf32>
    %125 = arith.mulf %122, %124 : vector<8x512xf32>
    %126 = tpu.concatenate %121, %125 in 0 : vector<8x512xf32>, vector<8x512xf32> -> vector<16x512xf32>
    %127 = arith.truncf %126 : vector<16x512xf32> to vector<16x512xbf16>
    %c176 = arith.constant 176 : index
    %c0_38 = arith.constant 0 : index
    %128 = vector.load %arg5[%c176, %c0_38] : memref<208x512xbf16, #tpu.memory_space<vmem>>, vector<16x512xbf16>
    tpu.vector_store %arg5[%c176, %c0_38], %127 {strides = array<i32>} : memref<208x512xbf16, #tpu.memory_space<vmem>>, vector<16x512xbf16>,
    %c478_i32 = arith.constant 478 : i32
    %129 = tpu.dynamic_rotate %0 by %c478_i32 dim 1 : vector<8x512xf32>, i32 -> vector<8x512xf32>
    %c24 = arith.constant 24 : index
    %c0_39 = arith.constant 0 : index
    %130 = vector.load %arg3[%c24, %c0_39] : memref<34x512xf32, #tpu.memory_space<vmem>>, vector<1x512xf32>
    %131 = vector.broadcast %130 : vector<1x512xf32> to vector<8x512xf32>
    %132 = arith.mulf %129, %131 : vector<8x512xf32>
    %cst = arith.constant 0.000000e+00 : f32
    %133 = vector.broadcast %cst : f32 to vector<8x512xf32>
    %134 = tpu.concatenate %132, %133 in 0 : vector<8x512xf32>, vector<8x512xf32> -> vector<16x512xf32>
    %135 = arith.truncf %134 : vector<16x512xf32> to vector<16x512xbf16>
    %c192 = arith.constant 192 : index
    %c0_40 = arith.constant 0 : index
    %136 = vector.load %arg5[%c192, %c0_40] : memref<208x512xbf16, #tpu.memory_space<vmem>>, vector<16x512xbf16>
    tpu.vector_store %arg5[%c192, %c0_40], %135 {strides = array<i32>} : memref<208x512xbf16, #tpu.memory_space<vmem>>, vector<16x512xbf16>,
    %c0_41 = arith.constant 0 : index
    %c0_42 = arith.constant 0 : index
    %137 = vector.load %arg2[%c0_41, %c0_42] : memref<64x201xf32, #tpu.memory_space<vmem>>, vector<8x200xf32>
    %138 = arith.truncf %137 : vector<8x200xf32> to vector<8x200xbf16>
    %c0_43 = arith.constant 0 : index
    %c0_44 = arith.constant 0 : index
    %139 = vector.load %arg5[%c0_43, %c0_44] : memref<208x512xbf16, #tpu.memory_space<vmem>>, vector<200x512xbf16>
    %cst_45 = arith.constant dense<0.000000e+00> : vector<8x512xf32>
    %140 = tpu.matmul %138, %139, %cst_45 {dimension_numbers = #tpu.dot_dimension_numbers<[1], [0], [0], [1], [0, 0, 1, 1], [], []>} : vector<8x200xbf16>, vector<200x512xbf16>, vector<8x512xf32> -> vector<8x512xf32>
    %c0_46 = arith.constant 0 : index
    %c200 = arith.constant 200 : index
    %141 = vector.load %arg2[%c0_46, %c200] : memref<64x201xf32, #tpu.memory_space<vmem>>, vector<8x1xf32>
    %142 = vector.broadcast %141 : vector<8x1xf32> to vector<8x512xf32>
    %143 = arith.addf %140, %142 : vector<8x512xf32>
    %cst_47 = arith.constant 0.000000e+00 : f32
    %144 = vector.broadcast %cst_47 : f32 to vector<8x512xf32>
    %145 = arith.maximumf %143, %144 : vector<8x512xf32>
    %c8_48 = arith.constant 8 : index
    %c0_49 = arith.constant 0 : index
    %146 = vector.load %arg2[%c8_48, %c0_49] : memref<64x201xf32, #tpu.memory_space<vmem>>, vector<8x8xf32>
    %147 = arith.truncf %146 : vector<8x8xf32> to vector<8x8xbf16>
    %148 = arith.truncf %145 : vector<8x512xf32> to vector<8x512xbf16>
    %cst_50 = arith.constant dense<0.000000e+00> : vector<8x512xf32>
    %149 = tpu.matmul %147, %148, %cst_50 {dimension_numbers = #tpu.dot_dimension_numbers<[1], [0], [0], [1], [0, 0, 1, 1], [], []>} : vector<8x8xbf16>, vector<8x512xbf16>, vector<8x512xf32> -> vector<8x512xf32>
    %c8_51 = arith.constant 8 : index
    %c200_52 = arith.constant 200 : index
    %150 = vector.load %arg2[%c8_51, %c200_52] : memref<64x201xf32, #tpu.memory_space<vmem>>, vector<8x1xf32>
    %151 = vector.broadcast %150 : vector<8x1xf32> to vector<8x512xf32>
    %152 = arith.addf %149, %151 : vector<8x512xf32>
    %cst_53 = arith.constant 0.000000e+00 : f32
    %153 = vector.broadcast %cst_53 : f32 to vector<8x512xf32>
    %154 = arith.maximumf %152, %153 : vector<8x512xf32>
    %c16_54 = arith.constant 16 : index
    %c0_55 = arith.constant 0 : index
    %155 = vector.load %arg2[%c16_54, %c0_55] : memref<64x201xf32, #tpu.memory_space<vmem>>, vector<8x8xf32>
    %156 = arith.truncf %155 : vector<8x8xf32> to vector<8x8xbf16>
    %157 = arith.truncf %154 : vector<8x512xf32> to vector<8x512xbf16>
    %cst_56 = arith.constant dense<0.000000e+00> : vector<8x512xf32>
    %158 = tpu.matmul %156, %157, %cst_56 {dimension_numbers = #tpu.dot_dimension_numbers<[1], [0], [0], [1], [0, 0, 1, 1], [], []>} : vector<8x8xbf16>, vector<8x512xbf16>, vector<8x512xf32> -> vector<8x512xf32>
    %c16_57 = arith.constant 16 : index
    %c200_58 = arith.constant 200 : index
    %159 = vector.load %arg2[%c16_57, %c200_58] : memref<64x201xf32, #tpu.memory_space<vmem>>, vector<8x1xf32>
    %160 = vector.broadcast %159 : vector<8x1xf32> to vector<8x512xf32>
    %161 = arith.addf %158, %160 : vector<8x512xf32>
    %cst_59 = arith.constant 0.000000e+00 : f32
    %162 = vector.broadcast %cst_59 : f32 to vector<8x512xf32>
    %163 = arith.maximumf %161, %162 : vector<8x512xf32>
    %c51_i32 = arith.constant 51 : i32
    %164 = tpu.dynamic_rotate %163 by %c51_i32 dim 1 : vector<8x512xf32>, i32 -> vector<8x512xf32>
    %c25 = arith.constant 25 : index
    %c0_60 = arith.constant 0 : index
    %165 = vector.load %arg3[%c25, %c0_60] : memref<34x512xf32, #tpu.memory_space<vmem>>, vector<1x512xf32>
    %166 = vector.broadcast %165 : vector<1x512xf32> to vector<8x512xf32>
    %167 = arith.mulf %164, %166 : vector<8x512xf32>
    %c48_i32 = arith.constant 48 : i32
    %168 = tpu.dynamic_rotate %163 by %c48_i32 dim 1 : vector<8x512xf32>, i32 -> vector<8x512xf32>
    %c26 = arith.constant 26 : index
    %c0_61 = arith.constant 0 : index
    %169 = vector.load %arg3[%c26, %c0_61] : memref<34x512xf32, #tpu.memory_space<vmem>>, vector<1x512xf32>
    %170 = vector.broadcast %169 : vector<1x512xf32> to vector<8x512xf32>
    %171 = arith.mulf %168, %170 : vector<8x512xf32>
    %172 = tpu.concatenate %167, %171 in 0 : vector<8x512xf32>, vector<8x512xf32> -> vector<16x512xf32>
    %173 = arith.truncf %172 : vector<16x512xf32> to vector<16x512xbf16>
    %c0_62 = arith.constant 0 : index
    %c0_63 = arith.constant 0 : index
    %174 = vector.load %arg5[%c0_62, %c0_63] : memref<208x512xbf16, #tpu.memory_space<vmem>>, vector<16x512xbf16>
    tpu.vector_store %arg5[%c0_62, %c0_63], %173 {strides = array<i32>} : memref<208x512xbf16, #tpu.memory_space<vmem>>, vector<16x512xbf16>,
    %c45_i32 = arith.constant 45 : i32
    %175 = tpu.dynamic_rotate %163 by %c45_i32 dim 1 : vector<8x512xf32>, i32 -> vector<8x512xf32>
    %c27 = arith.constant 27 : index
    %c0_64 = arith.constant 0 : index
    %176 = vector.load %arg3[%c27, %c0_64] : memref<34x512xf32, #tpu.memory_space<vmem>>, vector<1x512xf32>
    %177 = vector.broadcast %176 : vector<1x512xf32> to vector<8x512xf32>
    %178 = arith.mulf %175, %177 : vector<8x512xf32>
    %c3_i32 = arith.constant 3 : i32
    %179 = tpu.dynamic_rotate %163 by %c3_i32 dim 1 : vector<8x512xf32>, i32 -> vector<8x512xf32>
    %c28 = arith.constant 28 : index
    %c0_65 = arith.constant 0 : index
    %180 = vector.load %arg3[%c28, %c0_65] : memref<34x512xf32, #tpu.memory_space<vmem>>, vector<1x512xf32>
    %181 = vector.broadcast %180 : vector<1x512xf32> to vector<8x512xf32>
    %182 = arith.mulf %179, %181 : vector<8x512xf32>
    %183 = tpu.concatenate %178, %182 in 0 : vector<8x512xf32>, vector<8x512xf32> -> vector<16x512xf32>
    %184 = arith.truncf %183 : vector<16x512xf32> to vector<16x512xbf16>
    %c16_66 = arith.constant 16 : index
    %c0_67 = arith.constant 0 : index
    %185 = vector.load %arg5[%c16_66, %c0_67] : memref<208x512xbf16, #tpu.memory_space<vmem>>, vector<16x512xbf16>
    tpu.vector_store %arg5[%c16_66, %c0_67], %184 {strides = array<i32>} : memref<208x512xbf16, #tpu.memory_space<vmem>>, vector<16x512xbf16>,
    %c509_i32 = arith.constant 509 : i32
    %186 = tpu.dynamic_rotate %163 by %c509_i32 dim 1 : vector<8x512xf32>, i32 -> vector<8x512xf32>
    %c30 = arith.constant 30 : index
    %c0_68 = arith.constant 0 : index
    %187 = vector.load %arg3[%c30, %c0_68] : memref<34x512xf32, #tpu.memory_space<vmem>>, vector<1x512xf32>
    %188 = vector.broadcast %187 : vector<1x512xf32> to vector<8x512xf32>
    %189 = arith.mulf %186, %188 : vector<8x512xf32>
    %190 = tpu.concatenate %163, %189 in 0 : vector<8x512xf32>, vector<8x512xf32> -> vector<16x512xf32>
    %191 = arith.truncf %190 : vector<16x512xf32> to vector<16x512xbf16>
    %c32_69 = arith.constant 32 : index
    %c0_70 = arith.constant 0 : index
    %192 = vector.load %arg5[%c32_69, %c0_70] : memref<208x512xbf16, #tpu.memory_space<vmem>>, vector<16x512xbf16>
    tpu.vector_store %arg5[%c32_69, %c0_70], %191 {strides = array<i32>} : memref<208x512xbf16, #tpu.memory_space<vmem>>, vector<16x512xbf16>,
    %c467_i32 = arith.constant 467 : i32
    %193 = tpu.dynamic_rotate %163 by %c467_i32 dim 1 : vector<8x512xf32>, i32 -> vector<8x512xf32>
    %c31 = arith.constant 31 : index
    %c0_71 = arith.constant 0 : index
    %194 = vector.load %arg3[%c31, %c0_71] : memref<34x512xf32, #tpu.memory_space<vmem>>, vector<1x512xf32>
    %195 = vector.broadcast %194 : vector<1x512xf32> to vector<8x512xf32>
    %196 = arith.mulf %193, %195 : vector<8x512xf32>
    %c464_i32 = arith.constant 464 : i32
    %197 = tpu.dynamic_rotate %163 by %c464_i32 dim 1 : vector<8x512xf32>, i32 -> vector<8x512xf32>
    %c32_72 = arith.constant 32 : index
    %c0_73 = arith.constant 0 : index
    %198 = vector.load %arg3[%c32_72, %c0_73] : memref<34x512xf32, #tpu.memory_space<vmem>>, vector<1x512xf32>
    %199 = vector.broadcast %198 : vector<1x512xf32> to vector<8x512xf32>
    %200 = arith.mulf %197, %199 : vector<8x512xf32>
    %201 = tpu.concatenate %196, %200 in 0 : vector<8x512xf32>, vector<8x512xf32> -> vector<16x512xf32>
    %202 = arith.truncf %201 : vector<16x512xf32> to vector<16x512xbf16>
    %c48_74 = arith.constant 48 : index
    %c0_75 = arith.constant 0 : index
    %203 = vector.load %arg5[%c48_74, %c0_75] : memref<208x512xbf16, #tpu.memory_space<vmem>>, vector<16x512xbf16>
    tpu.vector_store %arg5[%c48_74, %c0_75], %202 {strides = array<i32>} : memref<208x512xbf16, #tpu.memory_space<vmem>>, vector<16x512xbf16>,
    %c461_i32 = arith.constant 461 : i32
    %204 = tpu.dynamic_rotate %163 by %c461_i32 dim 1 : vector<8x512xf32>, i32 -> vector<8x512xf32>
    %c33 = arith.constant 33 : index
    %c0_76 = arith.constant 0 : index
    %205 = vector.load %arg3[%c33, %c0_76] : memref<34x512xf32, #tpu.memory_space<vmem>>, vector<1x512xf32>
    %206 = vector.broadcast %205 : vector<1x512xf32> to vector<8x512xf32>
    %207 = arith.mulf %204, %206 : vector<8x512xf32>
    %cst_77 = arith.constant 0.000000e+00 : f32
    %208 = vector.broadcast %cst_77 : f32 to vector<8x512xf32>
    %209 = tpu.concatenate %207, %208 in 0 : vector<8x512xf32>, vector<8x512xf32> -> vector<16x512xf32>
    %210 = arith.truncf %209 : vector<16x512xf32> to vector<16x512xbf16>
    %c64_78 = arith.constant 64 : index
    %c0_79 = arith.constant 0 : index
    %211 = vector.load %arg5[%c64_78, %c0_79] : memref<208x512xbf16, #tpu.memory_space<vmem>>, vector<16x512xbf16>
    tpu.vector_store %arg5[%c64_78, %c0_79], %210 {strides = array<i32>} : memref<208x512xbf16, #tpu.memory_space<vmem>>, vector<16x512xbf16>,
    %c24_80 = arith.constant 24 : index
    %c0_81 = arith.constant 0 : index
    %212 = vector.load %arg2[%c24_80, %c0_81] : memref<64x201xf32, #tpu.memory_space<vmem>>, vector<8x72xf32>
    %213 = arith.truncf %212 : vector<8x72xf32> to vector<8x72xbf16>
    %c0_82 = arith.constant 0 : index
    %c0_83 = arith.constant 0 : index
    %214 = vector.load %arg5[%c0_82, %c0_83] : memref<208x512xbf16, #tpu.memory_space<vmem>>, vector<72x512xbf16>
    %cst_84 = arith.constant dense<0.000000e+00> : vector<8x512xf32>
    %215 = tpu.matmul %213, %214, %cst_84 {dimension_numbers = #tpu.dot_dimension_numbers<[1], [0], [0], [1], [0, 0, 1, 1], [], []>} : vector<8x72xbf16>, vector<72x512xbf16>, vector<8x512xf32> -> vector<8x512xf32>
    %c24_85 = arith.constant 24 : index
    %c200_86 = arith.constant 200 : index
    %216 = vector.load %arg2[%c24_85, %c200_86] : memref<64x201xf32, #tpu.memory_space<vmem>>, vector<8x1xf32>
    %217 = vector.broadcast %216 : vector<8x1xf32> to vector<8x512xf32>
    %218 = arith.addf %215, %217 : vector<8x512xf32>
    %cst_87 = arith.constant 0.000000e+00 : f32
    %219 = vector.broadcast %cst_87 : f32 to vector<8x512xf32>
    %220 = arith.maximumf %218, %219 : vector<8x512xf32>
    %c32_88 = arith.constant 32 : index
    %c0_89 = arith.constant 0 : index
    %221 = vector.load %arg2[%c32_88, %c0_89] : memref<64x201xf32, #tpu.memory_space<vmem>>, vector<8x8xf32>
    %222 = arith.truncf %221 : vector<8x8xf32> to vector<8x8xbf16>
    %223 = arith.truncf %220 : vector<8x512xf32> to vector<8x512xbf16>
    %cst_90 = arith.constant dense<0.000000e+00> : vector<8x512xf32>
    %224 = tpu.matmul %222, %223, %cst_90 {dimension_numbers = #tpu.dot_dimension_numbers<[1], [0], [0], [1], [0, 0, 1, 1], [], []>} : vector<8x8xbf16>, vector<8x512xbf16>, vector<8x512xf32> -> vector<8x512xf32>
    %c32_91 = arith.constant 32 : index
    %c200_92 = arith.constant 200 : index
    %225 = vector.load %arg2[%c32_91, %c200_92] : memref<64x201xf32, #tpu.memory_space<vmem>>, vector<8x1xf32>
    %226 = vector.broadcast %225 : vector<8x1xf32> to vector<8x512xf32>
    %227 = arith.addf %224, %226 : vector<8x512xf32>
    %228 = arith.addf %163, %227 : vector<8x512xf32>
    %c51_i32_93 = arith.constant 51 : i32
    %229 = tpu.dynamic_rotate %228 by %c51_i32_93 dim 1 : vector<8x512xf32>, i32 -> vector<8x512xf32>
    %c25_94 = arith.constant 25 : index
    %c0_95 = arith.constant 0 : index
    %230 = vector.load %arg3[%c25_94, %c0_95] : memref<34x512xf32, #tpu.memory_space<vmem>>, vector<1x512xf32>
    %231 = vector.broadcast %230 : vector<1x512xf32> to vector<8x512xf32>
    %232 = arith.mulf %229, %231 : vector<8x512xf32>
    %c48_i32_96 = arith.constant 48 : i32
    %233 = tpu.dynamic_rotate %228 by %c48_i32_96 dim 1 : vector<8x512xf32>, i32 -> vector<8x512xf32>
    %c26_97 = arith.constant 26 : index
    %c0_98 = arith.constant 0 : index
    %234 = vector.load %arg3[%c26_97, %c0_98] : memref<34x512xf32, #tpu.memory_space<vmem>>, vector<1x512xf32>
    %235 = vector.broadcast %234 : vector<1x512xf32> to vector<8x512xf32>
    %236 = arith.mulf %233, %235 : vector<8x512xf32>
    %237 = tpu.concatenate %232, %236 in 0 : vector<8x512xf32>, vector<8x512xf32> -> vector<16x512xf32>
    %238 = arith.truncf %237 : vector<16x512xf32> to vector<16x512xbf16>
    %c0_99 = arith.constant 0 : index
    %c0_100 = arith.constant 0 : index
    %239 = vector.load %arg5[%c0_99, %c0_100] : memref<208x512xbf16, #tpu.memory_space<vmem>>, vector<16x512xbf16>
    tpu.vector_store %arg5[%c0_99, %c0_100], %238 {strides = array<i32>} : memref<208x512xbf16, #tpu.memory_space<vmem>>, vector<16x512xbf16>,
    %c45_i32_101 = arith.constant 45 : i32
    %240 = tpu.dynamic_rotate %228 by %c45_i32_101 dim 1 : vector<8x512xf32>, i32 -> vector<8x512xf32>
    %c27_102 = arith.constant 27 : index
    %c0_103 = arith.constant 0 : index
    %241 = vector.load %arg3[%c27_102, %c0_103] : memref<34x512xf32, #tpu.memory_space<vmem>>, vector<1x512xf32>
    %242 = vector.broadcast %241 : vector<1x512xf32> to vector<8x512xf32>
    %243 = arith.mulf %240, %242 : vector<8x512xf32>
    %c3_i32_104 = arith.constant 3 : i32
    %244 = tpu.dynamic_rotate %228 by %c3_i32_104 dim 1 : vector<8x512xf32>, i32 -> vector<8x512xf32>
    %c28_105 = arith.constant 28 : index
    %c0_106 = arith.constant 0 : index
    %245 = vector.load %arg3[%c28_105, %c0_106] : memref<34x512xf32, #tpu.memory_space<vmem>>, vector<1x512xf32>
    %246 = vector.broadcast %245 : vector<1x512xf32> to vector<8x512xf32>
    %247 = arith.mulf %244, %246 : vector<8x512xf32>
    %248 = tpu.concatenate %243, %247 in 0 : vector<8x512xf32>, vector<8x512xf32> -> vector<16x512xf32>
    %249 = arith.truncf %248 : vector<16x512xf32> to vector<16x512xbf16>
    %c16_107 = arith.constant 16 : index
    %c0_108 = arith.constant 0 : index
    %250 = vector.load %arg5[%c16_107, %c0_108] : memref<208x512xbf16, #tpu.memory_space<vmem>>, vector<16x512xbf16>
    tpu.vector_store %arg5[%c16_107, %c0_108], %249 {strides = array<i32>} : memref<208x512xbf16, #tpu.memory_space<vmem>>, vector<16x512xbf16>,
    %c509_i32_109 = arith.constant 509 : i32
    %251 = tpu.dynamic_rotate %228 by %c509_i32_109 dim 1 : vector<8x512xf32>, i32 -> vector<8x512xf32>
    %c30_110 = arith.constant 30 : index
    %c0_111 = arith.constant 0 : index
    %252 = vector.load %arg3[%c30_110, %c0_111] : memref<34x512xf32, #tpu.memory_space<vmem>>, vector<1x512xf32>
    %253 = vector.broadcast %252 : vector<1x512xf32> to vector<8x512xf32>
    %254 = arith.mulf %251, %253 : vector<8x512xf32>
    %255 = tpu.concatenate %228, %254 in 0 : vector<8x512xf32>, vector<8x512xf32> -> vector<16x512xf32>
    %256 = arith.truncf %255 : vector<16x512xf32> to vector<16x512xbf16>
    %c32_112 = arith.constant 32 : index
    %c0_113 = arith.constant 0 : index
    %257 = vector.load %arg5[%c32_112, %c0_113] : memref<208x512xbf16, #tpu.memory_space<vmem>>, vector<16x512xbf16>
    tpu.vector_store %arg5[%c32_112, %c0_113], %256 {strides = array<i32>} : memref<208x512xbf16, #tpu.memory_space<vmem>>, vector<16x512xbf16>,
    %c467_i32_114 = arith.constant 467 : i32
    %258 = tpu.dynamic_rotate %228 by %c467_i32_114 dim 1 : vector<8x512xf32>, i32 -> vector<8x512xf32>
    %c31_115 = arith.constant 31 : index
    %c0_116 = arith.constant 0 : index
    %259 = vector.load %arg3[%c31_115, %c0_116] : memref<34x512xf32, #tpu.memory_space<vmem>>, vector<1x512xf32>
    %260 = vector.broadcast %259 : vector<1x512xf32> to vector<8x512xf32>
    %261 = arith.mulf %258, %260 : vector<8x512xf32>
    %c464_i32_117 = arith.constant 464 : i32
    %262 = tpu.dynamic_rotate %228 by %c464_i32_117 dim 1 : vector<8x512xf32>, i32 -> vector<8x512xf32>
    %c32_118 = arith.constant 32 : index
    %c0_119 = arith.constant 0 : index
    %263 = vector.load %arg3[%c32_118, %c0_119] : memref<34x512xf32, #tpu.memory_space<vmem>>, vector<1x512xf32>
    %264 = vector.broadcast %263 : vector<1x512xf32> to vector<8x512xf32>
    %265 = arith.mulf %262, %264 : vector<8x512xf32>
    %266 = tpu.concatenate %261, %265 in 0 : vector<8x512xf32>, vector<8x512xf32> -> vector<16x512xf32>
    %267 = arith.truncf %266 : vector<16x512xf32> to vector<16x512xbf16>
    %c48_120 = arith.constant 48 : index
    %c0_121 = arith.constant 0 : index
    %268 = vector.load %arg5[%c48_120, %c0_121] : memref<208x512xbf16, #tpu.memory_space<vmem>>, vector<16x512xbf16>
    tpu.vector_store %arg5[%c48_120, %c0_121], %267 {strides = array<i32>} : memref<208x512xbf16, #tpu.memory_space<vmem>>, vector<16x512xbf16>,
    %c461_i32_122 = arith.constant 461 : i32
    %269 = tpu.dynamic_rotate %228 by %c461_i32_122 dim 1 : vector<8x512xf32>, i32 -> vector<8x512xf32>
    %c33_123 = arith.constant 33 : index
    %c0_124 = arith.constant 0 : index
    %270 = vector.load %arg3[%c33_123, %c0_124] : memref<34x512xf32, #tpu.memory_space<vmem>>, vector<1x512xf32>
    %271 = vector.broadcast %270 : vector<1x512xf32> to vector<8x512xf32>
    %272 = arith.mulf %269, %271 : vector<8x512xf32>
    %cst_125 = arith.constant 0.000000e+00 : f32
    %273 = vector.broadcast %cst_125 : f32 to vector<8x512xf32>
    %274 = tpu.concatenate %272, %273 in 0 : vector<8x512xf32>, vector<8x512xf32> -> vector<16x512xf32>
    %275 = arith.truncf %274 : vector<16x512xf32> to vector<16x512xbf16>
    %c64_126 = arith.constant 64 : index
    %c0_127 = arith.constant 0 : index
    %276 = vector.load %arg5[%c64_126, %c0_127] : memref<208x512xbf16, #tpu.memory_space<vmem>>, vector<16x512xbf16>
    tpu.vector_store %arg5[%c64_126, %c0_127], %275 {strides = array<i32>} : memref<208x512xbf16, #tpu.memory_space<vmem>>, vector<16x512xbf16>,
    %c40 = arith.constant 40 : index
    %c0_128 = arith.constant 0 : index
    %277 = vector.load %arg2[%c40, %c0_128] : memref<64x201xf32, #tpu.memory_space<vmem>>, vector<8x72xf32>
    %278 = arith.truncf %277 : vector<8x72xf32> to vector<8x72xbf16>
    %c0_129 = arith.constant 0 : index
    %c0_130 = arith.constant 0 : index
    %279 = vector.load %arg5[%c0_129, %c0_130] : memref<208x512xbf16, #tpu.memory_space<vmem>>, vector<72x512xbf16>
    %cst_131 = arith.constant dense<0.000000e+00> : vector<8x512xf32>
    %280 = tpu.matmul %278, %279, %cst_131 {dimension_numbers = #tpu.dot_dimension_numbers<[1], [0], [0], [1], [0, 0, 1, 1], [], []>} : vector<8x72xbf16>, vector<72x512xbf16>, vector<8x512xf32> -> vector<8x512xf32>
    %c40_132 = arith.constant 40 : index
    %c200_133 = arith.constant 200 : index
    %281 = vector.load %arg2[%c40_132, %c200_133] : memref<64x201xf32, #tpu.memory_space<vmem>>, vector<8x1xf32>
    %282 = vector.broadcast %281 : vector<8x1xf32> to vector<8x512xf32>
    %283 = arith.addf %280, %282 : vector<8x512xf32>
    %cst_134 = arith.constant 0.000000e+00 : f32
    %284 = vector.broadcast %cst_134 : f32 to vector<8x512xf32>
    %285 = arith.maximumf %283, %284 : vector<8x512xf32>
    %c48_135 = arith.constant 48 : index
    %c0_136 = arith.constant 0 : index
    %286 = vector.load %arg2[%c48_135, %c0_136] : memref<64x201xf32, #tpu.memory_space<vmem>>, vector<8x8xf32>
    %287 = arith.truncf %286 : vector<8x8xf32> to vector<8x8xbf16>
    %288 = arith.truncf %285 : vector<8x512xf32> to vector<8x512xbf16>
    %cst_137 = arith.constant dense<0.000000e+00> : vector<8x512xf32>
    %289 = tpu.matmul %287, %288, %cst_137 {dimension_numbers = #tpu.dot_dimension_numbers<[1], [0], [0], [1], [0, 0, 1, 1], [], []>} : vector<8x8xbf16>, vector<8x512xbf16>, vector<8x512xf32> -> vector<8x512xf32>
    %c48_138 = arith.constant 48 : index
    %c200_139 = arith.constant 200 : index
    %290 = vector.load %arg2[%c48_138, %c200_139] : memref<64x201xf32, #tpu.memory_space<vmem>>, vector<8x1xf32>
    %291 = vector.broadcast %290 : vector<8x1xf32> to vector<8x512xf32>
    %292 = arith.addf %289, %291 : vector<8x512xf32>
    %293 = arith.addf %228, %292 : vector<8x512xf32>
    %c56 = arith.constant 56 : index
    %c0_140 = arith.constant 0 : index
    %294 = vector.load %arg2[%c56, %c0_140] : memref<64x201xf32, #tpu.memory_space<vmem>>, vector<8x8xf32>
    %295 = arith.truncf %294 : vector<8x8xf32> to vector<8x8xbf16>
    %296 = arith.truncf %293 : vector<8x512xf32> to vector<8x512xbf16>
    %cst_141 = arith.constant dense<0.000000e+00> : vector<8x512xf32>
    %297 = tpu.matmul %295, %296, %cst_141 {dimension_numbers = #tpu.dot_dimension_numbers<[1], [0], [0], [1], [0, 0, 1, 1], [], []>} : vector<8x8xbf16>, vector<8x512xbf16>, vector<8x512xf32> -> vector<8x512xf32>
    %c56_142 = arith.constant 56 : index
    %c200_143 = arith.constant 200 : index
    %298 = vector.load %arg2[%c56_142, %c200_143] : memref<64x201xf32, #tpu.memory_space<vmem>>, vector<8x1xf32>
    %299 = vector.broadcast %298 : vector<8x1xf32> to vector<8x512xf32>
    %300 = arith.addf %297, %299 : vector<8x512xf32>
    %cst_144 = arith.constant 0.000000e+00 : f32
    %301 = vector.broadcast %cst_144 : f32 to vector<8x512xf32>
    %302 = arith.maximumf %300, %301 : vector<8x512xf32>
    %c0_145 = arith.constant 0 : index
    %c0_146 = arith.constant 0 : index
    %303 = vector.load %arg4[%c0_145, %c0_146] : memref<8x512xf32, #tpu.memory_space<vmem>>, vector<8x512xf32>
    tpu.vector_store %arg4[%c0_145, %c0_146], %302 {strides = array<i32>} : memref<8x512xf32, #tpu.memory_space<vmem>>, vector<8x512xf32>,
    return
  }
  func.func @transform_0(%arg0: i32) -> (i32, i32) {
    %c0_i32 = arith.constant 0 : i32
    %c0_i32_0 = arith.constant 0 : i32
    return %c0_i32, %arg0 : i32, i32
  }
  func.func @transform_1(%arg0: i32) -> (i32, i32) {
    %c0_i32 = arith.constant 0 : i32
    %c0_i32_0 = arith.constant 0 : i32
    %c0_i32_1 = arith.constant 0 : i32
    return %c0_i32, %c0_i32_0 : i32, i32
  }
  func.func @transform_2(%arg0: i32) -> (i32, i32) {
    %c0_i32 = arith.constant 0 : i32
    %c0_i32_0 = arith.constant 0 : i32
    %c0_i32_1 = arith.constant 0 : i32
    return %c0_i32, %c0_i32_0 : i32, i32
  }
  func.func @transform_3(%arg0: i32) -> (i32, i32) {
    %c0_i32 = arith.constant 0 : i32
    %c0_i32_0 = arith.constant 0 : i32
    return %c0_i32, %arg0 : i32, i32
  }
}

</mosaic_0001>

<llo_original>
// kernel: dc_branchl_forward.1
$region0: #{dc_branchl_forward.1}
  #allocation0 [shape = 'u32[]', space=smem, size = 0x4, offset = 0x4, fixed_abs, tag = 'smem constant byte address 0x4 - core index']
  #allocation1 [shape = 'u32[144,128]{1,0:T(1,128)}', space=vmem, size = 0x12000, scoped, tag = 'internal scratch']
  #allocation2 [shape = 'bf16[208,512]{1,0:T(8,128)(2,1)}', space=vmem, size = 0x34000, scoped, tag = 'scratch operand']
  %s0 = inlined_call_operand.vmem [shape: f32[8,512], index: 0, kind: input, shape index: {}]
  %s1 = inlined_call_operand.vmem [shape: f32[64,201], index: 1, kind: input, shape index: {}]
  %s2 = inlined_call_operand.vmem [shape: f32[34,512], index: 2, kind: input, shape index: {}]
  %s3 = inlined_call_operand.vmem [shape: f32[8,512], index: 3, kind: output, shape index: {}]
  %s4 = sld [smem:[#allocation0]]
  $region22: #{dc_branchl_forward.1} parent=0
    _
  %s6 = ssub.s32 1, %s4
  %s7 = scalar_select 0, %s6, %s4
  // Predicated region
  $region2: #{dc_branchl_forward.1} parent=0 // pred_check
    _
  $region3: #{dc_branchl_forward.1} parent=0 // pred_check_branch
    %9 = sbr.rel (0) target = $region5
  $region4: #{dc_branchl_forward.1} parent=0 // pred_region
    _
  $region5: #{dc_branchl_forward.1} parent=0 // pred_fallthru
    _
  // Predicated region
  $region6: #{dc_branchl_forward.1} parent=0 // pred_check
    _
  $region7: #{dc_branchl_forward.1} parent=0 // pred_check_branch
    %11 = sbr.rel (0) target = $region9
  $region8: #{dc_branchl_forward.1} parent=0 // pred_region
    _
  $region9: #{dc_branchl_forward.1} parent=0 // pred_fallthru
    _
  // Predicated region
  $region10: #{dc_branchl_forward.1} parent=0 // pred_check
    _
  $region11: #{dc_branchl_forward.1} parent=0 // pred_check_branch
    %13 = sbr.rel (0) target = $region13
  $region12: #{dc_branchl_forward.1} parent=0 // pred_region
    _
  $region13: #{dc_branchl_forward.1} parent=0 // pred_fallthru
    _
  %v15 = vld [vmem:[%s0] sm:$0xff]
  %v16 = vld [vmem:[%s0 + $0x8] sm:$0xff]
  %v17 = vld [vmem:[%s0 + $0x10] sm:$0xff]
  %v18 = vld [vmem:[%s0 + $0x18] sm:$0xff]
  %19 = vrot.lane.b32.xlu0 %v15, 34
  %v20 = vpop.permute.xlu0 %19
  %21 = vrot.lane.b32.xlu0 %v16, 34
  %v22 = vpop.permute.xlu0 %21
  %23 = vrot.lane.b32.xlu0 %v17, 34
  %v24 = vpop.permute.xlu0 %23
  %25 = vrot.lane.b32.xlu0 %v18, 34
  %v26 = vpop.permute.xlu0 %25
  %v27 = vlaneseq
  %v28 = vand.u32 %v27, 127
  %vm29 = vcmp.lt.s32.totalorder %v28, 34
  %v30 = vsel %vm29, %v24, %v26
  %v31 = vsel %vm29, %v22, %v24
  %v32 = vsel %vm29, %v20, %v22
  %v33 = vsel %vm29, %v26, %v20
  %v34 = vld [vmem:[%s2] ss:$8 sm:$0xf]
  %v36 = vlaneseq
  %v37 = vshrl.u32 %v36, 7
  %v38 = vsub.s32 0, %v37
  %v39 = vrot.slane %v34, %v38
  %v40 = vlaneseq
  %v41 = vshrl.u32 %v40, 7
  %v42 = vsub.s32 1, %v41
  %v43 = vrot.slane %v34, %v42
  %v44 = vlaneseq
  %v45 = vshrl.u32 %v44, 7
  %v46 = vsub.s32 2, %v45
  %v47 = vrot.slane %v34, %v46
  %v48 = vlaneseq
  %v49 = vshrl.u32 %v48, 7
  %v50 = vsub.s32 3, %v49
  %v51 = vrot.slane %v34, %v50
  %v56 = vmul.f32 %v33, %v39
  %v57 = vmul.f32 %v32, %v43
  %v58 = vmul.f32 %v31, %v47
  %v59 = vmul.f32 %v30, %v51
  %60 = vrot.lane.b32.xlu0 %v15, 33
  %v61 = vpop.permute.xlu0 %60
  %62 = vrot.lane.b32.xlu0 %v16, 33
  %v63 = vpop.permute.xlu0 %62
  %64 = vrot.lane.b32.xlu0 %v17, 33
  %v65 = vpop.permute.xlu0 %64
  %66 = vrot.lane.b32.xlu0 %v18, 33
  %v67 = vpop.permute.xlu0 %66
  %vm68 = vcmp.lt.s32.totalorder %v28, 33
  %v69 = vsel %vm68, %v65, %v67
  %v70 = vsel %vm68, %v63, %v65
  %v71 = vsel %vm68, %v61, %v63
  %v72 = vsel %vm68, %v67, %v61
  %s73 = scalar_lea.vmem %s2, 1
  %v74 = vld [vmem:[%s73] ss:$8 sm:$0xf]
  %v76 = vlaneseq
  %v77 = vshrl.u32 %v76, 7
  %v78 = vsub.s32 0, %v77
  %v79 = vrot.slane %v74, %v78
  %v80 = vlaneseq
  %v81 = vshrl.u32 %v80, 7
  %v82 = vsub.s32 1, %v81
  %v83 = vrot.slane %v74, %v82
  %v84 = vlaneseq
  %v85 = vshrl.u32 %v84, 7
  %v86 = vsub.s32 2, %v85
  %v87 = vrot.slane %v74, %v86
  %v88 = vlaneseq
  %v89 = vshrl.u32 %v88, 7
  %v90 = vsub.s32 3, %v89
  %v91 = vrot.slane %v74, %v90
  %v96 = vmul.f32 %v72, %v79
  %v97 = vmul.f32 %v71, %v83
  %v98 = vmul.f32 %v70, %v87
  %v99 = vmul.f32 %v69, %v91
  %v100 = vpack.c.bf16 %v96, %v56
  %v101 = vpack.c.bf16 %v97, %v57
  %v102 = vpack.c.bf16 %v98, %v58
  %v103 = vpack.c.bf16 %v99, %v59
  %v108 = vunpack.c.l.b16 %v100
  %v109 = vunpack.c.l.b16 %v101
  %v110 = vunpack.c.l.b16 %v102
  %v111 = vunpack.c.l.b16 %v103
  %v112 = vunpack.c.h.b16 %v100
  %v113 = vunpack.c.h.b16 %v101
  %v114 = vunpack.c.h.b16 %v102
  %v115 = vunpack.c.h.b16 %v103
  %v116 = vpack.c.b16 %v109, %v108
  %v117 = vpack.c.b16 %v111, %v110
  %v118 = vpack.c.b16 %v113, %v112
  %v119 = vpack.c.b16 %v115, %v114
  %124 = vst [vmem:[#allocation2] sm:$0xff] %v116
  %125 = vst [vmem:[#allocation2 + $0x8] sm:$0xff] %v117
  %126 = vst [vmem:[#allocation2 + $0x10] sm:$0xff] %v118
  %127 = vst [vmem:[#allocation2 + $0x18] sm:$0xff] %v119
  %128 = vrot.lane.b32.xlu0 %v15, 32
  %v129 = vpop.permute.xlu0 %128
  %130 = vrot.lane.b32.xlu0 %v16, 32
  %v131 = vpop.permute.xlu0 %130
  %132 = vrot.lane.b32.xlu0 %v17, 32
  %v133 = vpop.permute.xlu0 %132
  %134 = vrot.lane.b32.xlu0 %v18, 32
  %v135 = vpop.permute.xlu0 %134
  %vm136 = vcmp.lt.s32.totalorder %v28, 32
  %v137 = vsel %vm136, %v133, %v135
  %v138 = vsel %vm136, %v131, %v133
  %v139 = vsel %vm136, %v129, %v131
  %v140 = vsel %vm136, %v135, %v129
  %s141 = scalar_lea.vmem %s2, 2
  %v142 = vld [vmem:[%s141] ss:$8 sm:$0xf]
  %v144 = vlaneseq
  %v145 = vshrl.u32 %v144, 7
  %v146 = vsub.s32 0, %v145
  %v147 = vrot.slane %v142, %v146
  %v148 = vlaneseq
  %v149 = vshrl.u32 %v148, 7
  %v150 = vsub.s32 1, %v149
  %v151 = vrot.slane %v142, %v150
  %v152 = vlaneseq
  %v153 = vshrl.u32 %v152, 7
  %v154 = vsub.s32 2, %v153
  %v155 = vrot.slane %v142, %v154
  %v156 = vlaneseq
  %v157 = vshrl.u32 %v156, 7
  %v158 = vsub.s32 3, %v157
  %v159 = vrot.slane %v142, %v158
  %v164 = vmul.f32 %v140, %v147
  %v165 = vmul.f32 %v139, %v151
  %v166 = vmul.f32 %v138, %v155
  %v167 = vmul.f32 %v137, %v159
  %168 = vrot.lane.b32.xlu0 %v15, 31
  %v169 = vpop.permute.xlu0 %168
  %170 = vrot.lane.b32.xlu0 %v16, 31
  %v171 = vpop.permute.xlu0 %170
  %172 = vrot.lane.b32.xlu0 %v17, 31
  %v173 = vpop.permute.xlu0 %172
  %174 = vrot.lane.b32.xlu0 %v18, 31
  %v175 = vpop.permute.xlu0 %174
  %vm176 = vcmp.lt.s32.totalorder %v28, 31
  %v177 = vsel %vm176, %v173, %v175
  %v178 = vsel %vm176, %v171, %v173
  %v179 = vsel %vm176, %v169, %v171
  %v180 = vsel %vm176, %v175, %v169
  %s181 = scalar_lea.vmem %s2, 3
  %v182 = vld [vmem:[%s181] ss:$8 sm:$0xf]
  %v184 = vlaneseq
  %v185 = vshrl.u32 %v184, 7
  %v186 = vsub.s32 0, %v185
  %v187 = vrot.slane %v182, %v186
  %v188 = vlaneseq
  %v189 = vshrl.u32 %v188, 7
  %v190 = vsub.s32 1, %v189
  %v191 = vrot.slane %v182, %v190
  %v192 = vlaneseq
  %v193 = vshrl.u32 %v192, 7
  %v194 = vsub.s32 2, %v193
  %v195 = vrot.slane %v182, %v194
  %v196 = vlaneseq
  %v197 = vshrl.u32 %v196, 7
  %v198 = vsub.s32 3, %v197
  %v199 = vrot.slane %v182, %v198
  %v204 = vmul.f32 %v180, %v187
  %v205 = vmul.f32 %v179, %v191
  %v206 = vmul.f32 %v178, %v195
  %v207 = vmul.f32 %v177, %v199
  %v208 = vpack.c.bf16 %v204, %v164
  %v209 = vpack.c.bf16 %v205, %v165
  %v210 = vpack.c.bf16 %v206, %v166
  %v211 = vpack.c.bf16 %v207, %v167
  %v216 = vunpack.c.l.b16 %v208
  %v217 = vunpack.c.l.b16 %v209
  %v218 = vunpack.c.l.b16 %v210
  %v219 = vunpack.c.l.b16 %v211
  %v220 = vunpack.c.h.b16 %v208
  %v221 = vunpack.c.h.b16 %v209
  %v222 = vunpack.c.h.b16 %v210
  %v223 = vunpack.c.h.b16 %v211
  %v224 = vpack.c.b16 %v217, %v216
  %v225 = vpack.c.b16 %v219, %v218
  %v226 = vpack.c.b16 %v221, %v220
  %v227 = vpack.c.b16 %v223, %v222
  %232 = vst [vmem:[#allocation2 + $0x20] sm:$0xff] %v224
  %233 = vst [vmem:[#allocation2 + $0x28] sm:$0xff] %v225
  %234 = vst [vmem:[#allocation2 + $0x30] sm:$0xff] %v226
  %235 = vst [vmem:[#allocation2 + $0x38] sm:$0xff] %v227
  %236 = vrot.lane.b32.xlu0 %v15, 30
  %v237 = vpop.permute.xlu0 %236
  %238 = vrot.lane.b32.xlu0 %v16, 30
  %v239 = vpop.permute.xlu0 %238
  %240 = vrot.lane.b32.xlu0 %v17, 30
  %v241 = vpop.permute.xlu0 %240
  %242 = vrot.lane.b32.xlu0 %v18, 30
  %v243 = vpop.permute.xlu0 %242
  %vm244 = vcmp.lt.s32.totalorder %v28, 30
  %v245 = vsel %vm244, %v241, %v243
  %v246 = vsel %vm244, %v239, %v241
  %v247 = vsel %vm244, %v237, %v239
  %v248 = vsel %vm244, %v243, %v237
  %s249 = scalar_lea.vmem %s2, 4
  %v250 = vld [vmem:[%s249] ss:$8 sm:$0xf]
  %v252 = vlaneseq
  %v253 = vshrl.u32 %v252, 7
  %v254 = vsub.s32 0, %v253
  %v255 = vrot.slane %v250, %v254
  %v256 = vlaneseq
  %v257 = vshrl.u32 %v256, 7
  %v258 = vsub.s32 1, %v257
  %v259 = vrot.slane %v250, %v258
  %v260 = vlaneseq
  %v261 = vshrl.u32 %v260, 7
  %v262 = vsub.s32 2, %v261
  %v263 = vrot.slane %v250, %v262
  %v264 = vlaneseq
  %v265 = vshrl.u32 %v264, 7
  %v266 = vsub.s32 3, %v265
  %v267 = vrot.slane %v250, %v266
  %v272 = vmul.f32 %v248, %v255
  %v273 = vmul.f32 %v247, %v259
  %v274 = vmul.f32 %v246, %v263
  %v275 = vmul.f32 %v245, %v267
  %276 = vrot.lane.b32.xlu0 %v15, 18
  %v277 = vpop.permute.xlu0 %276
  %278 = vrot.lane.b32.xlu0 %v16, 18
  %v279 = vpop.permute.xlu0 %278
  %280 = vrot.lane.b32.xlu0 %v17, 18
  %v281 = vpop.permute.xlu0 %280
  %282 = vrot.lane.b32.xlu0 %v18, 18
  %v283 = vpop.permute.xlu0 %282
  %vm284 = vcmp.lt.s32.totalorder %v28, 18
  %v285 = vsel %vm284, %v281, %v283
  %v286 = vsel %vm284, %v279, %v281
  %v287 = vsel %vm284, %v277, %v279
  %v288 = vsel %vm284, %v283, %v277
  %s289 = scalar_lea.vmem %s2, 5
  %v290 = vld [vmem:[%s289] ss:$8 sm:$0xf]
  %v292 = vlaneseq
  %v293 = vshrl.u32 %v292, 7
  %v294 = vsub.s32 0, %v293
  %v295 = vrot.slane %v290, %v294
  %v296 = vlaneseq
  %v297 = vshrl.u32 %v296, 7
  %v298 = vsub.s32 1, %v297
  %v299 = vrot.slane %v290, %v298
  %v300 = vlaneseq
  %v301 = vshrl.u32 %v300, 7
  %v302 = vsub.s32 2, %v301
  %v303 = vrot.slane %v290, %v302
  %v304 = vlaneseq
  %v305 = vshrl.u32 %v304, 7
  %v306 = vsub.s32 3, %v305
  %v307 = vrot.slane %v290, %v306
  %v312 = vmul.f32 %v288, %v295
  %v313 = vmul.f32 %v287, %v299
  %v314 = vmul.f32 %v286, %v303
  %v315 = vmul.f32 %v285, %v307
  %v316 = vpack.c.bf16 %v312, %v272
  %v317 = vpack.c.bf16 %v313, %v273
  %v318 = vpack.c.bf16 %v314, %v274
  %v319 = vpack.c.bf16 %v315, %v275
  %v324 = vunpack.c.l.b16 %v316
  %v325 = vunpack.c.l.b16 %v317
  %v326 = vunpack.c.l.b16 %v318
  %v327 = vunpack.c.l.b16 %v319
  %v328 = vunpack.c.h.b16 %v316
  %v329 = vunpack.c.h.b16 %v317
  %v330 = vunpack.c.h.b16 %v318
  %v331 = vunpack.c.h.b16 %v319
  %v332 = vpack.c.b16 %v325, %v324
  %v333 = vpack.c.b16 %v327, %v326
  %v334 = vpack.c.b16 %v329, %v328
  %v335 = vpack.c.b16 %v331, %v330
  %340 = vst [vmem:[#allocation2 + $0x40] sm:$0xff] %v332
  %341 = vst [vmem:[#allocation2 + $0x48] sm:$0xff] %v333
  %342 = vst [vmem:[#allocation2 + $0x50] sm:$0xff] %v334
  %343 = vst [vmem:[#allocation2 + $0x58] sm:$0xff] %v335
  %344 = vrot.lane.b32.xlu0 %v15, 17
  %v345 = vpop.permute.xlu0 %344
  %346 = vrot.lane.b32.xlu0 %v16, 17
  %v347 = vpop.permute.xlu0 %346
  %348 = vrot.lane.b32.xlu0 %v17, 17
  %v349 = vpop.permute.xlu0 %348
  %350 = vrot.lane.b32.xlu0 %v18, 17
  %v351 = vpop.permute.xlu0 %350
  %vm352 = vcmp.lt.s32.totalorder %v28, 17
  %v353 = vsel %vm352, %v349, %v351
  %v354 = vsel %vm352, %v347, %v349
  %v355 = vsel %vm352, %v345, %v347
  %v356 = vsel %vm352, %v351, %v345
  %s357 = scalar_lea.vmem %s2, 6
  %v358 = vld [vmem:[%s357] ss:$8 sm:$0xf]
  %v360 = vlaneseq
  %v361 = vshrl.u32 %v360, 7
  %v362 = vsub.s32 0, %v361
  %v363 = vrot.slane %v358, %v362
  %v364 = vlaneseq
  %v365 = vshrl.u32 %v364, 7
  %v366 = vsub.s32 1, %v365
  %v367 = vrot.slane %v358, %v366
  %v368 = vlaneseq
  %v369 = vshrl.u32 %v368, 7
  %v370 = vsub.s32 2, %v369
  %v371 = vrot.slane %v358, %v370
  %v372 = vlaneseq
  %v373 = vshrl.u32 %v372, 7
  %v374 = vsub.s32 3, %v373
  %v375 = vrot.slane %v358, %v374
  %v380 = vmul.f32 %v356, %v363
  %v381 = vmul.f32 %v355, %v367
  %v382 = vmul.f32 %v354, %v371
  %v383 = vmul.f32 %v353, %v375
  %384 = vrot.lane.b32.xlu0 %v15, 16
  %v385 = vpop.permute.xlu0 %384
  %386 = vrot.lane.b32.xlu0 %v16, 16
  %v387 = vpop.permute.xlu0 %386
  %388 = vrot.lane.b32.xlu0 %v17, 16
  %v389 = vpop.permute.xlu0 %388
  %390 = vrot.lane.b32.xlu0 %v18, 16
  %v391 = vpop.permute.xlu0 %390
  %vm392 = vcmp.lt.s32.totalorder %v28, 16
  %v393 = vsel %vm392, %v389, %v391
  %v394 = vsel %vm392, %v387, %v389
  %v395 = vsel %vm392, %v385, %v387
  %v396 = vsel %vm392, %v391, %v385
  %s397 = scalar_lea.vmem %s2, 7
  %v398 = vld [vmem:[%s397] ss:$8 sm:$0xf]
  %v400 = vlaneseq
  %v401 = vshrl.u32 %v400, 7
  %v402 = vsub.s32 0, %v401
  %v403 = vrot.slane %v398, %v402
  %v404 = vlaneseq
  %v405 = vshrl.u32 %v404, 7
  %v406 = vsub.s32 1, %v405
  %v407 = vrot.slane %v398, %v406
  %v408 = vlaneseq
  %v409 = vshrl.u32 %v408, 7
  %v410 = vsub.s32 2, %v409
  %v411 = vrot.slane %v398, %v410
  %v412 = vlaneseq
  %v413 = vshrl.u32 %v412, 7
  %v414 = vsub.s32 3, %v413
  %v415 = vrot.slane %v398, %v414
  %v420 = vmul.f32 %v396, %v403
  %v421 = vmul.f32 %v395, %v407
  %v422 = vmul.f32 %v394, %v411
  %v423 = vmul.f32 %v393, %v415
  %v424 = vpack.c.bf16 %v420, %v380
  %v425 = vpack.c.bf16 %v421, %v381
  %v426 = vpack.c.bf16 %v422, %v382
  %v427 = vpack.c.bf16 %v423, %v383
  %v432 = vunpack.c.l.b16 %v424
  %v433 = vunpack.c.l.b16 %v425
  %v434 = vunpack.c.l.b16 %v426
  %v435 = vunpack.c.l.b16 %v427
  %v436 = vunpack.c.h.b16 %v424
  %v437 = vunpack.c.h.b16 %v425
  %v438 = vunpack.c.h.b16 %v426
  %v439 = vunpack.c.h.b16 %v427
  %v440 = vpack.c.b16 %v433, %v432
  %v441 = vpack.c.b16 %v435, %v434
  %v442 = vpack.c.b16 %v437, %v436
  %v443 = vpack.c.b16 %v439, %v438
  %448 = vst [vmem:[#allocation2 + $0x60] sm:$0xff] %v440
  %449 = vst [vmem:[#allocation2 + $0x68] sm:$0xff] %v441
  %450 = vst [vmem:[#allocation2 + $0x70] sm:$0xff] %v442
  %451 = vst [vmem:[#allocation2 + $0x78] sm:$0xff] %v443
  %452 = vrot.lane.b32.xlu0 %v15, 15
  %v453 = vpop.permute.xlu0 %452
  %454 = vrot.lane.b32.xlu0 %v16, 15
  %v455 = vpop.permute.xlu0 %454
  %456 = vrot.lane.b32.xlu0 %v17, 15
  %v457 = vpop.permute.xlu0 %456
  %458 = vrot.lane.b32.xlu0 %v18, 15
  %v459 = vpop.permute.xlu0 %458
  %vm460 = vcmp.lt.s32.totalorder %v28, 15
  %v461 = vsel %vm460, %v457, %v459
  %v462 = vsel %vm460, %v455, %v457
  %v463 = vsel %vm460, %v453, %v455
  %v464 = vsel %vm460, %v459, %v453
  %s465 = scalar_lea.vmem %s2, 32
  %v466 = vld [vmem:[%s465] ss:$8 sm:$0xf]
  %v468 = vlaneseq
  %v469 = vshrl.u32 %v468, 7
  %v470 = vsub.s32 0, %v469
  %v471 = vrot.slane %v466, %v470
  %v472 = vlaneseq
  %v473 = vshrl.u32 %v472, 7
  %v474 = vsub.s32 1, %v473
  %v475 = vrot.slane %v466, %v474
  %v476 = vlaneseq
  %v477 = vshrl.u32 %v476, 7
  %v478 = vsub.s32 2, %v477
  %v479 = vrot.slane %v466, %v478
  %v480 = vlaneseq
  %v481 = vshrl.u32 %v480, 7
  %v482 = vsub.s32 3, %v481
  %v483 = vrot.slane %v466, %v482
  %v488 = vmul.f32 %v464, %v471
  %v489 = vmul.f32 %v463, %v475
  %v490 = vmul.f32 %v462, %v479
  %v491 = vmul.f32 %v461, %v483
  %492 = vrot.lane.b32.xlu0 %v15, 14
  %v493 = vpop.permute.xlu0 %492
  %494 = vrot.lane.b32.xlu0 %v16, 14
  %v495 = vpop.permute.xlu0 %494
  %496 = vrot.lane.b32.xlu0 %v17, 14
  %v497 = vpop.permute.xlu0 %496
  %498 = vrot.lane.b32.xlu0 %v18, 14
  %v499 = vpop.permute.xlu0 %498
  %vm500 = vcmp.lt.s32.totalorder %v28, 14
  %v501 = vsel %vm500, %v497, %v499
  %v502 = vsel %vm500, %v495, %v497
  %v503 = vsel %vm500, %v493, %v495
  %v504 = vsel %vm500, %v499, %v493
  %s505 = scalar_lea.vmem %s2, 33
  %v506 = vld [vmem:[%s505] ss:$8 sm:$0xf]
  %v508 = vlaneseq
  %v509 = vshrl.u32 %v508, 7
  %v510 = vsub.s32 0, %v509
  %v511 = vrot.slane %v506, %v510
  %v512 = vlaneseq
  %v513 = vshrl.u32 %v512, 7
  %v514 = vsub.s32 1, %v513
  %v515 = vrot.slane %v506, %v514
  %v516 = vlaneseq
  %v517 = vshrl.u32 %v516, 7
  %v518 = vsub.s32 2, %v517
  %v519 = vrot.slane %v506, %v518
  %v520 = vlaneseq
  %v521 = vshrl.u32 %v520, 7
  %v522 = vsub.s32 3, %v521
  %v523 = vrot.slane %v506, %v522
  %v528 = vmul.f32 %v504, %v511
  %v529 = vmul.f32 %v503, %v515
  %v530 = vmul.f32 %v502, %v519
  %v531 = vmul.f32 %v501, %v523
  %v532 = vpack.c.bf16 %v528, %v488
  %v533 = vpack.c.bf16 %v529, %v489
  %v534 = vpack.c.bf16 %v530, %v490
  %v535 = vpack.c.bf16 %v531, %v491
  %v540 = vunpack.c.l.b16 %v532
  %v541 = vunpack.c.l.b16 %v533
  %v542 = vunpack.c.l.b16 %v534
  %v543 = vunpack.c.l.b16 %v535
  %v544 = vunpack.c.h.b16 %v532
  %v545 = vunpack.c.h.b16 %v533
  %v546 = vunpack.c.h.b16 %v534
  %v547 = vunpack.c.h.b16 %v535
  %v548 = vpack.c.b16 %v541, %v540
  %v549 = vpack.c.b16 %v543, %v542
  %v550 = vpack.c.b16 %v545, %v544
  %v551 = vpack.c.b16 %v547, %v546
  %556 = vst [vmem:[#allocation2 + $0x80] sm:$0xff] %v548
  %557 = vst [vmem:[#allocation2 + $0x88] sm:$0xff] %v549
  %558 = vst [vmem:[#allocation2 + $0x90] sm:$0xff] %v550
  %559 = vst [vmem:[#allocation2 + $0x98] sm:$0xff] %v551
  %560 = vrot.lane.b32.xlu0 %v15, 2
  %v561 = vpop.permute.xlu0 %560
  %562 = vrot.lane.b32.xlu0 %v16, 2
  %v563 = vpop.permute.xlu0 %562
  %564 = vrot.lane.b32.xlu0 %v17, 2
  %v565 = vpop.permute.xlu0 %564
  %566 = vrot.lane.b32.xlu0 %v18, 2
  %v567 = vpop.permute.xlu0 %566
  %vm568 = vcmp.lt.s32.totalorder %v28, 2
  %v569 = vsel %vm568, %v565, %v567
  %v570 = vsel %vm568, %v563, %v565
  %v571 = vsel %vm568, %v561, %v563
  %v572 = vsel %vm568, %v567, %v561
  %s573 = scalar_lea.vmem %s2, 34
  %v574 = vld [vmem:[%s573] ss:$8 sm:$0xf]
  %v576 = vlaneseq
  %v577 = vshrl.u32 %v576, 7
  %v578 = vsub.s32 0, %v577
  %v579 = vrot.slane %v574, %v578
  %v580 = vlaneseq
  %v581 = vshrl.u32 %v580, 7
  %v582 = vsub.s32 1, %v581
  %v583 = vrot.slane %v574, %v582
  %v584 = vlaneseq
  %v585 = vshrl.u32 %v584, 7
  %v586 = vsub.s32 2, %v585
  %v587 = vrot.slane %v574, %v586
  %v588 = vlaneseq
  %v589 = vshrl.u32 %v588, 7
  %v590 = vsub.s32 3, %v589
  %v591 = vrot.slane %v574, %v590
  %v596 = vmul.f32 %v572, %v579
  %v597 = vmul.f32 %v571, %v583
  %v598 = vmul.f32 %v570, %v587
  %v599 = vmul.f32 %v569, %v591
  %600 = vrot.lane.b32.xlu0 %v15, 1
  %v601 = vpop.permute.xlu0 %600
  %602 = vrot.lane.b32.xlu0 %v16, 1
  %v603 = vpop.permute.xlu0 %602
  %604 = vrot.lane.b32.xlu0 %v17, 1
  %v605 = vpop.permute.xlu0 %604
  %606 = vrot.lane.b32.xlu0 %v18, 1
  %v607 = vpop.permute.xlu0 %606
  %vm608 = vcmp.lt.s32.totalorder %v28, 1
  %v609 = vsel %vm608, %v605, %v607
  %v610 = vsel %vm608, %v603, %v605
  %v611 = vsel %vm608, %v601, %v603
  %v612 = vsel %vm608, %v607, %v601
  %s613 = scalar_lea.vmem %s2, 35
  %v614 = vld [vmem:[%s613] ss:$8 sm:$0xf]
  %v616 = vlaneseq
  %v617 = vshrl.u32 %v616, 7
  %v618 = vsub.s32 0, %v617
  %v619 = vrot.slane %v614, %v618
  %v620 = vlaneseq
  %v621 = vshrl.u32 %v620, 7
  %v622 = vsub.s32 1, %v621
  %v623 = vrot.slane %v614, %v622
  %v624 = vlaneseq
  %v625 = vshrl.u32 %v624, 7
  %v626 = vsub.s32 2, %v625
  %v627 = vrot.slane %v614, %v626
  %v628 = vlaneseq
  %v629 = vshrl.u32 %v628, 7
  %v630 = vsub.s32 3, %v629
  %v631 = vrot.slane %v614, %v630
  %v636 = vmul.f32 %v612, %v619
  %v637 = vmul.f32 %v611, %v623
  %v638 = vmul.f32 %v610, %v627
  %v639 = vmul.f32 %v609, %v631
  %v640 = vpack.c.bf16 %v636, %v596
  %v641 = vpack.c.bf16 %v637, %v597
  %v642 = vpack.c.bf16 %v638, %v598
  %v643 = vpack.c.bf16 %v639, %v599
  %v648 = vunpack.c.l.b16 %v640
  %v649 = vunpack.c.l.b16 %v641
  %v650 = vunpack.c.l.b16 %v642
  %v651 = vunpack.c.l.b16 %v643
  %v652 = vunpack.c.h.b16 %v640
  %v653 = vunpack.c.h.b16 %v641
  %v654 = vunpack.c.h.b16 %v642
  %v655 = vunpack.c.h.b16 %v643
  %v656 = vpack.c.b16 %v649, %v648
  %v657 = vpack.c.b16 %v651, %v650
  %v658 = vpack.c.b16 %v653, %v652
  %v659 = vpack.c.b16 %v655, %v654
  %664 = vst [vmem:[#allocation2 + $0xa0] sm:$0xff] %v656
  %665 = vst [vmem:[#allocation2 + $0xa8] sm:$0xff] %v657
  %666 = vst [vmem:[#allocation2 + $0xb0] sm:$0xff] %v658
  %667 = vst [vmem:[#allocation2 + $0xb8] sm:$0xff] %v659
  %668 = vrot.lane.b32.xlu0 %v15, 127
  %v669 = vpop.permute.xlu0 %668
  %670 = vrot.lane.b32.xlu0 %v16, 127
  %v671 = vpop.permute.xlu0 %670
  %672 = vrot.lane.b32.xlu0 %v17, 127
  %v673 = vpop.permute.xlu0 %672
  %674 = vrot.lane.b32.xlu0 %v18, 127
  %v675 = vpop.permute.xlu0 %674
  %vm676 = vcmp.lt.s32.totalorder %v28, 127
  %v677 = vsel %vm676, %v673, %v675
  %v678 = vsel %vm676, %v671, %v673
  %v679 = vsel %vm676, %v669, %v671
  %v680 = vsel %vm676, %v675, %v669
  %s681 = scalar_lea.vmem %s2, 37
  %v682 = vld [vmem:[%s681] ss:$8 sm:$0xf]
  %v684 = vlaneseq
  %v685 = vshrl.u32 %v684, 7
  %v686 = vsub.s32 0, %v685
  %v687 = vrot.slane %v682, %v686
  %v688 = vlaneseq
  %v689 = vshrl.u32 %v688, 7
  %v690 = vsub.s32 1, %v689
  %v691 = vrot.slane %v682, %v690
  %v692 = vlaneseq
  %v693 = vshrl.u32 %v692, 7
  %v694 = vsub.s32 2, %v693
  %v695 = vrot.slane %v682, %v694
  %v696 = vlaneseq
  %v697 = vshrl.u32 %v696, 7
  %v698 = vsub.s32 3, %v697
  %v699 = vrot.slane %v682, %v698
  %v704 = vmul.f32 %v679, %v687
  %v705 = vmul.f32 %v678, %v691
  %v706 = vmul.f32 %v677, %v695
  %v707 = vmul.f32 %v680, %v699
  %v708 = vpack.c.bf16 %v704, %v15
  %v709 = vpack.c.bf16 %v705, %v16
  %v710 = vpack.c.bf16 %v706, %v17
  %v711 = vpack.c.bf16 %v707, %v18
  %v716 = vunpack.c.l.b16 %v708
  %v717 = vunpack.c.l.b16 %v709
  %v718 = vunpack.c.l.b16 %v710
  %v719 = vunpack.c.l.b16 %v711
  %v720 = vunpack.c.h.b16 %v708
  %v721 = vunpack.c.h.b16 %v709
  %v722 = vunpack.c.h.b16 %v710
  %v723 = vunpack.c.h.b16 %v711
  %v724 = vpack.c.b16 %v717, %v716
  %v725 = vpack.c.b16 %v719, %v718
  %v726 = vpack.c.b16 %v721, %v720
  %v727 = vpack.c.b16 %v723, %v722
  %732 = vst [vmem:[#allocation2 + $0xc0] sm:$0xff] %v724
  %733 = vst [vmem:[#allocation2 + $0xc8] sm:$0xff] %v725
  %734 = vst [vmem:[#allocation2 + $0xd0] sm:$0xff] %v726
  %735 = vst [vmem:[#allocation2 + $0xd8] sm:$0xff] %v727
  %736 = vrot.lane.b32.xlu0 %v15, 126
  %v737 = vpop.permute.xlu0 %736
  %738 = vrot.lane.b32.xlu0 %v16, 126
  %v739 = vpop.permute.xlu0 %738
  %740 = vrot.lane.b32.xlu0 %v17, 126
  %v741 = vpop.permute.xlu0 %740
  %742 = vrot.lane.b32.xlu0 %v18, 126
  %v743 = vpop.permute.xlu0 %742
  %vm744 = vcmp.lt.s32.totalorder %v28, 126
  %v745 = vsel %vm744, %v741, %v743
  %v746 = vsel %vm744, %v739, %v741
  %v747 = vsel %vm744, %v737, %v739
  %v748 = vsel %vm744, %v743, %v737
  %s749 = scalar_lea.vmem %s2, 38
  %v750 = vld [vmem:[%s749] ss:$8 sm:$0xf]
  %v752 = vlaneseq
  %v753 = vshrl.u32 %v752, 7
  %v754 = vsub.s32 0, %v753
  %v755 = vrot.slane %v750, %v754
  %v756 = vlaneseq
  %v757 = vshrl.u32 %v756, 7
  %v758 = vsub.s32 1, %v757
  %v759 = vrot.slane %v750, %v758
  %v760 = vlaneseq
  %v761 = vshrl.u32 %v760, 7
  %v762 = vsub.s32 2, %v761
  %v763 = vrot.slane %v750, %v762
  %v764 = vlaneseq
  %v765 = vshrl.u32 %v764, 7
  %v766 = vsub.s32 3, %v765
  %v767 = vrot.slane %v750, %v766
  %v772 = vmul.f32 %v747, %v755
  %v773 = vmul.f32 %v746, %v759
  %v774 = vmul.f32 %v745, %v763
  %v775 = vmul.f32 %v748, %v767
  %776 = vrot.lane.b32.xlu0 %v15, 114
  %v777 = vpop.permute.xlu0 %776
  %778 = vrot.lane.b32.xlu0 %v16, 114
  %v779 = vpop.permute.xlu0 %778
  %780 = vrot.lane.b32.xlu0 %v17, 114
  %v781 = vpop.permute.xlu0 %780
  %782 = vrot.lane.b32.xlu0 %v18, 114
  %v783 = vpop.permute.xlu0 %782
  %vm784 = vcmp.lt.s32.totalorder %v28, 114
  %v785 = vsel %vm784, %v781, %v783
  %v786 = vsel %vm784, %v779, %v781
  %v787 = vsel %vm784, %v777, %v779
  %v788 = vsel %vm784, %v783, %v777
  %s789 = scalar_lea.vmem %s2, 39
  %v790 = vld [vmem:[%s789] ss:$8 sm:$0xf]
  %v792 = vlaneseq
  %v793 = vshrl.u32 %v792, 7
  %v794 = vsub.s32 0, %v793
  %v795 = vrot.slane %v790, %v794
  %v796 = vlaneseq
  %v797 = vshrl.u32 %v796, 7
  %v798 = vsub.s32 1, %v797
  %v799 = vrot.slane %v790, %v798
  %v800 = vlaneseq
  %v801 = vshrl.u32 %v800, 7
  %v802 = vsub.s32 2, %v801
  %v803 = vrot.slane %v790, %v802
  %v804 = vlaneseq
  %v805 = vshrl.u32 %v804, 7
  %v806 = vsub.s32 3, %v805
  %v807 = vrot.slane %v790, %v806
  %v812 = vmul.f32 %v787, %v795
  %v813 = vmul.f32 %v786, %v799
  %v814 = vmul.f32 %v785, %v803
  %v815 = vmul.f32 %v788, %v807
  %v816 = vpack.c.bf16 %v812, %v772
  %v817 = vpack.c.bf16 %v813, %v773
  %v818 = vpack.c.bf16 %v814, %v774
  %v819 = vpack.c.bf16 %v815, %v775
  %v824 = vunpack.c.l.b16 %v816
  %v825 = vunpack.c.l.b16 %v817
  %v826 = vunpack.c.l.b16 %v818
  %v827 = vunpack.c.l.b16 %v819
  %v828 = vunpack.c.h.b16 %v816
  %v829 = vunpack.c.h.b16 %v817
  %v830 = vunpack.c.h.b16 %v818
  %v831 = vunpack.c.h.b16 %v819
  %v832 = vpack.c.b16 %v825, %v824
  %v833 = vpack.c.b16 %v827, %v826
  %v834 = vpack.c.b16 %v829, %v828
  %v835 = vpack.c.b16 %v831, %v830
  %840 = vst [vmem:[#allocation2 + $0xe0] sm:$0xff] %v832
  %841 = vst [vmem:[#allocation2 + $0xe8] sm:$0xff] %v833
  %842 = vst [vmem:[#allocation2 + $0xf0] sm:$0xff] %v834
  %843 = vst [vmem:[#allocation2 + $0xf8] sm:$0xff] %v835
  %844 = vrot.lane.b32.xlu0 %v15, 113
  %v845 = vpop.permute.xlu0 %844
  %846 = vrot.lane.b32.xlu0 %v16, 113
  %v847 = vpop.permute.xlu0 %846
  %848 = vrot.lane.b32.xlu0 %v17, 113
  %v849 = vpop.permute.xlu0 %848
  %850 = vrot.lane.b32.xlu0 %v18, 113
  %v851 = vpop.permute.xlu0 %850
  %vm852 = vcmp.lt.s32.totalorder %v28, 113
  %v853 = vsel %vm852, %v849, %v851
  %v854 = vsel %vm852, %v847, %v849
  %v855 = vsel %vm852, %v845, %v847
  %v856 = vsel %vm852, %v851, %v845
  %s857 = scalar_lea.vmem %s2, 64
  %v858 = vld [vmem:[%s857] ss:$8 sm:$0xf]
  %v860 = vlaneseq
  %v861 = vshrl.u32 %v860, 7
  %v862 = vsub.s32 0, %v861
  %v863 = vrot.slane %v858, %v862
  %v864 = vlaneseq
  %v865 = vshrl.u32 %v864, 7
  %v866 = vsub.s32 1, %v865
  %v867 = vrot.slane %v858, %v866
  %v868 = vlaneseq
  %v869 = vshrl.u32 %v868, 7
  %v870 = vsub.s32 2, %v869
  %v871 = vrot.slane %v858, %v870
  %v872 = vlaneseq
  %v873 = vshrl.u32 %v872, 7
  %v874 = vsub.s32 3, %v873
  %v875 = vrot.slane %v858, %v874
  %v880 = vmul.f32 %v855, %v863
  %v881 = vmul.f32 %v854, %v867
  %v882 = vmul.f32 %v853, %v871
  %v883 = vmul.f32 %v856, %v875
  %884 = vrot.lane.b32.xlu0 %v15, 112
  %v885 = vpop.permute.xlu0 %884
  %886 = vrot.lane.b32.xlu0 %v16, 112
  %v887 = vpop.permute.xlu0 %886
  %888 = vrot.lane.b32.xlu0 %v17, 112
  %v889 = vpop.permute.xlu0 %888
  %890 = vrot.lane.b32.xlu0 %v18, 112
  %v891 = vpop.permute.xlu0 %890
  %vm892 = vcmp.lt.s32.totalorder %v28, 112
  %v893 = vsel %vm892, %v889, %v891
  %v894 = vsel %vm892, %v887, %v889
  %v895 = vsel %vm892, %v885, %v887
  %v896 = vsel %vm892, %v891, %v885
  %s897 = scalar_lea.vmem %s2, 65
  %v898 = vld [vmem:[%s897] ss:$8 sm:$0xf]
  %v900 = vlaneseq
  %v901 = vshrl.u32 %v900, 7
  %v902 = vsub.s32 0, %v901
  %v903 = vrot.slane %v898, %v902
  %v904 = vlaneseq
  %v905 = vshrl.u32 %v904, 7
  %v906 = vsub.s32 1, %v905
  %v907 = vrot.slane %v898, %v906
  %v908 = vlaneseq
  %v909 = vshrl.u32 %v908, 7
  %v910 = vsub.s32 2, %v909
  %v911 = vrot.slane %v898, %v910
  %v912 = vlaneseq
  %v913 = vshrl.u32 %v912, 7
  %v914 = vsub.s32 3, %v913
  %v915 = vrot.slane %v898, %v914
  %v920 = vmul.f32 %v895, %v903
  %v921 = vmul.f32 %v894, %v907
  %v922 = vmul.f32 %v893, %v911
  %v923 = vmul.f32 %v896, %v915
  %v924 = vpack.c.bf16 %v920, %v880
  %v925 = vpack.c.bf16 %v921, %v881
  %v926 = vpack.c.bf16 %v922, %v882
  %v927 = vpack.c.bf16 %v923, %v883
  %v932 = vunpack.c.l.b16 %v924
  %v933 = vunpack.c.l.b16 %v925
  %v934 = vunpack.c.l.b16 %v926
  %v935 = vunpack.c.l.b16 %v927
  %v936 = vunpack.c.h.b16 %v924
  %v937 = vunpack.c.h.b16 %v925
  %v938 = vunpack.c.h.b16 %v926
  %v939 = vunpack.c.h.b16 %v927
  %v940 = vpack.c.b16 %v933, %v932
  %v941 = vpack.c.b16 %v935, %v934
  %v942 = vpack.c.b16 %v937, %v936
  %v943 = vpack.c.b16 %v939, %v938
  %948 = vst [vmem:[#allocation2 + $0x100] sm:$0xff] %v940
  %949 = vst [vmem:[#allocation2 + $0x108] sm:$0xff] %v941
  %950 = vst [vmem:[#allocation2 + $0x110] sm:$0xff] %v942
  %951 = vst [vmem:[#allocation2 + $0x118] sm:$0xff] %v943
  %952 = vrot.lane.b32.xlu0 %v15, 111
  %v953 = vpop.permute.xlu0 %952
  %954 = vrot.lane.b32.xlu0 %v16, 111
  %v955 = vpop.permute.xlu0 %954
  %956 = vrot.lane.b32.xlu0 %v17, 111
  %v957 = vpop.permute.xlu0 %956
  %958 = vrot.lane.b32.xlu0 %v18, 111
  %v959 = vpop.permute.xlu0 %958
  %vm960 = vcmp.lt.s32.totalorder %v28, 111
  %v961 = vsel %vm960, %v957, %v959
  %v962 = vsel %vm960, %v955, %v957
  %v963 = vsel %vm960, %v953, %v955
  %v964 = vsel %vm960, %v959, %v953
  %s965 = scalar_lea.vmem %s2, 66
  %v966 = vld [vmem:[%s965] ss:$8 sm:$0xf]
  %v968 = vlaneseq
  %v969 = vshrl.u32 %v968, 7
  %v970 = vsub.s32 0, %v969
  %v971 = vrot.slane %v966, %v970
  %v972 = vlaneseq
  %v973 = vshrl.u32 %v972, 7
  %v974 = vsub.s32 1, %v973
  %v975 = vrot.slane %v966, %v974
  %v976 = vlaneseq
  %v977 = vshrl.u32 %v976, 7
  %v978 = vsub.s32 2, %v977
  %v979 = vrot.slane %v966, %v978
  %v980 = vlaneseq
  %v981 = vshrl.u32 %v980, 7
  %v982 = vsub.s32 3, %v981
  %v983 = vrot.slane %v966, %v982
  %v988 = vmul.f32 %v963, %v971
  %v989 = vmul.f32 %v962, %v975
  %v990 = vmul.f32 %v961, %v979
  %v991 = vmul.f32 %v964, %v983
  %992 = vrot.lane.b32.xlu0 %v15, 110
  %v993 = vpop.permute.xlu0 %992
  %994 = vrot.lane.b32.xlu0 %v16, 110
  %v995 = vpop.permute.xlu0 %994
  %996 = vrot.lane.b32.xlu0 %v17, 110
  %v997 = vpop.permute.xlu0 %996
  %998 = vrot.lane.b32.xlu0 %v18, 110
  %v999 = vpop.permute.xlu0 %998
  %vm1000 = vcmp.lt.s32.totalorder %v28, 110
  %v1001 = vsel %vm1000, %v997, %v999
  %v1002 = vsel %vm1000, %v995, %v997
  %v1003 = vsel %vm1000, %v993, %v995
  %v1004 = vsel %vm1000, %v999, %v993
  %s1005 = scalar_lea.vmem %s2, 67
  %v1006 = vld [vmem:[%s1005] ss:$8 sm:$0xf]
  %v1008 = vlaneseq
  %v1009 = vshrl.u32 %v1008, 7
  %v1010 = vsub.s32 0, %v1009
  %v1011 = vrot.slane %v1006, %v1010
  %v1012 = vlaneseq
  %v1013 = vshrl.u32 %v1012, 7
  %v1014 = vsub.s32 1, %v1013
  %v1015 = vrot.slane %v1006, %v1014
  %v1016 = vlaneseq
  %v1017 = vshrl.u32 %v1016, 7
  %v1018 = vsub.s32 2, %v1017
  %v1019 = vrot.slane %v1006, %v1018
  %v1020 = vlaneseq
  %v1021 = vshrl.u32 %v1020, 7
  %v1022 = vsub.s32 3, %v1021
  %v1023 = vrot.slane %v1006, %v1022
  %v1028 = vmul.f32 %v1003, %v1011
  %v1029 = vmul.f32 %v1002, %v1015
  %v1030 = vmul.f32 %v1001, %v1019
  %v1031 = vmul.f32 %v1004, %v1023
  %v1032 = vpack.c.bf16 %v1028, %v988
  %v1033 = vpack.c.bf16 %v1029, %v989
  %v1034 = vpack.c.bf16 %v1030, %v990
  %v1035 = vpack.c.bf16 %v1031, %v991
  %v1040 = vunpack.c.l.b16 %v1032
  %v1041 = vunpack.c.l.b16 %v1033
  %v1042 = vunpack.c.l.b16 %v1034
  %v1043 = vunpack.c.l.b16 %v1035
  %v1044 = vunpack.c.h.b16 %v1032
  %v1045 = vunpack.c.h.b16 %v1033
  %v1046 = vunpack.c.h.b16 %v1034
  %v1047 = vunpack.c.h.b16 %v1035
  %v1048 = vpack.c.b16 %v1041, %v1040
  %v1049 = vpack.c.b16 %v1043, %v1042
  %v1050 = vpack.c.b16 %v1045, %v1044
  %v1051 = vpack.c.b16 %v1047, %v1046
  %1056 = vst [vmem:[#allocation2 + $0x120] sm:$0xff] %v1048
  %1057 = vst [vmem:[#allocation2 + $0x128] sm:$0xff] %v1049
  %1058 = vst [vmem:[#allocation2 + $0x130] sm:$0xff] %v1050
  %1059 = vst [vmem:[#allocation2 + $0x138] sm:$0xff] %v1051
  %1060 = vrot.lane.b32.xlu0 %v15, 98
  %v1061 = vpop.permute.xlu0 %1060
  %1062 = vrot.lane.b32.xlu0 %v16, 98
  %v1063 = vpop.permute.xlu0 %1062
  %1064 = vrot.lane.b32.xlu0 %v17, 98
  %v1065 = vpop.permute.xlu0 %1064
  %1066 = vrot.lane.b32.xlu0 %v18, 98
  %v1067 = vpop.permute.xlu0 %1066
  %vm1068 = vcmp.lt.s32.totalorder %v28, 98
  %v1069 = vsel %vm1068, %v1065, %v1067
  %v1070 = vsel %vm1068, %v1063, %v1065
  %v1071 = vsel %vm1068, %v1061, %v1063
  %v1072 = vsel %vm1068, %v1067, %v1061
  %s1073 = scalar_lea.vmem %s2, 68
  %v1074 = vld [vmem:[%s1073] ss:$8 sm:$0xf]
  %v1076 = vlaneseq
  %v1077 = vshrl.u32 %v1076, 7
  %v1078 = vsub.s32 0, %v1077
  %v1079 = vrot.slane %v1074, %v1078
  %v1080 = vlaneseq
  %v1081 = vshrl.u32 %v1080, 7
  %v1082 = vsub.s32 1, %v1081
  %v1083 = vrot.slane %v1074, %v1082
  %v1084 = vlaneseq
  %v1085 = vshrl.u32 %v1084, 7
  %v1086 = vsub.s32 2, %v1085
  %v1087 = vrot.slane %v1074, %v1086
  %v1088 = vlaneseq
  %v1089 = vshrl.u32 %v1088, 7
  %v1090 = vsub.s32 3, %v1089
  %v1091 = vrot.slane %v1074, %v1090
  %v1096 = vmul.f32 %v1071, %v1079
  %v1097 = vmul.f32 %v1070, %v1083
  %v1098 = vmul.f32 %v1069, %v1087
  %v1099 = vmul.f32 %v1072, %v1091
  %1100 = vrot.lane.b32.xlu0 %v15, 97
  %v1101 = vpop.permute.xlu0 %1100
  %1102 = vrot.lane.b32.xlu0 %v16, 97
  %v1103 = vpop.permute.xlu0 %1102
  %1104 = vrot.lane.b32.xlu0 %v17, 97
  %v1105 = vpop.permute.xlu0 %1104
  %1106 = vrot.lane.b32.xlu0 %v18, 97
  %v1107 = vpop.permute.xlu0 %1106
  %vm1108 = vcmp.lt.s32.totalorder %v28, 97
  %v1109 = vsel %vm1108, %v1105, %v1107
  %v1110 = vsel %vm1108, %v1103, %v1105
  %v1111 = vsel %vm1108, %v1101, %v1103
  %v1112 = vsel %vm1108, %v1107, %v1101
  %s1113 = scalar_lea.vmem %s2, 69
  %v1114 = vld [vmem:[%s1113] ss:$8 sm:$0xf]
  %v1116 = vlaneseq
  %v1117 = vshrl.u32 %v1116, 7
  %v1118 = vsub.s32 0, %v1117
  %v1119 = vrot.slane %v1114, %v1118
  %v1120 = vlaneseq
  %v1121 = vshrl.u32 %v1120, 7
  %v1122 = vsub.s32 1, %v1121
  %v1123 = vrot.slane %v1114, %v1122
  %v1124 = vlaneseq
  %v1125 = vshrl.u32 %v1124, 7
  %v1126 = vsub.s32 2, %v1125
  %v1127 = vrot.slane %v1114, %v1126
  %v1128 = vlaneseq
  %v1129 = vshrl.u32 %v1128, 7
  %v1130 = vsub.s32 3, %v1129
  %v1131 = vrot.slane %v1114, %v1130
  %v1136 = vmul.f32 %v1111, %v1119
  %v1137 = vmul.f32 %v1110, %v1123
  %v1138 = vmul.f32 %v1109, %v1127
  %v1139 = vmul.f32 %v1112, %v1131
  %v1140 = vpack.c.bf16 %v1136, %v1096
  %v1141 = vpack.c.bf16 %v1137, %v1097
  %v1142 = vpack.c.bf16 %v1138, %v1098
  %v1143 = vpack.c.bf16 %v1139, %v1099
  %v1148 = vunpack.c.l.b16 %v1140
  %v1149 = vunpack.c.l.b16 %v1141
  %v1150 = vunpack.c.l.b16 %v1142
  %v1151 = vunpack.c.l.b16 %v1143
  %v1152 = vunpack.c.h.b16 %v1140
  %v1153 = vunpack.c.h.b16 %v1141
  %v1154 = vunpack.c.h.b16 %v1142
  %v1155 = vunpack.c.h.b16 %v1143
  %v1156 = vpack.c.b16 %v1149, %v1148
  %v1157 = vpack.c.b16 %v1151, %v1150
  %v1158 = vpack.c.b16 %v1153, %v1152
  %v1159 = vpack.c.b16 %v1155, %v1154
  %1164 = vst [vmem:[#allocation2 + $0x140] sm:$0xff] %v1156
  %1165 = vst [vmem:[#allocation2 + $0x148] sm:$0xff] %v1157
  %1166 = vst [vmem:[#allocation2 + $0x150] sm:$0xff] %v1158
  %1167 = vst [vmem:[#allocation2 + $0x158] sm:$0xff] %v1159
  %1168 = vrot.lane.b32.xlu0 %v15, 96
  %v1169 = vpop.permute.xlu0 %1168
  %1170 = vrot.lane.b32.xlu0 %v16, 96
  %v1171 = vpop.permute.xlu0 %1170
  %1172 = vrot.lane.b32.xlu0 %v17, 96
  %v1173 = vpop.permute.xlu0 %1172
  %1174 = vrot.lane.b32.xlu0 %v18, 96
  %v1175 = vpop.permute.xlu0 %1174
  %vm1176 = vcmp.lt.s32.totalorder %v28, 96
  %v1177 = vsel %vm1176, %v1173, %v1175
  %v1178 = vsel %vm1176, %v1171, %v1173
  %v1179 = vsel %vm1176, %v1169, %v1171
  %v1180 = vsel %vm1176, %v1175, %v1169
  %s1181 = scalar_lea.vmem %s2, 70
  %v1182 = vld [vmem:[%s1181] ss:$8 sm:$0xf]
  %v1184 = vlaneseq
  %v1185 = vshrl.u32 %v1184, 7
  %v1186 = vsub.s32 0, %v1185
  %v1187 = vrot.slane %v1182, %v1186
  %v1188 = vlaneseq
  %v1189 = vshrl.u32 %v1188, 7
  %v1190 = vsub.s32 1, %v1189
  %v1191 = vrot.slane %v1182, %v1190
  %v1192 = vlaneseq
  %v1193 = vshrl.u32 %v1192, 7
  %v1194 = vsub.s32 2, %v1193
  %v1195 = vrot.slane %v1182, %v1194
  %v1196 = vlaneseq
  %v1197 = vshrl.u32 %v1196, 7
  %v1198 = vsub.s32 3, %v1197
  %v1199 = vrot.slane %v1182, %v1198
  %v1204 = vmul.f32 %v1179, %v1187
  %v1205 = vmul.f32 %v1178, %v1191
  %v1206 = vmul.f32 %v1177, %v1195
  %v1207 = vmul.f32 %v1180, %v1199
  %1208 = vrot.lane.b32.xlu0 %v15, 95
  %v1209 = vpop.permute.xlu0 %1208
  %1210 = vrot.lane.b32.xlu0 %v16, 95
  %v1211 = vpop.permute.xlu0 %1210
  %1212 = vrot.lane.b32.xlu0 %v17, 95
  %v1213 = vpop.permute.xlu0 %1212
  %1214 = vrot.lane.b32.xlu0 %v18, 95
  %v1215 = vpop.permute.xlu0 %1214
  %vm1216 = vcmp.lt.s32.totalorder %v28, 95
  %v1217 = vsel %vm1216, %v1213, %v1215
  %v1218 = vsel %vm1216, %v1211, %v1213
  %v1219 = vsel %vm1216, %v1209, %v1211
  %v1220 = vsel %vm1216, %v1215, %v1209
  %s1221 = scalar_lea.vmem %s2, 71
  %v1222 = vld [vmem:[%s1221] ss:$8 sm:$0xf]
  %v1224 = vlaneseq
  %v1225 = vshrl.u32 %v1224, 7
  %v1226 = vsub.s32 0, %v1225
  %v1227 = vrot.slane %v1222, %v1226
  %v1228 = vlaneseq
  %v1229 = vshrl.u32 %v1228, 7
  %v1230 = vsub.s32 1, %v1229
  %v1231 = vrot.slane %v1222, %v1230
  %v1232 = vlaneseq
  %v1233 = vshrl.u32 %v1232, 7
  %v1234 = vsub.s32 2, %v1233
  %v1235 = vrot.slane %v1222, %v1234
  %v1236 = vlaneseq
  %v1237 = vshrl.u32 %v1236, 7
  %v1238 = vsub.s32 3, %v1237
  %v1239 = vrot.slane %v1222, %v1238
  %v1244 = vmul.f32 %v1219, %v1227
  %v1245 = vmul.f32 %v1218, %v1231
  %v1246 = vmul.f32 %v1217, %v1235
  %v1247 = vmul.f32 %v1220, %v1239
  %v1248 = vpack.c.bf16 %v1244, %v1204
  %v1249 = vpack.c.bf16 %v1245, %v1205
  %v1250 = vpack.c.bf16 %v1246, %v1206
  %v1251 = vpack.c.bf16 %v1247, %v1207
  %v1256 = vunpack.c.l.b16 %v1248
  %v1257 = vunpack.c.l.b16 %v1249
  %v1258 = vunpack.c.l.b16 %v1250
  %v1259 = vunpack.c.l.b16 %v1251
  %v1260 = vunpack.c.h.b16 %v1248
  %v1261 = vunpack.c.h.b16 %v1249
  %v1262 = vunpack.c.h.b16 %v1250
  %v1263 = vunpack.c.h.b16 %v1251
  %v1264 = vpack.c.b16 %v1257, %v1256
  %v1265 = vpack.c.b16 %v1259, %v1258
  %v1266 = vpack.c.b16 %v1261, %v1260
  %v1267 = vpack.c.b16 %v1263, %v1262
  %1272 = vst [vmem:[#allocation2 + $0x160] sm:$0xff] %v1264
  %1273 = vst [vmem:[#allocation2 + $0x168] sm:$0xff] %v1265
  %1274 = vst [vmem:[#allocation2 + $0x170] sm:$0xff] %v1266
  %1275 = vst [vmem:[#allocation2 + $0x178] sm:$0xff] %v1267
  %1276 = vrot.lane.b32.xlu0 %v15, 94
  %v1277 = vpop.permute.xlu0 %1276
  %1278 = vrot.lane.b32.xlu0 %v16, 94
  %v1279 = vpop.permute.xlu0 %1278
  %1280 = vrot.lane.b32.xlu0 %v17, 94
  %v1281 = vpop.permute.xlu0 %1280
  %1282 = vrot.lane.b32.xlu0 %v18, 94
  %v1283 = vpop.permute.xlu0 %1282
  %vm1284 = vcmp.lt.s32.totalorder %v28, 94
  %v1285 = vsel %vm1284, %v1281, %v1283
  %v1286 = vsel %vm1284, %v1279, %v1281
  %v1287 = vsel %vm1284, %v1277, %v1279
  %v1288 = vsel %vm1284, %v1283, %v1277
  %s1289 = scalar_lea.vmem %s2, 96
  %v1290 = vld [vmem:[%s1289] ss:$8 sm:$0xf]
  %v1292 = vlaneseq
  %v1293 = vshrl.u32 %v1292, 7
  %v1294 = vsub.s32 0, %v1293
  %v1295 = vrot.slane %v1290, %v1294
  %v1296 = vlaneseq
  %v1297 = vshrl.u32 %v1296, 7
  %v1298 = vsub.s32 1, %v1297
  %v1299 = vrot.slane %v1290, %v1298
  %v1300 = vlaneseq
  %v1301 = vshrl.u32 %v1300, 7
  %v1302 = vsub.s32 2, %v1301
  %v1303 = vrot.slane %v1290, %v1302
  %v1304 = vlaneseq
  %v1305 = vshrl.u32 %v1304, 7
  %v1306 = vsub.s32 3, %v1305
  %v1307 = vrot.slane %v1290, %v1306
  %v1312 = vmul.f32 %v1287, %v1295
  %v1313 = vmul.f32 %v1286, %v1299
  %v1314 = vmul.f32 %v1285, %v1303
  %v1315 = vmul.f32 %v1288, %v1307
  %v1316 = vpack.c.bf16 0.0, %v1312
  %v1317 = vpack.c.bf16 0.0, %v1313
  %v1318 = vpack.c.bf16 0.0, %v1314
  %v1319 = vpack.c.bf16 0.0, %v1315
  %v1324 = vunpack.c.l.b16 %v1316
  %v1325 = vunpack.c.l.b16 %v1317
  %v1326 = vunpack.c.l.b16 %v1318
  %v1327 = vunpack.c.l.b16 %v1319
  %v1328 = vunpack.c.h.b16 %v1316
  %v1329 = vunpack.c.h.b16 %v1317
  %v1330 = vunpack.c.h.b16 %v1318
  %v1331 = vunpack.c.h.b16 %v1319
  %v1332 = vpack.c.b16 %v1325, %v1324
  %v1333 = vpack.c.b16 %v1327, %v1326
  %v1334 = vpack.c.b16 %v1329, %v1328
  %v1335 = vpack.c.b16 %v1331, %v1330
  %1340 = vst [vmem:[#allocation2 + $0x180] sm:$0xff] %v1332
  %1341 = vst [vmem:[#allocation2 + $0x188] sm:$0xff] %v1333
  %1342 = vst [vmem:[#allocation2 + $0x190] sm:$0xff] %v1334
  %1343 = vst [vmem:[#allocation2 + $0x198] sm:$0xff] %v1335
  %v1344 = vld [vmem:[%s1] sm:$0xff]
  %v1345 = vld [vmem:[%s1 + $0x8] sm:$0xff]
  %v1346 = vpack.c.bf16 %v1344, %v1344
  %v1347 = vpack.c.bf16 %v1345, %v1345
  %v1348 = vld [vmem:[#allocation2] sm:$0xff]
  %v1349 = vld [vmem:[#allocation2 + $0x8] sm:$0xff]
  %v1350 = vld [vmem:[#allocation2 + $0x10] sm:$0xff]
  %v1351 = vld [vmem:[#allocation2 + $0x18] sm:$0xff]
  %v1352 = vld [vmem:[#allocation2 + $0x20] sm:$0xff]
  %v1353 = vld [vmem:[#allocation2 + $0x28] sm:$0xff]
  %v1354 = vld [vmem:[#allocation2 + $0x30] sm:$0xff]
  %v1355 = vld [vmem:[#allocation2 + $0x38] sm:$0xff]
  %v1356 = vld [vmem:[#allocation2 + $0x40] sm:$0xff]
  %v1357 = vld [vmem:[#allocation2 + $0x48] sm:$0xff]
  %v1358 = vld [vmem:[#allocation2 + $0x50] sm:$0xff]
  %v1359 = vld [vmem:[#allocation2 + $0x58] sm:$0xff]
  %v1360 = vld [vmem:[#allocation2 + $0x60] sm:$0xff]
  %v1361 = vld [vmem:[#allocation2 + $0x68] sm:$0xff]
  %v1362 = vld [vmem:[#allocation2 + $0x70] sm:$0xff]
  %v1363 = vld [vmem:[#allocation2 + $0x78] sm:$0xff]
  %v1364 = vld [vmem:[#allocation2 + $0x80] sm:$0xff]
  %v1365 = vld [vmem:[#allocation2 + $0x88] sm:$0xff]
  %v1366 = vld [vmem:[#allocation2 + $0x90] sm:$0xff]
  %v1367 = vld [vmem:[#allocation2 + $0x98] sm:$0xff]
  %v1368 = vld [vmem:[#allocation2 + $0xa0] sm:$0xff]
  %v1369 = vld [vmem:[#allocation2 + $0xa8] sm:$0xff]
  %v1370 = vld [vmem:[#allocation2 + $0xb0] sm:$0xff]
  %v1371 = vld [vmem:[#allocation2 + $0xb8] sm:$0xff]
  %v1372 = vld [vmem:[#allocation2 + $0xc0] sm:$0xff]
  %v1373 = vld [vmem:[#allocation2 + $0xc8] sm:$0xff]
  %v1374 = vld [vmem:[#allocation2 + $0xd0] sm:$0xff]
  %v1375 = vld [vmem:[#allocation2 + $0xd8] sm:$0xff]
  %v1376 = vld [vmem:[#allocation2 + $0xe0] sm:$0xff]
  %v1377 = vld [vmem:[#allocation2 + $0xe8] sm:$0xff]
  %v1378 = vld [vmem:[#allocation2 + $0xf0] sm:$0xff]
  %v1379 = vld [vmem:[#allocation2 + $0xf8] sm:$0xff]
  %v1380 = vld [vmem:[#allocation2 + $0x100] sm:$0xff]
  %v1381 = vld [vmem:[#allocation2 + $0x108] sm:$0xff]
  %v1382 = vld [vmem:[#allocation2 + $0x110] sm:$0xff]
  %v1383 = vld [vmem:[#allocation2 + $0x118] sm:$0xff]
  %v1384 = vld [vmem:[#allocation2 + $0x120] sm:$0xff]
  %v1385 = vld [vmem:[#allocation2 + $0x128] sm:$0xff]
  %v1386 = vld [vmem:[#allocation2 + $0x130] sm:$0xff]
  %v1387 = vld [vmem:[#allocation2 + $0x138] sm:$0xff]
  %v1388 = vld [vmem:[#allocation2 + $0x140] sm:$0xff]
  %v1389 = vld [vmem:[#allocation2 + $0x148] sm:$0xff]
  %v1390 = vld [vmem:[#allocation2 + $0x150] sm:$0xff]
  %v1391 = vld [vmem:[#allocation2 + $0x158] sm:$0xff]
  %v1392 = vld [vmem:[#allocation2 + $0x160] sm:$0xff]
  %v1393 = vld [vmem:[#allocation2 + $0x168] sm:$0xff]
  %v1394 = vld [vmem:[#allocation2 + $0x170] sm:$0xff]
  %v1395 = vld [vmem:[#allocation2 + $0x178] sm:$0xff]
  %v1396 = vld [vmem:[#allocation2 + $0x180] sm:$0xff]
  %v1397 = vld [vmem:[#allocation2 + $0x188] sm:$0xff]
  %1399 = vset.pattern.permute.xlu0 72
  %1400 = vperm.xlu0 %1399, %v1345
  %v1401 = vpop.permute.xlu0 %1400
  %v1453 = vunpack.c.l.b16 %v1348
  %v1454 = vunpack.c.h.b16 %v1348
  %v1455 = vunpack.c.l.b16 %v1349
  %v1456 = vunpack.c.h.b16 %v1349
  %v1457 = vunpack.c.l.b16 %v1350
  %v1458 = vunpack.c.h.b16 %v1350
  %v1459 = vunpack.c.l.b16 %v1351
  %v1460 = vunpack.c.h.b16 %v1351
  %v1461 = vunpack.c.l.b16 %v1352
  %v1462 = vunpack.c.h.b16 %v1352
  %v1463 = vunpack.c.l.b16 %v1353
  %v1464 = vunpack.c.h.b16 %v1353
  %v1465 = vunpack.c.l.b16 %v1354
  %v1466 = vunpack.c.h.b16 %v1354
  %v1467 = vunpack.c.l.b16 %v1355
  %v1468 = vunpack.c.h.b16 %v1355
  %v1469 = vunpack.c.l.b16 %v1356
  %v1470 = vunpack.c.h.b16 %v1356
  %v1471 = vunpack.c.l.b16 %v1357
  %v1472 = vunpack.c.h.b16 %v1357
  %v1473 = vunpack.c.l.b16 %v1358
  %v1474 = vunpack.c.h.b16 %v1358
  %v1475 = vunpack.c.l.b16 %v1359
  %v1476 = vunpack.c.h.b16 %v1359
  %v1477 = vunpack.c.l.b16 %v1360
  %v1478 = vunpack.c.h.b16 %v1360
  %v1479 = vunpack.c.l.b16 %v1361
  %v1480 = vunpack.c.h.b16 %v1361
  %v1481 = vunpack.c.l.b16 %v1362
  %v1482 = vunpack.c.h.b16 %v1362
  %v1483 = vunpack.c.l.b16 %v1363
  %v1484 = vunpack.c.h.b16 %v1363
  %v1485 = vunpack.c.l.b16 %v1364
  %v1486 = vunpack.c.h.b16 %v1364
  %v1487 = vunpack.c.l.b16 %v1365
  %v1488 = vunpack.c.h.b16 %v1365
  %v1489 = vunpack.c.l.b16 %v1366
  %v1490 = vunpack.c.h.b16 %v1366
  %v1491 = vunpack.c.l.b16 %v1367
  %v1492 = vunpack.c.h.b16 %v1367
  %v1493 = vunpack.c.l.b16 %v1368
  %v1494 = vunpack.c.h.b16 %v1368
  %v1495 = vunpack.c.l.b16 %v1369
  %v1496 = vunpack.c.h.b16 %v1369
  %v1497 = vunpack.c.l.b16 %v1370
  %v1498 = vunpack.c.h.b16 %v1370
  %v1499 = vunpack.c.l.b16 %v1371
  %v1500 = vunpack.c.h.b16 %v1371
  %v1501 = vunpack.c.l.b16 %v1372
  %v1502 = vunpack.c.h.b16 %v1372
  %v1503 = vunpack.c.l.b16 %v1373
  %v1504 = vunpack.c.h.b16 %v1373
  %v1505 = vunpack.c.l.b16 %v1374
  %v1506 = vunpack.c.h.b16 %v1374
  %v1507 = vunpack.c.l.b16 %v1375
  %v1508 = vunpack.c.h.b16 %v1375
  %v1509 = vunpack.c.l.b16 %v1376
  %v1510 = vunpack.c.h.b16 %v1376
  %v1511 = vunpack.c.l.b16 %v1377
  %v1512 = vunpack.c.h.b16 %v1377
  %v1513 = vunpack.c.l.b16 %v1378
  %v1514 = vunpack.c.h.b16 %v1378
  %v1515 = vunpack.c.l.b16 %v1379
  %v1516 = vunpack.c.h.b16 %v1379
  %v1517 = vunpack.c.l.b16 %v1380
  %v1518 = vunpack.c.h.b16 %v1380
  %v1519 = vunpack.c.l.b16 %v1381
  %v1520 = vunpack.c.h.b16 %v1381
  %v1521 = vunpack.c.l.b16 %v1382
  %v1522 = vunpack.c.h.b16 %v1382
  %v1523 = vunpack.c.l.b16 %v1383
  %v1524 = vunpack.c.h.b16 %v1383
  %v1525 = vunpack.c.l.b16 %v1384
  %v1526 = vunpack.c.h.b16 %v1384
  %v1527 = vunpack.c.l.b16 %v1385
  %v1528 = vunpack.c.h.b16 %v1385
  %v1529 = vunpack.c.l.b16 %v1386
  %v1530 = vunpack.c.h.b16 %v1386
  %v1531 = vunpack.c.l.b16 %v1387
  %v1532 = vunpack.c.h.b16 %v1387
  %v1533 = vunpack.c.l.b16 %v1388
  %v1534 = vunpack.c.h.b16 %v1388
  %v1535 = vunpack.c.l.b16 %v1389
  %v1536 = vunpack.c.h.b16 %v1389
  %v1537 = vunpack.c.l.b16 %v1390
  %v1538 = vunpack.c.h.b16 %v1390
  %v1539 = vunpack.c.l.b16 %v1391
  %v1540 = vunpack.c.h.b16 %v1391
  %v1541 = vunpack.c.l.b16 %v1392
  %v1542 = vunpack.c.h.b16 %v1392
  %v1543 = vunpack.c.l.b16 %v1393
  %v1544 = vunpack.c.h.b16 %v1393
  %v1545 = vunpack.c.l.b16 %v1394
  %v1546 = vunpack.c.h.b16 %v1394
  %v1547 = vunpack.c.l.b16 %v1395
  %v1548 = vunpack.c.h.b16 %v1395
  %v1549 = vunpack.c.l.b16 %v1396
  %v1550 = vunpack.c.h.b16 %v1396
  %v1551 = vunpack.c.l.b16 %v1397
  %v1552 = vunpack.c.h.b16 %v1397
  %v1553 = vpack.c.b16 %v1457, %v1453
  %v1554 = vpack.c.b16 %v1458, %v1454
  %v1555 = vpack.c.b16 %v1459, %v1455
  %v1556 = vpack.c.b16 %v1460, %v1456
  %v1557 = vpack.c.b16 %v1465, %v1461
  %v1558 = vpack.c.b16 %v1466, %v1462
  %v1559 = vpack.c.b16 %v1467, %v1463
  %v1560 = vpack.c.b16 %v1468, %v1464
  %v1561 = vpack.c.b16 %v1473, %v1469
  %v1562 = vpack.c.b16 %v1474, %v1470
  %v1563 = vpack.c.b16 %v1475, %v1471
  %v1564 = vpack.c.b16 %v1476, %v1472
  %v1565 = vpack.c.b16 %v1481, %v1477
  %v1566 = vpack.c.b16 %v1482, %v1478
  %v1567 = vpack.c.b16 %v1483, %v1479
  %v1568 = vpack.c.b16 %v1484, %v1480
  %v1569 = vpack.c.b16 %v1489, %v1485
  %v1570 = vpack.c.b16 %v1490, %v1486
  %v1571 = vpack.c.b16 %v1491, %v1487
  %v1572 = vpack.c.b16 %v1492, %v1488
  %v1573 = vpack.c.b16 %v1497, %v1493
  %v1574 = vpack.c.b16 %v1498, %v1494
  %v1575 = vpack.c.b16 %v1499, %v1495
  %v1576 = vpack.c.b16 %v1500, %v1496
  %v1577 = vpack.c.b16 %v1505, %v1501
  %v1578 = vpack.c.b16 %v1506, %v1502
  %v1579 = vpack.c.b16 %v1507, %v1503
  %v1580 = vpack.c.b16 %v1508, %v1504
  %v1581 = vpack.c.b16 %v1513, %v1509
  %v1582 = vpack.c.b16 %v1514, %v1510
  %v1583 = vpack.c.b16 %v1515, %v1511
  %v1584 = vpack.c.b16 %v1516, %v1512
  %v1585 = vpack.c.b16 %v1521, %v1517
  %v1586 = vpack.c.b16 %v1522, %v1518
  %v1587 = vpack.c.b16 %v1523, %v1519
  %v1588 = vpack.c.b16 %v1524, %v1520
  %v1589 = vpack.c.b16 %v1529, %v1525
  %v1590 = vpack.c.b16 %v1530, %v1526
  %v1591 = vpack.c.b16 %v1531, %v1527
  %v1592 = vpack.c.b16 %v1532, %v1528
  %v1593 = vpack.c.b16 %v1537, %v1533
  %v1594 = vpack.c.b16 %v1538, %v1534
  %v1595 = vpack.c.b16 %v1539, %v1535
  %v1596 = vpack.c.b16 %v1540, %v1536
  %v1597 = vpack.c.b16 %v1545, %v1541
  %v1598 = vpack.c.b16 %v1546, %v1542
  %v1599 = vpack.c.b16 %v1547, %v1543
  %v1600 = vpack.c.b16 %v1548, %v1544
  %v1601 = vpack.c.b16 %v1549, %v1549
  %v1602 = vpack.c.b16 %v1550, %v1550
  %v1603 = vpack.c.b16 %v1551, %v1551
  %v1604 = vpack.c.b16 %v1552, %v1552
  %vm1653 = vcmask 588800
  %v1655 = vsel %vm1653, %v1347, 0
  %vm1657 = vcmask 1043456
  %v1659 = vsel %vm1657, %v1601, 0
  %v1662 = vsel %vm1657, %v1602, 0
  %v1665 = vsel %vm1657, %v1603, 0
  %v1668 = vsel %vm1657, %v1604, 0
  %1670 = vmatprep.subr.bf16.mxu0 %v1582
  %1671 = vmatpush1.bf16.msra.mxu0 %v1581
  %1672 = vmatprep.subr.bf16.mxu0 %v1578
  %1673 = vmatpush1.bf16.msra.mxu0 %v1577
  %1674 = vmatprep.subr.bf16.mxu0 %v1574
  %1675 = vmatpush1.bf16.msra.mxu0 %v1573
  %1676 = vmatprep.subr.bf16.mxu0 %v1570
  %1677 = vmatpush1.bf16.msra.mxu0 %v1569
  %1678 = vmatprep.subr.bf16.mxu0 %v1566
  %1679 = vmatpush1.bf16.msra.mxu0 %v1565
  %1680 = vmatprep.subr.bf16.mxu0 %v1562
  %1681 = vmatpush1.bf16.msra.mxu0 %v1561
  %1682 = vmatprep.subr.bf16.mxu0 %v1558
  %1683 = vmatpush1.bf16.msra.mxu0 %v1557
  %1684 = vmatprep.subr.bf16.mxu0 %v1554
  %1685 = vmatpush1.bf16.msra.mxu0 %v1553
  %1686 = vmatprep.subr.bf16.mxu0 0
  %1687 = vmatpush2.bf16.msra.mxu0 0
  %1688 = vmatprep.subr.bf16.mxu0 0
  %1689 = vmatpush2.bf16.msra.mxu0 0
  %1690 = vmatprep.subr.bf16.mxu0 0
  %1691 = vmatpush2.bf16.msra.mxu0 0
  %1692 = vmatprep.subr.bf16.mxu0 %v1662
  %1693 = vmatpush2.bf16.msra.mxu0 %v1659
  %1694 = vmatprep.subr.bf16.mxu0 %v1598
  %1695 = vmatpush2.bf16.msra.mxu0 %v1597
  %1696 = vmatprep.subr.bf16.mxu0 %v1594
  %1697 = vmatpush2.bf16.msra.mxu0 %v1593
  %1698 = vmatprep.subr.bf16.mxu0 %v1590
  %1699 = vmatpush2.bf16.msra.mxu0 %v1589
  %1700 = vmatprep.subr.bf16.mxu0 %v1586
  %1701 = vmatpush2.bf16.msra.mxu0 %v1585
  %1702 = vmatprep.mubr.bf16.mxu0 %v1655
  %1703 = vmatmul.mubr.bf16.gmra.mxu0 %v1346
  %v1704 = vpop.f32.mrf.mxu0
  %v1705 = vadd.f32 %v1401, %v1704
  %v1706 = vpop.f32.mrf.mxu0
  %v1707 = vadd.f32 %v1401, %v1706
  %v1708 = vpop.f32.mrf.mxu0
  %v1709 = vpop.f32.mrf.mxu0
  %1710 = vdwg.mxu0
  %1711 = vmatprep.subr.bf16.mxu0 %v1584
  %1712 = vmatpush1.bf16.msra.mxu0 %v1583
  %1713 = vmatprep.subr.bf16.mxu0 %v1580
  %1714 = vmatpush1.bf16.msra.mxu0 %v1579
  %1715 = vmatprep.subr.bf16.mxu0 %v1576
  %1716 = vmatpush1.bf16.msra.mxu0 %v1575
  %1717 = vmatprep.subr.bf16.mxu0 %v1572
  %1718 = vmatpush1.bf16.msra.mxu0 %v1571
  %1719 = vmatprep.subr.bf16.mxu0 %v1568
  %1720 = vmatpush1.bf16.msra.mxu0 %v1567
  %1721 = vmatprep.subr.bf16.mxu0 %v1564
  %1722 = vmatpush1.bf16.msra.mxu0 %v1563
  %1723 = vmatprep.subr.bf16.mxu0 %v1560
  %1724 = vmatpush1.bf16.msra.mxu0 %v1559
  %1725 = vmatprep.subr.bf16.mxu0 %v1556
  %1726 = vmatpush1.bf16.msra.mxu0 %v1555
  %1727 = vmatprep.subr.bf16.mxu0 0
  %1728 = vmatpush2.bf16.msra.mxu0 0
  %1729 = vmatprep.subr.bf16.mxu0 0
  %1730 = vmatpush2.bf16.msra.mxu0 0
  %1731 = vmatprep.subr.bf16.mxu0 0
  %1732 = vmatpush2.bf16.msra.mxu0 0
  %1733 = vmatprep.subr.bf16.mxu0 %v1668
  %1734 = vmatpush2.bf16.msra.mxu0 %v1665
  %1735 = vmatprep.subr.bf16.mxu0 %v1600
  %1736 = vmatpush2.bf16.msra.mxu0 %v1599
  %1737 = vmatprep.subr.bf16.mxu0 %v1596
  %1738 = vmatpush2.bf16.msra.mxu0 %v1595
  %1739 = vmatprep.subr.bf16.mxu0 %v1592
  %1740 = vmatpush2.bf16.msra.mxu0 %v1591
  %1741 = vmatprep.subr.bf16.mxu0 %v1588
  %1742 = vmatpush2.bf16.msra.mxu0 %v1587
  %1743 = vmatprep.mubr.bf16.mxu0 %v1655
  %1744 = vmatmul.mubr.bf16.gmra.mxu0 %v1346
  %v1745 = vpop.f32.mrf.mxu0
  %v1746 = vadd.f32 %v1401, %v1745
  %v1747 = vpop.f32.mrf.mxu0
  %v1748 = vadd.f32 %v1401, %v1747
  %v1749 = vpop.f32.mrf.mxu0
  %v1750 = vpop.f32.mrf.mxu0
  %1751 = vdwg.mxu0
  %v1752 = vmax.f32 %v1705, 0.0
  %v1753 = vmax.f32 %v1707, 0.0
  %v1754 = vmax.f32 %v1746, 0.0
  %v1755 = vmax.f32 %v1748, 0.0
  %v1756 = vld [vmem:[%s1 + $0x10] sm:$0xff]
  %v1757 = vpack.c.bf16 %v1756, %v1756
  %v1758 = vpack.c.bf16 %v1752, %v1752
  %v1759 = vpack.c.bf16 %v1753, %v1753
  %v1760 = vpack.c.bf16 %v1754, %v1754
  %v1761 = vpack.c.bf16 %v1755, %v1755
  %v1762 = vld [vmem:[%s1 + $0x18] sm:$0xff]
  %1764 = vset.pattern.permute.xlu0 72
  %1765 = vperm.xlu0 %1764, %v1762
  %v1766 = vpop.permute.xlu0 %1765
  %vm1768 = vcmask 64512
  %v1770 = vsel %vm1768, %v1757, 0
  %v1773 = vsel %vm1657, %v1758, 0
  %v1776 = vsel %vm1657, %v1759, 0
  %v1779 = vsel %vm1657, %v1760, 0
  %v1782 = vsel %vm1657, %v1761, 0
  %1784 = vmatprep.subr.bf16.mxu0 0
  %1785 = vmatpush1.bf16.msra.mxu0 0
  %1786 = vmatprep.subr.bf16.mxu0 0
  %1787 = vmatpush1.bf16.msra.mxu0 0
  %1788 = vmatprep.subr.bf16.mxu0 0
  %1789 = vmatpush1.bf16.msra.mxu0 0
  %1790 = vmatprep.subr.bf16.mxu0 0
  %1791 = vmatpush1.bf16.msra.mxu0 0
  %1792 = vmatprep.subr.bf16.mxu0 0
  %1793 = vmatpush1.bf16.msra.mxu0 0
  %1794 = vmatprep.subr.bf16.mxu0 0
  %1795 = vmatpush1.bf16.msra.mxu0 0
  %1796 = vmatprep.subr.bf16.mxu0 0
  %1797 = vmatpush1.bf16.msra.mxu0 0
  %1798 = vmatprep.subr.bf16.mxu0 %v1776
  %1799 = vmatpush1.bf16.msra.mxu0 %v1773
  %1800 = vmatprep.subr.bf16.mxu0 0
  %1801 = vmatpush2.bf16.msra.mxu0 0
  %1802 = vmatprep.subr.bf16.mxu0 0
  %1803 = vmatpush2.bf16.msra.mxu0 0
  %1804 = vmatprep.subr.bf16.mxu0 0
  %1805 = vmatpush2.bf16.msra.mxu0 0
  %1806 = vmatprep.subr.bf16.mxu0 0
  %1807 = vmatpush2.bf16.msra.mxu0 0
  %1808 = vmatprep.subr.bf16.mxu0 0
  %1809 = vmatpush2.bf16.msra.mxu0 0
  %1810 = vmatprep.subr.bf16.mxu0 0
  %1811 = vmatpush2.bf16.msra.mxu0 0
  %1812 = vmatprep.subr.bf16.mxu0 0
  %1813 = vmatpush2.bf16.msra.mxu0 0
  %1814 = vmatprep.subr.bf16.mxu0 0
  %1815 = vmatpush2.bf16.msra.mxu0 0
  %1816 = vmatprep.mubr.bf16.mxu0 0
  %1817 = vmatmul.mubr.bf16.gmra.mxu0 %v1770
  %v1818 = vpop.f32.mrf.mxu0
  %v1819 = vadd.f32 %v1766, %v1818
  %v1820 = vpop.f32.mrf.mxu0
  %v1821 = vadd.f32 %v1766, %v1820
  %v1822 = vpop.f32.mrf.mxu0
  %v1823 = vpop.f32.mrf.mxu0
  %1824 = vdwg.mxu0
  %1825 = vmatprep.subr.bf16.mxu0 0
  %1826 = vmatpush1.bf16.msra.mxu0 0
  %1827 = vmatprep.subr.bf16.mxu0 0
  %1828 = vmatpush1.bf16.msra.mxu0 0
  %1829 = vmatprep.subr.bf16.mxu0 0
  %1830 = vmatpush1.bf16.msra.mxu0 0
  %1831 = vmatprep.subr.bf16.mxu0 0
  %1832 = vmatpush1.bf16.msra.mxu0 0
  %1833 = vmatprep.subr.bf16.mxu0 0
  %1834 = vmatpush1.bf16.msra.mxu0 0
  %1835 = vmatprep.subr.bf16.mxu0 0
  %1836 = vmatpush1.bf16.msra.mxu0 0
  %1837 = vmatprep.subr.bf16.mxu0 0
  %1838 = vmatpush1.bf16.msra.mxu0 0
  %1839 = vmatprep.subr.bf16.mxu0 %v1782
  %1840 = vmatpush1.bf16.msra.mxu0 %v1779
  %1841 = vmatprep.subr.bf16.mxu0 0
  %1842 = vmatpush2.bf16.msra.mxu0 0
  %1843 = vmatprep.subr.bf16.mxu0 0
  %1844 = vmatpush2.bf16.msra.mxu0 0
  %1845 = vmatprep.subr.bf16.mxu0 0
  %1846 = vmatpush2.bf16.msra.mxu0 0
  %1847 = vmatprep.subr.bf16.mxu0 0
  %1848 = vmatpush2.bf16.msra.mxu0 0
  %1849 = vmatprep.subr.bf16.mxu0 0
  %1850 = vmatpush2.bf16.msra.mxu0 0
  %1851 = vmatprep.subr.bf16.mxu0 0
  %1852 = vmatpush2.bf16.msra.mxu0 0
  %1853 = vmatprep.subr.bf16.mxu0 0
  %1854 = vmatpush2.bf16.msra.mxu0 0
  %1855 = vmatprep.subr.bf16.mxu0 0
  %1856 = vmatpush2.bf16.msra.mxu0 0
  %1857 = vmatprep.mubr.bf16.mxu0 0
  %1858 = vmatmul.mubr.bf16.gmra.mxu0 %v1770
  %v1859 = vpop.f32.mrf.mxu0
  %v1860 = vadd.f32 %v1766, %v1859
  %v1861 = vpop.f32.mrf.mxu0
  %v1862 = vadd.f32 %v1766, %v1861
  %v1863 = vpop.f32.mrf.mxu0
  %v1864 = vpop.f32.mrf.mxu0
  %1865 = vdwg.mxu0
  %v1866 = vmax.f32 %v1819, 0.0
  %v1867 = vmax.f32 %v1821, 0.0
  %v1868 = vmax.f32 %v1860, 0.0
  %v1869 = vmax.f32 %v1862, 0.0
  %v1870 = vld [vmem:[%s1 + $0x20] sm:$0xff]
  %v1871 = vpack.c.bf16 %v1870, %v1870
  %v1872 = vpack.c.bf16 %v1866, %v1866
  %v1873 = vpack.c.bf16 %v1867, %v1867
  %v1874 = vpack.c.bf16 %v1868, %v1868
  %v1875 = vpack.c.bf16 %v1869, %v1869
  %v1876 = vld [vmem:[%s1 + $0x28] sm:$0xff]
  %1878 = vset.pattern.permute.xlu0 72
  %1879 = vperm.xlu0 %1878, %v1876
  %v1880 = vpop.permute.xlu0 %1879
  %v1883 = vsel %vm1768, %v1871, 0
  %v1886 = vsel %vm1657, %v1872, 0
  %v1889 = vsel %vm1657, %v1873, 0
  %v1892 = vsel %vm1657, %v1874, 0
  %v1895 = vsel %vm1657, %v1875, 0
  %1897 = vmatprep.subr.bf16.mxu0 0
  %1898 = vmatpush1.bf16.msra.mxu0 0
  %1899 = vmatprep.subr.bf16.mxu0 0
  %1900 = vmatpush1.bf16.msra.mxu0 0
  %1901 = vmatprep.subr.bf16.mxu0 0
  %1902 = vmatpush1.bf16.msra.mxu0 0
  %1903 = vmatprep.subr.bf16.mxu0 0
  %1904 = vmatpush1.bf16.msra.mxu0 0
  %1905 = vmatprep.subr.bf16.mxu0 0
  %1906 = vmatpush1.bf16.msra.mxu0 0
  %1907 = vmatprep.subr.bf16.mxu0 0
  %1908 = vmatpush1.bf16.msra.mxu0 0
  %1909 = vmatprep.subr.bf16.mxu0 0
  %1910 = vmatpush1.bf16.msra.mxu0 0
  %1911 = vmatprep.subr.bf16.mxu0 %v1889
  %1912 = vmatpush1.bf16.msra.mxu0 %v1886
  %1913 = vmatprep.subr.bf16.mxu0 0
  %1914 = vmatpush2.bf16.msra.mxu0 0
  %1915 = vmatprep.subr.bf16.mxu0 0
  %1916 = vmatpush2.bf16.msra.mxu0 0
  %1917 = vmatprep.subr.bf16.mxu0 0
  %1918 = vmatpush2.bf16.msra.mxu0 0
  %1919 = vmatprep.subr.bf16.mxu0 0
  %1920 = vmatpush2.bf16.msra.mxu0 0
  %1921 = vmatprep.subr.bf16.mxu0 0
  %1922 = vmatpush2.bf16.msra.mxu0 0
  %1923 = vmatprep.subr.bf16.mxu0 0
  %1924 = vmatpush2.bf16.msra.mxu0 0
  %1925 = vmatprep.subr.bf16.mxu0 0
  %1926 = vmatpush2.bf16.msra.mxu0 0
  %1927 = vmatprep.subr.bf16.mxu0 0
  %1928 = vmatpush2.bf16.msra.mxu0 0
  %1929 = vmatprep.mubr.bf16.mxu0 0
  %1930 = vmatmul.mubr.bf16.gmra.mxu0 %v1883
  %v1931 = vpop.f32.mrf.mxu0
  %v1932 = vadd.f32 %v1880, %v1931
  %v1933 = vpop.f32.mrf.mxu0
  %v1934 = vadd.f32 %v1880, %v1933
  %v1935 = vpop.f32.mrf.mxu0
  %v1936 = vpop.f32.mrf.mxu0
  %1937 = vdwg.mxu0
  %1938 = vmatprep.subr.bf16.mxu0 0
  %1939 = vmatpush1.bf16.msra.mxu0 0
  %1940 = vmatprep.subr.bf16.mxu0 0
  %1941 = vmatpush1.bf16.msra.mxu0 0
  %1942 = vmatprep.subr.bf16.mxu0 0
  %1943 = vmatpush1.bf16.msra.mxu0 0
  %1944 = vmatprep.subr.bf16.mxu0 0
  %1945 = vmatpush1.bf16.msra.mxu0 0
  %1946 = vmatprep.subr.bf16.mxu0 0
  %1947 = vmatpush1.bf16.msra.mxu0 0
  %1948 = vmatprep.subr.bf16.mxu0 0
  %1949 = vmatpush1.bf16.msra.mxu0 0
  %1950 = vmatprep.subr.bf16.mxu0 0
  %1951 = vmatpush1.bf16.msra.mxu0 0
  %1952 = vmatprep.subr.bf16.mxu0 %v1895
  %1953 = vmatpush1.bf16.msra.mxu0 %v1892
  %1954 = vmatprep.subr.bf16.mxu0 0
  %1955 = vmatpush2.bf16.msra.mxu0 0
  %1956 = vmatprep.subr.bf16.mxu0 0
  %1957 = vmatpush2.bf16.msra.mxu0 0
  %1958 = vmatprep.subr.bf16.mxu0 0
  %1959 = vmatpush2.bf16.msra.mxu0 0
  %1960 = vmatprep.subr.bf16.mxu0 0
  %1961 = vmatpush2.bf16.msra.mxu0 0
  %1962 = vmatprep.subr.bf16.mxu0 0
  %1963 = vmatpush2.bf16.msra.mxu0 0
  %1964 = vmatprep.subr.bf16.mxu0 0
  %1965 = vmatpush2.bf16.msra.mxu0 0
  %1966 = vmatprep.subr.bf16.mxu0 0
  %1967 = vmatpush2.bf16.msra.mxu0 0
  %1968 = vmatprep.subr.bf16.mxu0 0
  %1969 = vmatpush2.bf16.msra.mxu0 0
  %1970 = vmatprep.mubr.bf16.mxu0 0
  %1971 = vmatmul.mubr.bf16.gmra.mxu0 %v1883
  %v1972 = vpop.f32.mrf.mxu0
  %v1973 = vadd.f32 %v1880, %v1972
  %v1974 = vpop.f32.mrf.mxu0
  %v1975 = vadd.f32 %v1880, %v1974
  %v1976 = vpop.f32.mrf.mxu0
  %v1977 = vpop.f32.mrf.mxu0
  %1978 = vdwg.mxu0
  %v1979 = vmax.f32 %v1932, 0.0
  %v1980 = vmax.f32 %v1934, 0.0
  %v1981 = vmax.f32 %v1973, 0.0
  %v1982 = vmax.f32 %v1975, 0.0
  %1983 = vrot.lane.b32.xlu0 %v1979, 51
  %v1984 = vpop.permute.xlu0 %1983
  %1985 = vrot.lane.b32.xlu0 %v1980, 51
  %v1986 = vpop.permute.xlu0 %1985
  %1987 = vrot.lane.b32.xlu0 %v1981, 51
  %v1988 = vpop.permute.xlu0 %1987
  %1989 = vrot.lane.b32.xlu0 %v1982, 51
  %v1990 = vpop.permute.xlu0 %1989
  %vm1991 = vcmp.lt.s32.totalorder %v28, 51
  %v1992 = vsel %vm1991, %v1988, %v1990
  %v1993 = vsel %vm1991, %v1986, %v1988
  %v1994 = vsel %vm1991, %v1984, %v1986
  %v1995 = vsel %vm1991, %v1990, %v1984
  %s1996 = scalar_lea.vmem %s2, 97
  %v1997 = vld [vmem:[%s1996] ss:$8 sm:$0xf]
  %v1999 = vlaneseq
  %v2000 = vshrl.u32 %v1999, 7
  %v2001 = vsub.s32 0, %v2000
  %v2002 = vrot.slane %v1997, %v2001
  %v2003 = vlaneseq
  %v2004 = vshrl.u32 %v2003, 7
  %v2005 = vsub.s32 1, %v2004
  %v2006 = vrot.slane %v1997, %v2005
  %v2007 = vlaneseq
  %v2008 = vshrl.u32 %v2007, 7
  %v2009 = vsub.s32 2, %v2008
  %v2010 = vrot.slane %v1997, %v2009
  %v2011 = vlaneseq
  %v2012 = vshrl.u32 %v2011, 7
  %v2013 = vsub.s32 3, %v2012
  %v2014 = vrot.slane %v1997, %v2013
  %v2019 = vmul.f32 %v1995, %v2002
  %v2020 = vmul.f32 %v1994, %v2006
  %v2021 = vmul.f32 %v1993, %v2010
  %v2022 = vmul.f32 %v1992, %v2014
  %2023 = vrot.lane.b32.xlu0 %v1979, 48
  %v2024 = vpop.permute.xlu0 %2023
  %2025 = vrot.lane.b32.xlu0 %v1980, 48
  %v2026 = vpop.permute.xlu0 %2025
  %2027 = vrot.lane.b32.xlu0 %v1981, 48
  %v2028 = vpop.permute.xlu0 %2027
  %2029 = vrot.lane.b32.xlu0 %v1982, 48
  %v2030 = vpop.permute.xlu0 %2029
  %vm2031 = vcmp.lt.s32.totalorder %v28, 48
  %v2032 = vsel %vm2031, %v2028, %v2030
  %v2033 = vsel %vm2031, %v2026, %v2028
  %v2034 = vsel %vm2031, %v2024, %v2026
  %v2035 = vsel %vm2031, %v2030, %v2024
  %s2036 = scalar_lea.vmem %s2, 98
  %v2037 = vld [vmem:[%s2036] ss:$8 sm:$0xf]
  %v2039 = vlaneseq
  %v2040 = vshrl.u32 %v2039, 7
  %v2041 = vsub.s32 0, %v2040
  %v2042 = vrot.slane %v2037, %v2041
  %v2043 = vlaneseq
  %v2044 = vshrl.u32 %v2043, 7
  %v2045 = vsub.s32 1, %v2044
  %v2046 = vrot.slane %v2037, %v2045
  %v2047 = vlaneseq
  %v2048 = vshrl.u32 %v2047, 7
  %v2049 = vsub.s32 2, %v2048
  %v2050 = vrot.slane %v2037, %v2049
  %v2051 = vlaneseq
  %v2052 = vshrl.u32 %v2051, 7
  %v2053 = vsub.s32 3, %v2052
  %v2054 = vrot.slane %v2037, %v2053
  %v2059 = vmul.f32 %v2035, %v2042
  %v2060 = vmul.f32 %v2034, %v2046
  %v2061 = vmul.f32 %v2033, %v2050
  %v2062 = vmul.f32 %v2032, %v2054
  %v2063 = vpack.c.bf16 %v2059, %v2019
  %v2064 = vpack.c.bf16 %v2060, %v2020
  %v2065 = vpack.c.bf16 %v2061, %v2021
  %v2066 = vpack.c.bf16 %v2062, %v2022
  %v2071 = vunpack.c.l.b16 %v2063
  %v2072 = vunpack.c.l.b16 %v2064
  %v2073 = vunpack.c.l.b16 %v2065
  %v2074 = vunpack.c.l.b16 %v2066
  %v2075 = vunpack.c.h.b16 %v2063
  %v2076 = vunpack.c.h.b16 %v2064
  %v2077 = vunpack.c.h.b16 %v2065
  %v2078 = vunpack.c.h.b16 %v2066
  %v2079 = vpack.c.b16 %v2072, %v2071
  %v2080 = vpack.c.b16 %v2074, %v2073
  %v2081 = vpack.c.b16 %v2076, %v2075
  %v2082 = vpack.c.b16 %v2078, %v2077
  %2087 = vst [vmem:[#allocation2] sm:$0xff] %v2079
  %2088 = vst [vmem:[#allocation2 + $0x8] sm:$0xff] %v2080
  %2089 = vst [vmem:[#allocation2 + $0x10] sm:$0xff] %v2081
  %2090 = vst [vmem:[#allocation2 + $0x18] sm:$0xff] %v2082
  %2091 = vrot.lane.b32.xlu0 %v1979, 45
  %v2092 = vpop.permute.xlu0 %2091
  %2093 = vrot.lane.b32.xlu0 %v1980, 45
  %v2094 = vpop.permute.xlu0 %2093
  %2095 = vrot.lane.b32.xlu0 %v1981, 45
  %v2096 = vpop.permute.xlu0 %2095
  %2097 = vrot.lane.b32.xlu0 %v1982, 45
  %v2098 = vpop.permute.xlu0 %2097
  %vm2099 = vcmp.lt.s32.totalorder %v28, 45
  %v2100 = vsel %vm2099, %v2096, %v2098
  %v2101 = vsel %vm2099, %v2094, %v2096
  %v2102 = vsel %vm2099, %v2092, %v2094
  %v2103 = vsel %vm2099, %v2098, %v2092
  %s2104 = scalar_lea.vmem %s2, 99
  %v2105 = vld [vmem:[%s2104] ss:$8 sm:$0xf]
  %v2107 = vlaneseq
  %v2108 = vshrl.u32 %v2107, 7
  %v2109 = vsub.s32 0, %v2108
  %v2110 = vrot.slane %v2105, %v2109
  %v2111 = vlaneseq
  %v2112 = vshrl.u32 %v2111, 7
  %v2113 = vsub.s32 1, %v2112
  %v2114 = vrot.slane %v2105, %v2113
  %v2115 = vlaneseq
  %v2116 = vshrl.u32 %v2115, 7
  %v2117 = vsub.s32 2, %v2116
  %v2118 = vrot.slane %v2105, %v2117
  %v2119 = vlaneseq
  %v2120 = vshrl.u32 %v2119, 7
  %v2121 = vsub.s32 3, %v2120
  %v2122 = vrot.slane %v2105, %v2121
  %v2127 = vmul.f32 %v2103, %v2110
  %v2128 = vmul.f32 %v2102, %v2114
  %v2129 = vmul.f32 %v2101, %v2118
  %v2130 = vmul.f32 %v2100, %v2122
  %2131 = vrot.lane.b32.xlu0 %v1979, 3
  %v2132 = vpop.permute.xlu0 %2131
  %2133 = vrot.lane.b32.xlu0 %v1980, 3
  %v2134 = vpop.permute.xlu0 %2133
  %2135 = vrot.lane.b32.xlu0 %v1981, 3
  %v2136 = vpop.permute.xlu0 %2135
  %2137 = vrot.lane.b32.xlu0 %v1982, 3
  %v2138 = vpop.permute.xlu0 %2137
  %vm2139 = vcmp.lt.s32.totalorder %v28, 3
  %v2140 = vsel %vm2139, %v2136, %v2138
  %v2141 = vsel %vm2139, %v2134, %v2136
  %v2142 = vsel %vm2139, %v2132, %v2134
  %v2143 = vsel %vm2139, %v2138, %v2132
  %s2144 = scalar_lea.vmem %s2, 100
  %v2145 = vld [vmem:[%s2144] ss:$8 sm:$0xf]
  %v2147 = vlaneseq
  %v2148 = vshrl.u32 %v2147, 7
  %v2149 = vsub.s32 0, %v2148
  %v2150 = vrot.slane %v2145, %v2149
  %v2151 = vlaneseq
  %v2152 = vshrl.u32 %v2151, 7
  %v2153 = vsub.s32 1, %v2152
  %v2154 = vrot.slane %v2145, %v2153
  %v2155 = vlaneseq
  %v2156 = vshrl.u32 %v2155, 7
  %v2157 = vsub.s32 2, %v2156
  %v2158 = vrot.slane %v2145, %v2157
  %v2159 = vlaneseq
  %v2160 = vshrl.u32 %v2159, 7
  %v2161 = vsub.s32 3, %v2160
  %v2162 = vrot.slane %v2145, %v2161
  %v2167 = vmul.f32 %v2143, %v2150
  %v2168 = vmul.f32 %v2142, %v2154
  %v2169 = vmul.f32 %v2141, %v2158
  %v2170 = vmul.f32 %v2140, %v2162
  %v2171 = vpack.c.bf16 %v2167, %v2127
  %v2172 = vpack.c.bf16 %v2168, %v2128
  %v2173 = vpack.c.bf16 %v2169, %v2129
  %v2174 = vpack.c.bf16 %v2170, %v2130
  %v2179 = vunpack.c.l.b16 %v2171
  %v2180 = vunpack.c.l.b16 %v2172
  %v2181 = vunpack.c.l.b16 %v2173
  %v2182 = vunpack.c.l.b16 %v2174
  %v2183 = vunpack.c.h.b16 %v2171
  %v2184 = vunpack.c.h.b16 %v2172
  %v2185 = vunpack.c.h.b16 %v2173
  %v2186 = vunpack.c.h.b16 %v2174
  %v2187 = vpack.c.b16 %v2180, %v2179
  %v2188 = vpack.c.b16 %v2182, %v2181
  %v2189 = vpack.c.b16 %v2184, %v2183
  %v2190 = vpack.c.b16 %v2186, %v2185
  %2195 = vst [vmem:[#allocation2 + $0x20] sm:$0xff] %v2187
  %2196 = vst [vmem:[#allocation2 + $0x28] sm:$0xff] %v2188
  %2197 = vst [vmem:[#allocation2 + $0x30] sm:$0xff] %v2189
  %2198 = vst [vmem:[#allocation2 + $0x38] sm:$0xff] %v2190
  %2199 = vrot.lane.b32.xlu0 %v1979, 125
  %v2200 = vpop.permute.xlu0 %2199
  %2201 = vrot.lane.b32.xlu0 %v1980, 125
  %v2202 = vpop.permute.xlu0 %2201
  %2203 = vrot.lane.b32.xlu0 %v1981, 125
  %v2204 = vpop.permute.xlu0 %2203
  %2205 = vrot.lane.b32.xlu0 %v1982, 125
  %v2206 = vpop.permute.xlu0 %2205
  %vm2207 = vcmp.lt.s32.totalorder %v28, 125
  %v2208 = vsel %vm2207, %v2204, %v2206
  %v2209 = vsel %vm2207, %v2202, %v2204
  %v2210 = vsel %vm2207, %v2200, %v2202
  %v2211 = vsel %vm2207, %v2206, %v2200
  %s2212 = scalar_lea.vmem %s2, 102
  %v2213 = vld [vmem:[%s2212] ss:$8 sm:$0xf]
  %v2215 = vlaneseq
  %v2216 = vshrl.u32 %v2215, 7
  %v2217 = vsub.s32 0, %v2216
  %v2218 = vrot.slane %v2213, %v2217
  %v2219 = vlaneseq
  %v2220 = vshrl.u32 %v2219, 7
  %v2221 = vsub.s32 1, %v2220
  %v2222 = vrot.slane %v2213, %v2221
  %v2223 = vlaneseq
  %v2224 = vshrl.u32 %v2223, 7
  %v2225 = vsub.s32 2, %v2224
  %v2226 = vrot.slane %v2213, %v2225
  %v2227 = vlaneseq
  %v2228 = vshrl.u32 %v2227, 7
  %v2229 = vsub.s32 3, %v2228
  %v2230 = vrot.slane %v2213, %v2229
  %v2235 = vmul.f32 %v2210, %v2218
  %v2236 = vmul.f32 %v2209, %v2222
  %v2237 = vmul.f32 %v2208, %v2226
  %v2238 = vmul.f32 %v2211, %v2230
  %v2239 = vpack.c.bf16 %v2235, %v1979
  %v2240 = vpack.c.bf16 %v2236, %v1980
  %v2241 = vpack.c.bf16 %v2237, %v1981
  %v2242 = vpack.c.bf16 %v2238, %v1982
  %v2247 = vunpack.c.l.b16 %v2239
  %v2248 = vunpack.c.l.b16 %v2240
  %v2249 = vunpack.c.l.b16 %v2241
  %v2250 = vunpack.c.l.b16 %v2242
  %v2251 = vunpack.c.h.b16 %v2239
  %v2252 = vunpack.c.h.b16 %v2240
  %v2253 = vunpack.c.h.b16 %v2241
  %v2254 = vunpack.c.h.b16 %v2242
  %v2255 = vpack.c.b16 %v2248, %v2247
  %v2256 = vpack.c.b16 %v2250, %v2249
  %v2257 = vpack.c.b16 %v2252, %v2251
  %v2258 = vpack.c.b16 %v2254, %v2253
  %2263 = vst [vmem:[#allocation2 + $0x40] sm:$0xff] %v2255
  %2264 = vst [vmem:[#allocation2 + $0x48] sm:$0xff] %v2256
  %2265 = vst [vmem:[#allocation2 + $0x50] sm:$0xff] %v2257
  %2266 = vst [vmem:[#allocation2 + $0x58] sm:$0xff] %v2258
  %2267 = vrot.lane.b32.xlu0 %v1979, 83
  %v2268 = vpop.permute.xlu0 %2267
  %2269 = vrot.lane.b32.xlu0 %v1980, 83
  %v2270 = vpop.permute.xlu0 %2269
  %2271 = vrot.lane.b32.xlu0 %v1981, 83
  %v2272 = vpop.permute.xlu0 %2271
  %2273 = vrot.lane.b32.xlu0 %v1982, 83
  %v2274 = vpop.permute.xlu0 %2273
  %vm2275 = vcmp.lt.s32.totalorder %v28, 83
  %v2276 = vsel %vm2275, %v2272, %v2274
  %v2277 = vsel %vm2275, %v2270, %v2272
  %v2278 = vsel %vm2275, %v2268, %v2270
  %v2279 = vsel %vm2275, %v2274, %v2268
  %s2280 = scalar_lea.vmem %s2, 103
  %v2281 = vld [vmem:[%s2280] ss:$8 sm:$0xf]
  %v2283 = vlaneseq
  %v2284 = vshrl.u32 %v2283, 7
  %v2285 = vsub.s32 0, %v2284
  %v2286 = vrot.slane %v2281, %v2285
  %v2287 = vlaneseq
  %v2288 = vshrl.u32 %v2287, 7
  %v2289 = vsub.s32 1, %v2288
  %v2290 = vrot.slane %v2281, %v2289
  %v2291 = vlaneseq
  %v2292 = vshrl.u32 %v2291, 7
  %v2293 = vsub.s32 2, %v2292
  %v2294 = vrot.slane %v2281, %v2293
  %v2295 = vlaneseq
  %v2296 = vshrl.u32 %v2295, 7
  %v2297 = vsub.s32 3, %v2296
  %v2298 = vrot.slane %v2281, %v2297
  %v2303 = vmul.f32 %v2278, %v2286
  %v2304 = vmul.f32 %v2277, %v2290
  %v2305 = vmul.f32 %v2276, %v2294
  %v2306 = vmul.f32 %v2279, %v2298
  %2307 = vrot.lane.b32.xlu0 %v1979, 80
  %v2308 = vpop.permute.xlu0 %2307
  %2309 = vrot.lane.b32.xlu0 %v1980, 80
  %v2310 = vpop.permute.xlu0 %2309
  %2311 = vrot.lane.b32.xlu0 %v1981, 80
  %v2312 = vpop.permute.xlu0 %2311
  %2313 = vrot.lane.b32.xlu0 %v1982, 80
  %v2314 = vpop.permute.xlu0 %2313
  %vm2315 = vcmp.lt.s32.totalorder %v28, 80
  %v2316 = vsel %vm2315, %v2312, %v2314
  %v2317 = vsel %vm2315, %v2310, %v2312
  %v2318 = vsel %vm2315, %v2308, %v2310
  %v2319 = vsel %vm2315, %v2314, %v2308
  %s2320 = scalar_lea.vmem %s2, 128
  %v2321 = vld [vmem:[%s2320] ss:$8 sm:$0xf]
  %v2323 = vlaneseq
  %v2324 = vshrl.u32 %v2323, 7
  %v2325 = vsub.s32 0, %v2324
  %v2326 = vrot.slane %v2321, %v2325
  %v2327 = vlaneseq
  %v2328 = vshrl.u32 %v2327, 7
  %v2329 = vsub.s32 1, %v2328
  %v2330 = vrot.slane %v2321, %v2329
  %v2331 = vlaneseq
  %v2332 = vshrl.u32 %v2331, 7
  %v2333 = vsub.s32 2, %v2332
  %v2334 = vrot.slane %v2321, %v2333
  %v2335 = vlaneseq
  %v2336 = vshrl.u32 %v2335, 7
  %v2337 = vsub.s32 3, %v2336
  %v2338 = vrot.slane %v2321, %v2337
  %v2343 = vmul.f32 %v2318, %v2326
  %v2344 = vmul.f32 %v2317, %v2330
  %v2345 = vmul.f32 %v2316, %v2334
  %v2346 = vmul.f32 %v2319, %v2338
  %v2347 = vpack.c.bf16 %v2343, %v2303
  %v2348 = vpack.c.bf16 %v2344, %v2304
  %v2349 = vpack.c.bf16 %v2345, %v2305
  %v2350 = vpack.c.bf16 %v2346, %v2306
  %v2355 = vunpack.c.l.b16 %v2347
  %v2356 = vunpack.c.l.b16 %v2348
  %v2357 = vunpack.c.l.b16 %v2349
  %v2358 = vunpack.c.l.b16 %v2350
  %v2359 = vunpack.c.h.b16 %v2347
  %v2360 = vunpack.c.h.b16 %v2348
  %v2361 = vunpack.c.h.b16 %v2349
  %v2362 = vunpack.c.h.b16 %v2350
  %v2363 = vpack.c.b16 %v2356, %v2355
  %v2364 = vpack.c.b16 %v2358, %v2357
  %v2365 = vpack.c.b16 %v2360, %v2359
  %v2366 = vpack.c.b16 %v2362, %v2361
  %2371 = vst [vmem:[#allocation2 + $0x60] sm:$0xff] %v2363
  %2372 = vst [vmem:[#allocation2 + $0x68] sm:$0xff] %v2364
  %2373 = vst [vmem:[#allocation2 + $0x70] sm:$0xff] %v2365
  %2374 = vst [vmem:[#allocation2 + $0x78] sm:$0xff] %v2366
  %2375 = vrot.lane.b32.xlu0 %v1979, 77
  %v2376 = vpop.permute.xlu0 %2375
  %2377 = vrot.lane.b32.xlu0 %v1980, 77
  %v2378 = vpop.permute.xlu0 %2377
  %2379 = vrot.lane.b32.xlu0 %v1981, 77
  %v2380 = vpop.permute.xlu0 %2379
  %2381 = vrot.lane.b32.xlu0 %v1982, 77
  %v2382 = vpop.permute.xlu0 %2381
  %vm2383 = vcmp.lt.s32.totalorder %v28, 77
  %v2384 = vsel %vm2383, %v2380, %v2382
  %v2385 = vsel %vm2383, %v2378, %v2380
  %v2386 = vsel %vm2383, %v2376, %v2378
  %v2387 = vsel %vm2383, %v2382, %v2376
  %s2388 = scalar_lea.vmem %s2, 129
  %v2389 = vld [vmem:[%s2388] ss:$8 sm:$0xf]
  %v2391 = vlaneseq
  %v2392 = vshrl.u32 %v2391, 7
  %v2393 = vsub.s32 0, %v2392
  %v2394 = vrot.slane %v2389, %v2393
  %v2395 = vlaneseq
  %v2396 = vshrl.u32 %v2395, 7
  %v2397 = vsub.s32 1, %v2396
  %v2398 = vrot.slane %v2389, %v2397
  %v2399 = vlaneseq
  %v2400 = vshrl.u32 %v2399, 7
  %v2401 = vsub.s32 2, %v2400
  %v2402 = vrot.slane %v2389, %v2401
  %v2403 = vlaneseq
  %v2404 = vshrl.u32 %v2403, 7
  %v2405 = vsub.s32 3, %v2404
  %v2406 = vrot.slane %v2389, %v2405
  %v2411 = vmul.f32 %v2386, %v2394
  %v2412 = vmul.f32 %v2385, %v2398
  %v2413 = vmul.f32 %v2384, %v2402
  %v2414 = vmul.f32 %v2387, %v2406
  %v2415 = vpack.c.bf16 0.0, %v2411
  %v2416 = vpack.c.bf16 0.0, %v2412
  %v2417 = vpack.c.bf16 0.0, %v2413
  %v2418 = vpack.c.bf16 0.0, %v2414
  %v2423 = vunpack.c.l.b16 %v2415
  %v2424 = vunpack.c.l.b16 %v2416
  %v2425 = vunpack.c.l.b16 %v2417
  %v2426 = vunpack.c.l.b16 %v2418
  %v2427 = vunpack.c.h.b16 %v2415
  %v2428 = vunpack.c.h.b16 %v2416
  %v2429 = vunpack.c.h.b16 %v2417
  %v2430 = vunpack.c.h.b16 %v2418
  %v2431 = vpack.c.b16 %v2424, %v2423
  %v2432 = vpack.c.b16 %v2426, %v2425
  %v2433 = vpack.c.b16 %v2428, %v2427
  %v2434 = vpack.c.b16 %v2430, %v2429
  %2439 = vst [vmem:[#allocation2 + $0x80] sm:$0xff] %v2431
  %2440 = vst [vmem:[#allocation2 + $0x88] sm:$0xff] %v2432
  %2441 = vst [vmem:[#allocation2 + $0x90] sm:$0xff] %v2433
  %2442 = vst [vmem:[#allocation2 + $0x98] sm:$0xff] %v2434
  %v2443 = vld [vmem:[%s1 + $0x30] sm:$0xff]
  %v2444 = vpack.c.bf16 %v2443, %v2443
  %v2445 = vld [vmem:[#allocation2] sm:$0xff]
  %v2446 = vld [vmem:[#allocation2 + $0x8] sm:$0xff]
  %v2447 = vld [vmem:[#allocation2 + $0x10] sm:$0xff]
  %v2448 = vld [vmem:[#allocation2 + $0x18] sm:$0xff]
  %v2449 = vld [vmem:[#allocation2 + $0x20] sm:$0xff]
  %v2450 = vld [vmem:[#allocation2 + $0x28] sm:$0xff]
  %v2451 = vld [vmem:[#allocation2 + $0x30] sm:$0xff]
  %v2452 = vld [vmem:[#allocation2 + $0x38] sm:$0xff]
  %v2453 = vld [vmem:[#allocation2 + $0x40] sm:$0xff]
  %v2454 = vld [vmem:[#allocation2 + $0x48] sm:$0xff]
  %v2455 = vld [vmem:[#allocation2 + $0x50] sm:$0xff]
  %v2456 = vld [vmem:[#allocation2 + $0x58] sm:$0xff]
  %v2457 = vld [vmem:[#allocation2 + $0x60] sm:$0xff]
  %v2458 = vld [vmem:[#allocation2 + $0x68] sm:$0xff]
  %v2459 = vld [vmem:[#allocation2 + $0x70] sm:$0xff]
  %v2460 = vld [vmem:[#allocation2 + $0x78] sm:$0xff]
  %v2461 = vld [vmem:[#allocation2 + $0x80] sm:$0xff]
  %v2462 = vld [vmem:[#allocation2 + $0x88] sm:$0xff]
  %v2463 = vld [vmem:[%s1 + $0x38] sm:$0xff]
  %2465 = vset.pattern.permute.xlu0 72
  %2466 = vperm.xlu0 %2465, %v2463
  %v2467 = vpop.permute.xlu0 %2466
  %v2487 = vunpack.c.l.b16 %v2445
  %v2488 = vunpack.c.h.b16 %v2445
  %v2489 = vunpack.c.l.b16 %v2446
  %v2490 = vunpack.c.h.b16 %v2446
  %v2491 = vunpack.c.l.b16 %v2447
  %v2492 = vunpack.c.h.b16 %v2447
  %v2493 = vunpack.c.l.b16 %v2448
  %v2494 = vunpack.c.h.b16 %v2448
  %v2495 = vunpack.c.l.b16 %v2449
  %v2496 = vunpack.c.h.b16 %v2449
  %v2497 = vunpack.c.l.b16 %v2450
  %v2498 = vunpack.c.h.b16 %v2450
  %v2499 = vunpack.c.l.b16 %v2451
  %v2500 = vunpack.c.h.b16 %v2451
  %v2501 = vunpack.c.l.b16 %v2452
  %v2502 = vunpack.c.h.b16 %v2452
  %v2503 = vunpack.c.l.b16 %v2453
  %v2504 = vunpack.c.h.b16 %v2453
  %v2505 = vunpack.c.l.b16 %v2454
  %v2506 = vunpack.c.h.b16 %v2454
  %v2507 = vunpack.c.l.b16 %v2455
  %v2508 = vunpack.c.h.b16 %v2455
  %v2509 = vunpack.c.l.b16 %v2456
  %v2510 = vunpack.c.h.b16 %v2456
  %v2511 = vunpack.c.l.b16 %v2457
  %v2512 = vunpack.c.h.b16 %v2457
  %v2513 = vunpack.c.l.b16 %v2458
  %v2514 = vunpack.c.h.b16 %v2458
  %v2515 = vunpack.c.l.b16 %v2459
  %v2516 = vunpack.c.h.b16 %v2459
  %v2517 = vunpack.c.l.b16 %v2460
  %v2518 = vunpack.c.h.b16 %v2460
  %v2519 = vunpack.c.l.b16 %v2461
  %v2520 = vunpack.c.h.b16 %v2461
  %v2521 = vunpack.c.l.b16 %v2462
  %v2522 = vunpack.c.h.b16 %v2462
  %v2523 = vpack.c.b16 %v2491, %v2487
  %v2524 = vpack.c.b16 %v2492, %v2488
  %v2525 = vpack.c.b16 %v2493, %v2489
  %v2526 = vpack.c.b16 %v2494, %v2490
  %v2527 = vpack.c.b16 %v2499, %v2495
  %v2528 = vpack.c.b16 %v2500, %v2496
  %v2529 = vpack.c.b16 %v2501, %v2497
  %v2530 = vpack.c.b16 %v2502, %v2498
  %v2531 = vpack.c.b16 %v2507, %v2503
  %v2532 = vpack.c.b16 %v2508, %v2504
  %v2533 = vpack.c.b16 %v2509, %v2505
  %v2534 = vpack.c.b16 %v2510, %v2506
  %v2535 = vpack.c.b16 %v2515, %v2511
  %v2536 = vpack.c.b16 %v2516, %v2512
  %v2537 = vpack.c.b16 %v2517, %v2513
  %v2538 = vpack.c.b16 %v2518, %v2514
  %v2539 = vpack.c.b16 %v2519, %v2519
  %v2540 = vpack.c.b16 %v2520, %v2520
  %v2541 = vpack.c.b16 %v2521, %v2521
  %v2542 = vpack.c.b16 %v2522, %v2522
  %v2560 = vsel %vm1653, %v2444, 0
  %v2563 = vsel %vm1657, %v2539, 0
  %v2566 = vsel %vm1657, %v2540, 0
  %v2569 = vsel %vm1657, %v2541, 0
  %v2572 = vsel %vm1657, %v2542, 0
  %2574 = vmatprep.subr.bf16.mxu0 0
  %2575 = vmatpush1.bf16.msra.mxu0 0
  %2576 = vmatprep.subr.bf16.mxu0 0
  %2577 = vmatpush1.bf16.msra.mxu0 0
  %2578 = vmatprep.subr.bf16.mxu0 0
  %2579 = vmatpush1.bf16.msra.mxu0 0
  %2580 = vmatprep.subr.bf16.mxu0 %v2566
  %2581 = vmatpush1.bf16.msra.mxu0 %v2563
  %2582 = vmatprep.subr.bf16.mxu0 %v2536
  %2583 = vmatpush1.bf16.msra.mxu0 %v2535
  %2584 = vmatprep.subr.bf16.mxu0 %v2532
  %2585 = vmatpush1.bf16.msra.mxu0 %v2531
  %2586 = vmatprep.subr.bf16.mxu0 %v2528
  %2587 = vmatpush1.bf16.msra.mxu0 %v2527
  %2588 = vmatprep.subr.bf16.mxu0 %v2524
  %2589 = vmatpush1.bf16.msra.mxu0 %v2523
  %2590 = vmatprep.subr.bf16.mxu0 0
  %2591 = vmatpush2.bf16.msra.mxu0 0
  %2592 = vmatprep.subr.bf16.mxu0 0
  %2593 = vmatpush2.bf16.msra.mxu0 0
  %2594 = vmatprep.subr.bf16.mxu0 0
  %2595 = vmatpush2.bf16.msra.mxu0 0
  %2596 = vmatprep.subr.bf16.mxu0 0
  %2597 = vmatpush2.bf16.msra.mxu0 0
  %2598 = vmatprep.subr.bf16.mxu0 0
  %2599 = vmatpush2.bf16.msra.mxu0 0
  %2600 = vmatprep.subr.bf16.mxu0 0
  %2601 = vmatpush2.bf16.msra.mxu0 0
  %2602 = vmatprep.subr.bf16.mxu0 0
  %2603 = vmatpush2.bf16.msra.mxu0 0
  %2604 = vmatprep.subr.bf16.mxu0 0
  %2605 = vmatpush2.bf16.msra.mxu0 0
  %2606 = vmatprep.mubr.bf16.mxu0 0
  %2607 = vmatmul.mubr.bf16.gmra.mxu0 %v2560
  %v2608 = vpop.f32.mrf.mxu0
  %v2609 = vadd.f32 %v2467, %v2608
  %v2610 = vpop.f32.mrf.mxu0
  %v2611 = vadd.f32 %v2467, %v2610
  %v2612 = vpop.f32.mrf.mxu0
  %v2613 = vpop.f32.mrf.mxu0
  %2614 = vdwg.mxu0
  %2615 = vmatprep.subr.bf16.mxu0 0
  %2616 = vmatpush1.bf16.msra.mxu0 0
  %2617 = vmatprep.subr.bf16.mxu0 0
  %2618 = vmatpush1.bf16.msra.mxu0 0
  %2619 = vmatprep.subr.bf16.mxu0 0
  %2620 = vmatpush1.bf16.msra.mxu0 0
  %2621 = vmatprep.subr.bf16.mxu0 %v2572
  %2622 = vmatpush1.bf16.msra.mxu0 %v2569
  %2623 = vmatprep.subr.bf16.mxu0 %v2538
  %2624 = vmatpush1.bf16.msra.mxu0 %v2537
  %2625 = vmatprep.subr.bf16.mxu0 %v2534
  %2626 = vmatpush1.bf16.msra.mxu0 %v2533
  %2627 = vmatprep.subr.bf16.mxu0 %v2530
  %2628 = vmatpush1.bf16.msra.mxu0 %v2529
  %2629 = vmatprep.subr.bf16.mxu0 %v2526
  %2630 = vmatpush1.bf16.msra.mxu0 %v2525
  %2631 = vmatprep.subr.bf16.mxu0 0
  %2632 = vmatpush2.bf16.msra.mxu0 0
  %2633 = vmatprep.subr.bf16.mxu0 0
  %2634 = vmatpush2.bf16.msra.mxu0 0
  %2635 = vmatprep.subr.bf16.mxu0 0
  %2636 = vmatpush2.bf16.msra.mxu0 0
  %2637 = vmatprep.subr.bf16.mxu0 0
  %2638 = vmatpush2.bf16.msra.mxu0 0
  %2639 = vmatprep.subr.bf16.mxu0 0
  %2640 = vmatpush2.bf16.msra.mxu0 0
  %2641 = vmatprep.subr.bf16.mxu0 0
  %2642 = vmatpush2.bf16.msra.mxu0 0
  %2643 = vmatprep.subr.bf16.mxu0 0
  %2644 = vmatpush2.bf16.msra.mxu0 0
  %2645 = vmatprep.subr.bf16.mxu0 0
  %2646 = vmatpush2.bf16.msra.mxu0 0
  %2647 = vmatprep.mubr.bf16.mxu0 0
  %2648 = vmatmul.mubr.bf16.gmra.mxu0 %v2560
  %v2649 = vpop.f32.mrf.mxu0
  %v2650 = vadd.f32 %v2467, %v2649
  %v2651 = vpop.f32.mrf.mxu0
  %v2652 = vadd.f32 %v2467, %v2651
  %v2653 = vpop.f32.mrf.mxu0
  %v2654 = vpop.f32.mrf.mxu0
  %2655 = vdwg.mxu0
  %v2656 = vmax.f32 %v2609, 0.0
  %v2657 = vmax.f32 %v2611, 0.0
  %v2658 = vmax.f32 %v2650, 0.0
  %v2659 = vmax.f32 %v2652, 0.0
  %v2660 = vld [vmem:[%s1 + $0x40] sm:$0xff]
  %v2661 = vpack.c.bf16 %v2660, %v2660
  %v2662 = vpack.c.bf16 %v2656, %v2656
  %v2663 = vpack.c.bf16 %v2657, %v2657
  %v2664 = vpack.c.bf16 %v2658, %v2658
  %v2665 = vpack.c.bf16 %v2659, %v2659
  %v2666 = vld [vmem:[%s1 + $0x48] sm:$0xff]
  %2668 = vset.pattern.permute.xlu0 72
  %2669 = vperm.xlu0 %2668, %v2666
  %v2670 = vpop.permute.xlu0 %2669
  %v2673 = vsel %vm1768, %v2661, 0
  %v2676 = vsel %vm1657, %v2662, 0
  %v2679 = vsel %vm1657, %v2663, 0
  %v2682 = vsel %vm1657, %v2664, 0
  %v2685 = vsel %vm1657, %v2665, 0
  %2687 = vmatprep.subr.bf16.mxu0 0
  %2688 = vmatpush1.bf16.msra.mxu0 0
  %2689 = vmatprep.subr.bf16.mxu0 0
  %2690 = vmatpush1.bf16.msra.mxu0 0
  %2691 = vmatprep.subr.bf16.mxu0 0
  %2692 = vmatpush1.bf16.msra.mxu0 0
  %2693 = vmatprep.subr.bf16.mxu0 0
  %2694 = vmatpush1.bf16.msra.mxu0 0
  %2695 = vmatprep.subr.bf16.mxu0 0
  %2696 = vmatpush1.bf16.msra.mxu0 0
  %2697 = vmatprep.subr.bf16.mxu0 0
  %2698 = vmatpush1.bf16.msra.mxu0 0
  %2699 = vmatprep.subr.bf16.mxu0 0
  %2700 = vmatpush1.bf16.msra.mxu0 0
  %2701 = vmatprep.subr.bf16.mxu0 %v2679
  %2702 = vmatpush1.bf16.msra.mxu0 %v2676
  %2703 = vmatprep.subr.bf16.mxu0 0
  %2704 = vmatpush2.bf16.msra.mxu0 0
  %2705 = vmatprep.subr.bf16.mxu0 0
  %2706 = vmatpush2.bf16.msra.mxu0 0
  %2707 = vmatprep.subr.bf16.mxu0 0
  %2708 = vmatpush2.bf16.msra.mxu0 0
  %2709 = vmatprep.subr.bf16.mxu0 0
  %2710 = vmatpush2.bf16.msra.mxu0 0
  %2711 = vmatprep.subr.bf16.mxu0 0
  %2712 = vmatpush2.bf16.msra.mxu0 0
  %2713 = vmatprep.subr.bf16.mxu0 0
  %2714 = vmatpush2.bf16.msra.mxu0 0
  %2715 = vmatprep.subr.bf16.mxu0 0
  %2716 = vmatpush2.bf16.msra.mxu0 0
  %2717 = vmatprep.subr.bf16.mxu0 0
  %2718 = vmatpush2.bf16.msra.mxu0 0
  %2719 = vmatprep.mubr.bf16.mxu0 0
  %2720 = vmatmul.mubr.bf16.gmra.mxu0 %v2673
  %v2721 = vpop.f32.mrf.mxu0
  %v2722 = vadd.f32 %v2670, %v2721
  %v2723 = vpop.f32.mrf.mxu0
  %v2724 = vadd.f32 %v2670, %v2723
  %v2725 = vpop.f32.mrf.mxu0
  %v2726 = vpop.f32.mrf.mxu0
  %2727 = vdwg.mxu0
  %2728 = vmatprep.subr.bf16.mxu0 0
  %2729 = vmatpush1.bf16.msra.mxu0 0
  %2730 = vmatprep.subr.bf16.mxu0 0
  %2731 = vmatpush1.bf16.msra.mxu0 0
  %2732 = vmatprep.subr.bf16.mxu0 0
  %2733 = vmatpush1.bf16.msra.mxu0 0
  %2734 = vmatprep.subr.bf16.mxu0 0
  %2735 = vmatpush1.bf16.msra.mxu0 0
  %2736 = vmatprep.subr.bf16.mxu0 0
  %2737 = vmatpush1.bf16.msra.mxu0 0
  %2738 = vmatprep.subr.bf16.mxu0 0
  %2739 = vmatpush1.bf16.msra.mxu0 0
  %2740 = vmatprep.subr.bf16.mxu0 0
  %2741 = vmatpush1.bf16.msra.mxu0 0
  %2742 = vmatprep.subr.bf16.mxu0 %v2685
  %2743 = vmatpush1.bf16.msra.mxu0 %v2682
  %2744 = vmatprep.subr.bf16.mxu0 0
  %2745 = vmatpush2.bf16.msra.mxu0 0
  %2746 = vmatprep.subr.bf16.mxu0 0
  %2747 = vmatpush2.bf16.msra.mxu0 0
  %2748 = vmatprep.subr.bf16.mxu0 0
  %2749 = vmatpush2.bf16.msra.mxu0 0
  %2750 = vmatprep.subr.bf16.mxu0 0
  %2751 = vmatpush2.bf16.msra.mxu0 0
  %2752 = vmatprep.subr.bf16.mxu0 0
  %2753 = vmatpush2.bf16.msra.mxu0 0
  %2754 = vmatprep.subr.bf16.mxu0 0
  %2755 = vmatpush2.bf16.msra.mxu0 0
  %2756 = vmatprep.subr.bf16.mxu0 0
  %2757 = vmatpush2.bf16.msra.mxu0 0
  %2758 = vmatprep.subr.bf16.mxu0 0
  %2759 = vmatpush2.bf16.msra.mxu0 0
  %2760 = vmatprep.mubr.bf16.mxu0 0
  %2761 = vmatmul.mubr.bf16.gmra.mxu0 %v2673
  %v2762 = vpop.f32.mrf.mxu0
  %v2763 = vadd.f32 %v2670, %v2762
  %v2764 = vpop.f32.mrf.mxu0
  %v2765 = vadd.f32 %v2670, %v2764
  %v2766 = vpop.f32.mrf.mxu0
  %v2767 = vpop.f32.mrf.mxu0
  %2768 = vdwg.mxu0
  %v2769 = vadd.f32 %v1979, %v2722
  %v2770 = vadd.f32 %v1980, %v2724
  %v2771 = vadd.f32 %v1981, %v2763
  %v2772 = vadd.f32 %v1982, %v2765
  %2773 = vrot.lane.b32.xlu0 %v2769, 51
  %v2774 = vpop.permute.xlu0 %2773
  %2775 = vrot.lane.b32.xlu0 %v2770, 51
  %v2776 = vpop.permute.xlu0 %2775
  %2777 = vrot.lane.b32.xlu0 %v2771, 51
  %v2778 = vpop.permute.xlu0 %2777
  %2779 = vrot.lane.b32.xlu0 %v2772, 51
  %v2780 = vpop.permute.xlu0 %2779
  %v2781 = vsel %vm1991, %v2778, %v2780
  %v2782 = vsel %vm1991, %v2776, %v2778
  %v2783 = vsel %vm1991, %v2774, %v2776
  %v2784 = vsel %vm1991, %v2780, %v2774
  %v2785 = vld [vmem:[%s1996] ss:$8 sm:$0xf]
  %v2787 = vlaneseq
  %v2788 = vshrl.u32 %v2787, 7
  %v2789 = vsub.s32 0, %v2788
  %v2790 = vrot.slane %v2785, %v2789
  %v2791 = vlaneseq
  %v2792 = vshrl.u32 %v2791, 7
  %v2793 = vsub.s32 1, %v2792
  %v2794 = vrot.slane %v2785, %v2793
  %v2795 = vlaneseq
  %v2796 = vshrl.u32 %v2795, 7
  %v2797 = vsub.s32 2, %v2796
  %v2798 = vrot.slane %v2785, %v2797
  %v2799 = vlaneseq
  %v2800 = vshrl.u32 %v2799, 7
  %v2801 = vsub.s32 3, %v2800
  %v2802 = vrot.slane %v2785, %v2801
  %v2807 = vmul.f32 %v2784, %v2790
  %v2808 = vmul.f32 %v2783, %v2794
  %v2809 = vmul.f32 %v2782, %v2798
  %v2810 = vmul.f32 %v2781, %v2802
  %2811 = vrot.lane.b32.xlu0 %v2769, 48
  %v2812 = vpop.permute.xlu0 %2811
  %2813 = vrot.lane.b32.xlu0 %v2770, 48
  %v2814 = vpop.permute.xlu0 %2813
  %2815 = vrot.lane.b32.xlu0 %v2771, 48
  %v2816 = vpop.permute.xlu0 %2815
  %2817 = vrot.lane.b32.xlu0 %v2772, 48
  %v2818 = vpop.permute.xlu0 %2817
  %v2819 = vsel %vm2031, %v2816, %v2818
  %v2820 = vsel %vm2031, %v2814, %v2816
  %v2821 = vsel %vm2031, %v2812, %v2814
  %v2822 = vsel %vm2031, %v2818, %v2812
  %v2823 = vld [vmem:[%s2036] ss:$8 sm:$0xf]
  %v2825 = vlaneseq
  %v2826 = vshrl.u32 %v2825, 7
  %v2827 = vsub.s32 0, %v2826
  %v2828 = vrot.slane %v2823, %v2827
  %v2829 = vlaneseq
  %v2830 = vshrl.u32 %v2829, 7
  %v2831 = vsub.s32 1, %v2830
  %v2832 = vrot.slane %v2823, %v2831
  %v2833 = vlaneseq
  %v2834 = vshrl.u32 %v2833, 7
  %v2835 = vsub.s32 2, %v2834
  %v2836 = vrot.slane %v2823, %v2835
  %v2837 = vlaneseq
  %v2838 = vshrl.u32 %v2837, 7
  %v2839 = vsub.s32 3, %v2838
  %v2840 = vrot.slane %v2823, %v2839
  %v2845 = vmul.f32 %v2822, %v2828
  %v2846 = vmul.f32 %v2821, %v2832
  %v2847 = vmul.f32 %v2820, %v2836
  %v2848 = vmul.f32 %v2819, %v2840
  %v2849 = vpack.c.bf16 %v2845, %v2807
  %v2850 = vpack.c.bf16 %v2846, %v2808
  %v2851 = vpack.c.bf16 %v2847, %v2809
  %v2852 = vpack.c.bf16 %v2848, %v2810
  %v2857 = vunpack.c.l.b16 %v2849
  %v2858 = vunpack.c.l.b16 %v2850
  %v2859 = vunpack.c.l.b16 %v2851
  %v2860 = vunpack.c.l.b16 %v2852
  %v2861 = vunpack.c.h.b16 %v2849
  %v2862 = vunpack.c.h.b16 %v2850
  %v2863 = vunpack.c.h.b16 %v2851
  %v2864 = vunpack.c.h.b16 %v2852
  %v2865 = vpack.c.b16 %v2858, %v2857
  %v2866 = vpack.c.b16 %v2860, %v2859
  %v2867 = vpack.c.b16 %v2862, %v2861
  %v2868 = vpack.c.b16 %v2864, %v2863
  %2873 = vst [vmem:[#allocation2] sm:$0xff] %v2865
  %2874 = vst [vmem:[#allocation2 + $0x8] sm:$0xff] %v2866
  %2875 = vst [vmem:[#allocation2 + $0x10] sm:$0xff] %v2867
  %2876 = vst [vmem:[#allocation2 + $0x18] sm:$0xff] %v2868
  %2877 = vrot.lane.b32.xlu0 %v2769, 45
  %v2878 = vpop.permute.xlu0 %2877
  %2879 = vrot.lane.b32.xlu0 %v2770, 45
  %v2880 = vpop.permute.xlu0 %2879
  %2881 = vrot.lane.b32.xlu0 %v2771, 45
  %v2882 = vpop.permute.xlu0 %2881
  %2883 = vrot.lane.b32.xlu0 %v2772, 45
  %v2884 = vpop.permute.xlu0 %2883
  %v2885 = vsel %vm2099, %v2882, %v2884
  %v2886 = vsel %vm2099, %v2880, %v2882
  %v2887 = vsel %vm2099, %v2878, %v2880
  %v2888 = vsel %vm2099, %v2884, %v2878
  %v2889 = vld [vmem:[%s2104] ss:$8 sm:$0xf]
  %v2891 = vlaneseq
  %v2892 = vshrl.u32 %v2891, 7
  %v2893 = vsub.s32 0, %v2892
  %v2894 = vrot.slane %v2889, %v2893
  %v2895 = vlaneseq
  %v2896 = vshrl.u32 %v2895, 7
  %v2897 = vsub.s32 1, %v2896
  %v2898 = vrot.slane %v2889, %v2897
  %v2899 = vlaneseq
  %v2900 = vshrl.u32 %v2899, 7
  %v2901 = vsub.s32 2, %v2900
  %v2902 = vrot.slane %v2889, %v2901
  %v2903 = vlaneseq
  %v2904 = vshrl.u32 %v2903, 7
  %v2905 = vsub.s32 3, %v2904
  %v2906 = vrot.slane %v2889, %v2905
  %v2911 = vmul.f32 %v2888, %v2894
  %v2912 = vmul.f32 %v2887, %v2898
  %v2913 = vmul.f32 %v2886, %v2902
  %v2914 = vmul.f32 %v2885, %v2906
  %2915 = vrot.lane.b32.xlu0 %v2769, 3
  %v2916 = vpop.permute.xlu0 %2915
  %2917 = vrot.lane.b32.xlu0 %v2770, 3
  %v2918 = vpop.permute.xlu0 %2917
  %2919 = vrot.lane.b32.xlu0 %v2771, 3
  %v2920 = vpop.permute.xlu0 %2919
  %2921 = vrot.lane.b32.xlu0 %v2772, 3
  %v2922 = vpop.permute.xlu0 %2921
  %v2923 = vsel %vm2139, %v2920, %v2922
  %v2924 = vsel %vm2139, %v2918, %v2920
  %v2925 = vsel %vm2139, %v2916, %v2918
  %v2926 = vsel %vm2139, %v2922, %v2916
  %v2927 = vld [vmem:[%s2144] ss:$8 sm:$0xf]
  %v2929 = vlaneseq
  %v2930 = vshrl.u32 %v2929, 7
  %v2931 = vsub.s32 0, %v2930
  %v2932 = vrot.slane %v2927, %v2931
  %v2933 = vlaneseq
  %v2934 = vshrl.u32 %v2933, 7
  %v2935 = vsub.s32 1, %v2934
  %v2936 = vrot.slane %v2927, %v2935
  %v2937 = vlaneseq
  %v2938 = vshrl.u32 %v2937, 7
  %v2939 = vsub.s32 2, %v2938
  %v2940 = vrot.slane %v2927, %v2939
  %v2941 = vlaneseq
  %v2942 = vshrl.u32 %v2941, 7
  %v2943 = vsub.s32 3, %v2942
  %v2944 = vrot.slane %v2927, %v2943
  %v2949 = vmul.f32 %v2926, %v2932
  %v2950 = vmul.f32 %v2925, %v2936
  %v2951 = vmul.f32 %v2924, %v2940
  %v2952 = vmul.f32 %v2923, %v2944
  %v2953 = vpack.c.bf16 %v2949, %v2911
  %v2954 = vpack.c.bf16 %v2950, %v2912
  %v2955 = vpack.c.bf16 %v2951, %v2913
  %v2956 = vpack.c.bf16 %v2952, %v2914
  %v2961 = vunpack.c.l.b16 %v2953
  %v2962 = vunpack.c.l.b16 %v2954
  %v2963 = vunpack.c.l.b16 %v2955
  %v2964 = vunpack.c.l.b16 %v2956
  %v2965 = vunpack.c.h.b16 %v2953
  %v2966 = vunpack.c.h.b16 %v2954
  %v2967 = vunpack.c.h.b16 %v2955
  %v2968 = vunpack.c.h.b16 %v2956
  %v2969 = vpack.c.b16 %v2962, %v2961
  %v2970 = vpack.c.b16 %v2964, %v2963
  %v2971 = vpack.c.b16 %v2966, %v2965
  %v2972 = vpack.c.b16 %v2968, %v2967
  %2977 = vst [vmem:[#allocation2 + $0x20] sm:$0xff] %v2969
  %2978 = vst [vmem:[#allocation2 + $0x28] sm:$0xff] %v2970
  %2979 = vst [vmem:[#allocation2 + $0x30] sm:$0xff] %v2971
  %2980 = vst [vmem:[#allocation2 + $0x38] sm:$0xff] %v2972
  %2981 = vrot.lane.b32.xlu0 %v2769, 125
  %v2982 = vpop.permute.xlu0 %2981
  %2983 = vrot.lane.b32.xlu0 %v2770, 125
  %v2984 = vpop.permute.xlu0 %2983
  %2985 = vrot.lane.b32.xlu0 %v2771, 125
  %v2986 = vpop.permute.xlu0 %2985
  %2987 = vrot.lane.b32.xlu0 %v2772, 125
  %v2988 = vpop.permute.xlu0 %2987
  %v2989 = vsel %vm2207, %v2986, %v2988
  %v2990 = vsel %vm2207, %v2984, %v2986
  %v2991 = vsel %vm2207, %v2982, %v2984
  %v2992 = vsel %vm2207, %v2988, %v2982
  %v2993 = vld [vmem:[%s2212] ss:$8 sm:$0xf]
  %v2995 = vlaneseq
  %v2996 = vshrl.u32 %v2995, 7
  %v2997 = vsub.s32 0, %v2996
  %v2998 = vrot.slane %v2993, %v2997
  %v2999 = vlaneseq
  %v3000 = vshrl.u32 %v2999, 7
  %v3001 = vsub.s32 1, %v3000
  %v3002 = vrot.slane %v2993, %v3001
  %v3003 = vlaneseq
  %v3004 = vshrl.u32 %v3003, 7
  %v3005 = vsub.s32 2, %v3004
  %v3006 = vrot.slane %v2993, %v3005
  %v3007 = vlaneseq
  %v3008 = vshrl.u32 %v3007, 7
  %v3009 = vsub.s32 3, %v3008
  %v3010 = vrot.slane %v2993, %v3009
  %v3015 = vmul.f32 %v2991, %v2998
  %v3016 = vmul.f32 %v2990, %v3002
  %v3017 = vmul.f32 %v2989, %v3006
  %v3018 = vmul.f32 %v2992, %v3010
  %v3019 = vpack.c.bf16 %v3015, %v2769
  %v3020 = vpack.c.bf16 %v3016, %v2770
  %v3021 = vpack.c.bf16 %v3017, %v2771
  %v3022 = vpack.c.bf16 %v3018, %v2772
  %v3027 = vunpack.c.l.b16 %v3019
  %v3028 = vunpack.c.l.b16 %v3020
  %v3029 = vunpack.c.l.b16 %v3021
  %v3030 = vunpack.c.l.b16 %v3022
  %v3031 = vunpack.c.h.b16 %v3019
  %v3032 = vunpack.c.h.b16 %v3020
  %v3033 = vunpack.c.h.b16 %v3021
  %v3034 = vunpack.c.h.b16 %v3022
  %v3035 = vpack.c.b16 %v3028, %v3027
  %v3036 = vpack.c.b16 %v3030, %v3029
  %v3037 = vpack.c.b16 %v3032, %v3031
  %v3038 = vpack.c.b16 %v3034, %v3033
  %3043 = vst [vmem:[#allocation2 + $0x40] sm:$0xff] %v3035
  %3044 = vst [vmem:[#allocation2 + $0x48] sm:$0xff] %v3036
  %3045 = vst [vmem:[#allocation2 + $0x50] sm:$0xff] %v3037
  %3046 = vst [vmem:[#allocation2 + $0x58] sm:$0xff] %v3038
  %3047 = vrot.lane.b32.xlu0 %v2769, 83
  %v3048 = vpop.permute.xlu0 %3047
  %3049 = vrot.lane.b32.xlu0 %v2770, 83
  %v3050 = vpop.permute.xlu0 %3049
  %3051 = vrot.lane.b32.xlu0 %v2771, 83
  %v3052 = vpop.permute.xlu0 %3051
  %3053 = vrot.lane.b32.xlu0 %v2772, 83
  %v3054 = vpop.permute.xlu0 %3053
  %v3055 = vsel %vm2275, %v3052, %v3054
  %v3056 = vsel %vm2275, %v3050, %v3052
  %v3057 = vsel %vm2275, %v3048, %v3050
  %v3058 = vsel %vm2275, %v3054, %v3048
  %v3059 = vld [vmem:[%s2280] ss:$8 sm:$0xf]
  %v3061 = vlaneseq
  %v3062 = vshrl.u32 %v3061, 7
  %v3063 = vsub.s32 0, %v3062
  %v3064 = vrot.slane %v3059, %v3063
  %v3065 = vlaneseq
  %v3066 = vshrl.u32 %v3065, 7
  %v3067 = vsub.s32 1, %v3066
  %v3068 = vrot.slane %v3059, %v3067
  %v3069 = vlaneseq
  %v3070 = vshrl.u32 %v3069, 7
  %v3071 = vsub.s32 2, %v3070
  %v3072 = vrot.slane %v3059, %v3071
  %v3073 = vlaneseq
  %v3074 = vshrl.u32 %v3073, 7
  %v3075 = vsub.s32 3, %v3074
  %v3076 = vrot.slane %v3059, %v3075
  %v3081 = vmul.f32 %v3057, %v3064
  %v3082 = vmul.f32 %v3056, %v3068
  %v3083 = vmul.f32 %v3055, %v3072
  %v3084 = vmul.f32 %v3058, %v3076
  %3085 = vrot.lane.b32.xlu0 %v2769, 80
  %v3086 = vpop.permute.xlu0 %3085
  %3087 = vrot.lane.b32.xlu0 %v2770, 80
  %v3088 = vpop.permute.xlu0 %3087
  %3089 = vrot.lane.b32.xlu0 %v2771, 80
  %v3090 = vpop.permute.xlu0 %3089
  %3091 = vrot.lane.b32.xlu0 %v2772, 80
  %v3092 = vpop.permute.xlu0 %3091
  %v3093 = vsel %vm2315, %v3090, %v3092
  %v3094 = vsel %vm2315, %v3088, %v3090
  %v3095 = vsel %vm2315, %v3086, %v3088
  %v3096 = vsel %vm2315, %v3092, %v3086
  %v3097 = vld [vmem:[%s2320] ss:$8 sm:$0xf]
  %v3099 = vlaneseq
  %v3100 = vshrl.u32 %v3099, 7
  %v3101 = vsub.s32 0, %v3100
  %v3102 = vrot.slane %v3097, %v3101
  %v3103 = vlaneseq
  %v3104 = vshrl.u32 %v3103, 7
  %v3105 = vsub.s32 1, %v3104
  %v3106 = vrot.slane %v3097, %v3105
  %v3107 = vlaneseq
  %v3108 = vshrl.u32 %v3107, 7
  %v3109 = vsub.s32 2, %v3108
  %v3110 = vrot.slane %v3097, %v3109
  %v3111 = vlaneseq
  %v3112 = vshrl.u32 %v3111, 7
  %v3113 = vsub.s32 3, %v3112
  %v3114 = vrot.slane %v3097, %v3113
  %v3119 = vmul.f32 %v3095, %v3102
  %v3120 = vmul.f32 %v3094, %v3106
  %v3121 = vmul.f32 %v3093, %v3110
  %v3122 = vmul.f32 %v3096, %v3114
  %v3123 = vpack.c.bf16 %v3119, %v3081
  %v3124 = vpack.c.bf16 %v3120, %v3082
  %v3125 = vpack.c.bf16 %v3121, %v3083
  %v3126 = vpack.c.bf16 %v3122, %v3084
  %v3131 = vunpack.c.l.b16 %v3123
  %v3132 = vunpack.c.l.b16 %v3124
  %v3133 = vunpack.c.l.b16 %v3125
  %v3134 = vunpack.c.l.b16 %v3126
  %v3135 = vunpack.c.h.b16 %v3123
  %v3136 = vunpack.c.h.b16 %v3124
  %v3137 = vunpack.c.h.b16 %v3125
  %v3138 = vunpack.c.h.b16 %v3126
  %v3139 = vpack.c.b16 %v3132, %v3131
  %v3140 = vpack.c.b16 %v3134, %v3133
  %v3141 = vpack.c.b16 %v3136, %v3135
  %v3142 = vpack.c.b16 %v3138, %v3137
  %3147 = vst [vmem:[#allocation2 + $0x60] sm:$0xff] %v3139
  %3148 = vst [vmem:[#allocation2 + $0x68] sm:$0xff] %v3140
  %3149 = vst [vmem:[#allocation2 + $0x70] sm:$0xff] %v3141
  %3150 = vst [vmem:[#allocation2 + $0x78] sm:$0xff] %v3142
  %3151 = vrot.lane.b32.xlu0 %v2769, 77
  %v3152 = vpop.permute.xlu0 %3151
  %3153 = vrot.lane.b32.xlu0 %v2770, 77
  %v3154 = vpop.permute.xlu0 %3153
  %3155 = vrot.lane.b32.xlu0 %v2771, 77
  %v3156 = vpop.permute.xlu0 %3155
  %3157 = vrot.lane.b32.xlu0 %v2772, 77
  %v3158 = vpop.permute.xlu0 %3157
  %v3159 = vsel %vm2383, %v3156, %v3158
  %v3160 = vsel %vm2383, %v3154, %v3156
  %v3161 = vsel %vm2383, %v3152, %v3154
  %v3162 = vsel %vm2383, %v3158, %v3152
  %v3163 = vld [vmem:[%s2388] ss:$8 sm:$0xf]
  %v3165 = vlaneseq
  %v3166 = vshrl.u32 %v3165, 7
  %v3167 = vsub.s32 0, %v3166
  %v3168 = vrot.slane %v3163, %v3167
  %v3169 = vlaneseq
  %v3170 = vshrl.u32 %v3169, 7
  %v3171 = vsub.s32 1, %v3170
  %v3172 = vrot.slane %v3163, %v3171
  %v3173 = vlaneseq
  %v3174 = vshrl.u32 %v3173, 7
  %v3175 = vsub.s32 2, %v3174
  %v3176 = vrot.slane %v3163, %v3175
  %v3177 = vlaneseq
  %v3178 = vshrl.u32 %v3177, 7
  %v3179 = vsub.s32 3, %v3178
  %v3180 = vrot.slane %v3163, %v3179
  %v3185 = vmul.f32 %v3161, %v3168
  %v3186 = vmul.f32 %v3160, %v3172
  %v3187 = vmul.f32 %v3159, %v3176
  %v3188 = vmul.f32 %v3162, %v3180
  %v3189 = vpack.c.bf16 0.0, %v3185
  %v3190 = vpack.c.bf16 0.0, %v3186
  %v3191 = vpack.c.bf16 0.0, %v3187
  %v3192 = vpack.c.bf16 0.0, %v3188
  %v3197 = vunpack.c.l.b16 %v3189
  %v3198 = vunpack.c.l.b16 %v3190
  %v3199 = vunpack.c.l.b16 %v3191
  %v3200 = vunpack.c.l.b16 %v3192
  %v3201 = vunpack.c.h.b16 %v3189
  %v3202 = vunpack.c.h.b16 %v3190
  %v3203 = vunpack.c.h.b16 %v3191
  %v3204 = vunpack.c.h.b16 %v3192
  %v3205 = vpack.c.b16 %v3198, %v3197
  %v3206 = vpack.c.b16 %v3200, %v3199
  %v3207 = vpack.c.b16 %v3202, %v3201
  %v3208 = vpack.c.b16 %v3204, %v3203
  %3213 = vst [vmem:[#allocation2 + $0x80] sm:$0xff] %v3205
  %3214 = vst [vmem:[#allocation2 + $0x88] sm:$0xff] %v3206
  %3215 = vst [vmem:[#allocation2 + $0x90] sm:$0xff] %v3207
  %3216 = vst [vmem:[#allocation2 + $0x98] sm:$0xff] %v3208
  %v3217 = vld [vmem:[%s1 + $0x50] sm:$0xff]
  %v3218 = vpack.c.bf16 %v3217, %v3217
  %v3219 = vld [vmem:[#allocation2] sm:$0xff]
  %v3220 = vld [vmem:[#allocation2 + $0x8] sm:$0xff]
  %v3221 = vld [vmem:[#allocation2 + $0x10] sm:$0xff]
  %v3222 = vld [vmem:[#allocation2 + $0x18] sm:$0xff]
  %v3223 = vld [vmem:[#allocation2 + $0x20] sm:$0xff]
  %v3224 = vld [vmem:[#allocation2 + $0x28] sm:$0xff]
  %v3225 = vld [vmem:[#allocation2 + $0x30] sm:$0xff]
  %v3226 = vld [vmem:[#allocation2 + $0x38] sm:$0xff]
  %v3227 = vld [vmem:[#allocation2 + $0x40] sm:$0xff]
  %v3228 = vld [vmem:[#allocation2 + $0x48] sm:$0xff]
  %v3229 = vld [vmem:[#allocation2 + $0x50] sm:$0xff]
  %v3230 = vld [vmem:[#allocation2 + $0x58] sm:$0xff]
  %v3231 = vld [vmem:[#allocation2 + $0x60] sm:$0xff]
  %v3232 = vld [vmem:[#allocation2 + $0x68] sm:$0xff]
  %v3233 = vld [vmem:[#allocation2 + $0x70] sm:$0xff]
  %v3234 = vld [vmem:[#allocation2 + $0x78] sm:$0xff]
  %v3235 = vld [vmem:[#allocation2 + $0x80] sm:$0xff]
  %v3236 = vld [vmem:[#allocation2 + $0x88] sm:$0xff]
  %v3237 = vld [vmem:[%s1 + $0x58] sm:$0xff]
  %3239 = vset.pattern.permute.xlu0 72
  %3240 = vperm.xlu0 %3239, %v3237
  %v3241 = vpop.permute.xlu0 %3240
  %v3261 = vunpack.c.l.b16 %v3219
  %v3262 = vunpack.c.h.b16 %v3219
  %v3263 = vunpack.c.l.b16 %v3220
  %v3264 = vunpack.c.h.b16 %v3220
  %v3265 = vunpack.c.l.b16 %v3221
  %v3266 = vunpack.c.h.b16 %v3221
  %v3267 = vunpack.c.l.b16 %v3222
  %v3268 = vunpack.c.h.b16 %v3222
  %v3269 = vunpack.c.l.b16 %v3223
  %v3270 = vunpack.c.h.b16 %v3223
  %v3271 = vunpack.c.l.b16 %v3224
  %v3272 = vunpack.c.h.b16 %v3224
  %v3273 = vunpack.c.l.b16 %v3225
  %v3274 = vunpack.c.h.b16 %v3225
  %v3275 = vunpack.c.l.b16 %v3226
  %v3276 = vunpack.c.h.b16 %v3226
  %v3277 = vunpack.c.l.b16 %v3227
  %v3278 = vunpack.c.h.b16 %v3227
  %v3279 = vunpack.c.l.b16 %v3228
  %v3280 = vunpack.c.h.b16 %v3228
  %v3281 = vunpack.c.l.b16 %v3229
  %v3282 = vunpack.c.h.b16 %v3229
  %v3283 = vunpack.c.l.b16 %v3230
  %v3284 = vunpack.c.h.b16 %v3230
  %v3285 = vunpack.c.l.b16 %v3231
  %v3286 = vunpack.c.h.b16 %v3231
  %v3287 = vunpack.c.l.b16 %v3232
  %v3288 = vunpack.c.h.b16 %v3232
  %v3289 = vunpack.c.l.b16 %v3233
  %v3290 = vunpack.c.h.b16 %v3233
  %v3291 = vunpack.c.l.b16 %v3234
  %v3292 = vunpack.c.h.b16 %v3234
  %v3293 = vunpack.c.l.b16 %v3235
  %v3294 = vunpack.c.h.b16 %v3235
  %v3295 = vunpack.c.l.b16 %v3236
  %v3296 = vunpack.c.h.b16 %v3236
  %v3297 = vpack.c.b16 %v3265, %v3261
  %v3298 = vpack.c.b16 %v3266, %v3262
  %v3299 = vpack.c.b16 %v3267, %v3263
  %v3300 = vpack.c.b16 %v3268, %v3264
  %v3301 = vpack.c.b16 %v3273, %v3269
  %v3302 = vpack.c.b16 %v3274, %v3270
  %v3303 = vpack.c.b16 %v3275, %v3271
  %v3304 = vpack.c.b16 %v3276, %v3272
  %v3305 = vpack.c.b16 %v3281, %v3277
  %v3306 = vpack.c.b16 %v3282, %v3278
  %v3307 = vpack.c.b16 %v3283, %v3279
  %v3308 = vpack.c.b16 %v3284, %v3280
  %v3309 = vpack.c.b16 %v3289, %v3285
  %v3310 = vpack.c.b16 %v3290, %v3286
  %v3311 = vpack.c.b16 %v3291, %v3287
  %v3312 = vpack.c.b16 %v3292, %v3288
  %v3313 = vpack.c.b16 %v3293, %v3293
  %v3314 = vpack.c.b16 %v3294, %v3294
  %v3315 = vpack.c.b16 %v3295, %v3295
  %v3316 = vpack.c.b16 %v3296, %v3296
  %v3334 = vsel %vm1653, %v3218, 0
  %v3337 = vsel %vm1657, %v3313, 0
  %v3340 = vsel %vm1657, %v3314, 0
  %v3343 = vsel %vm1657, %v3315, 0
  %v3346 = vsel %vm1657, %v3316, 0
  %3348 = vmatprep.subr.bf16.mxu0 0
  %3349 = vmatpush1.bf16.msra.mxu0 0
  %3350 = vmatprep.subr.bf16.mxu0 0
  %3351 = vmatpush1.bf16.msra.mxu0 0
  %3352 = vmatprep.subr.bf16.mxu0 0
  %3353 = vmatpush1.bf16.msra.mxu0 0
  %3354 = vmatprep.subr.bf16.mxu0 %v3340
  %3355 = vmatpush1.bf16.msra.mxu0 %v3337
  %3356 = vmatprep.subr.bf16.mxu0 %v3310
  %3357 = vmatpush1.bf16.msra.mxu0 %v3309
  %3358 = vmatprep.subr.bf16.mxu0 %v3306
  %3359 = vmatpush1.bf16.msra.mxu0 %v3305
  %3360 = vmatprep.subr.bf16.mxu0 %v3302
  %3361 = vmatpush1.bf16.msra.mxu0 %v3301
  %3362 = vmatprep.subr.bf16.mxu0 %v3298
  %3363 = vmatpush1.bf16.msra.mxu0 %v3297
  %3364 = vmatprep.subr.bf16.mxu0 0
  %3365 = vmatpush2.bf16.msra.mxu0 0
  %3366 = vmatprep.subr.bf16.mxu0 0
  %3367 = vmatpush2.bf16.msra.mxu0 0
  %3368 = vmatprep.subr.bf16.mxu0 0
  %3369 = vmatpush2.bf16.msra.mxu0 0
  %3370 = vmatprep.subr.bf16.mxu0 0
  %3371 = vmatpush2.bf16.msra.mxu0 0
  %3372 = vmatprep.subr.bf16.mxu0 0
  %3373 = vmatpush2.bf16.msra.mxu0 0
  %3374 = vmatprep.subr.bf16.mxu0 0
  %3375 = vmatpush2.bf16.msra.mxu0 0
  %3376 = vmatprep.subr.bf16.mxu0 0
  %3377 = vmatpush2.bf16.msra.mxu0 0
  %3378 = vmatprep.subr.bf16.mxu0 0
  %3379 = vmatpush2.bf16.msra.mxu0 0
  %3380 = vmatprep.mubr.bf16.mxu0 0
  %3381 = vmatmul.mubr.bf16.gmra.mxu0 %v3334
  %v3382 = vpop.f32.mrf.mxu0
  %v3383 = vadd.f32 %v3241, %v3382
  %v3384 = vpop.f32.mrf.mxu0
  %v3385 = vadd.f32 %v3241, %v3384
  %v3386 = vpop.f32.mrf.mxu0
  %v3387 = vpop.f32.mrf.mxu0
  %3388 = vdwg.mxu0
  %3389 = vmatprep.subr.bf16.mxu0 0
  %3390 = vmatpush1.bf16.msra.mxu0 0
  %3391 = vmatprep.subr.bf16.mxu0 0
  %3392 = vmatpush1.bf16.msra.mxu0 0
  %3393 = vmatprep.subr.bf16.mxu0 0
  %3394 = vmatpush1.bf16.msra.mxu0 0
  %3395 = vmatprep.subr.bf16.mxu0 %v3346
  %3396 = vmatpush1.bf16.msra.mxu0 %v3343
  %3397 = vmatprep.subr.bf16.mxu0 %v3312
  %3398 = vmatpush1.bf16.msra.mxu0 %v3311
  %3399 = vmatprep.subr.bf16.mxu0 %v3308
  %3400 = vmatpush1.bf16.msra.mxu0 %v3307
  %3401 = vmatprep.subr.bf16.mxu0 %v3304
  %3402 = vmatpush1.bf16.msra.mxu0 %v3303
  %3403 = vmatprep.subr.bf16.mxu0 %v3300
  %3404 = vmatpush1.bf16.msra.mxu0 %v3299
  %3405 = vmatprep.subr.bf16.mxu0 0
  %3406 = vmatpush2.bf16.msra.mxu0 0
  %3407 = vmatprep.subr.bf16.mxu0 0
  %3408 = vmatpush2.bf16.msra.mxu0 0
  %3409 = vmatprep.subr.bf16.mxu0 0
  %3410 = vmatpush2.bf16.msra.mxu0 0
  %3411 = vmatprep.subr.bf16.mxu0 0
  %3412 = vmatpush2.bf16.msra.mxu0 0
  %3413 = vmatprep.subr.bf16.mxu0 0
  %3414 = vmatpush2.bf16.msra.mxu0 0
  %3415 = vmatprep.subr.bf16.mxu0 0
  %3416 = vmatpush2.bf16.msra.mxu0 0
  %3417 = vmatprep.subr.bf16.mxu0 0
  %3418 = vmatpush2.bf16.msra.mxu0 0
  %3419 = vmatprep.subr.bf16.mxu0 0
  %3420 = vmatpush2.bf16.msra.mxu0 0
  %3421 = vmatprep.mubr.bf16.mxu0 0
  %3422 = vmatmul.mubr.bf16.gmra.mxu0 %v3334
  %v3423 = vpop.f32.mrf.mxu0
  %v3424 = vadd.f32 %v3241, %v3423
  %v3425 = vpop.f32.mrf.mxu0
  %v3426 = vadd.f32 %v3241, %v3425
  %v3427 = vpop.f32.mrf.mxu0
  %v3428 = vpop.f32.mrf.mxu0
  %3429 = vdwg.mxu0
  %v3430 = vmax.f32 %v3383, 0.0
  %v3431 = vmax.f32 %v3385, 0.0
  %v3432 = vmax.f32 %v3424, 0.0
  %v3433 = vmax.f32 %v3426, 0.0
  %v3434 = vld [vmem:[%s1 + $0x60] sm:$0xff]
  %v3435 = vpack.c.bf16 %v3434, %v3434
  %v3436 = vpack.c.bf16 %v3430, %v3430
  %v3437 = vpack.c.bf16 %v3431, %v3431
  %v3438 = vpack.c.bf16 %v3432, %v3432
  %v3439 = vpack.c.bf16 %v3433, %v3433
  %v3440 = vld [vmem:[%s1 + $0x68] sm:$0xff]
  %3442 = vset.pattern.permute.xlu0 72
  %3443 = vperm.xlu0 %3442, %v3440
  %v3444 = vpop.permute.xlu0 %3443
  %v3447 = vsel %vm1768, %v3435, 0
  %v3450 = vsel %vm1657, %v3436, 0
  %v3453 = vsel %vm1657, %v3437, 0
  %v3456 = vsel %vm1657, %v3438, 0
  %v3459 = vsel %vm1657, %v3439, 0
  %3461 = vmatprep.subr.bf16.mxu0 0
  %3462 = vmatpush1.bf16.msra.mxu0 0
  %3463 = vmatprep.subr.bf16.mxu0 0
  %3464 = vmatpush1.bf16.msra.mxu0 0
  %3465 = vmatprep.subr.bf16.mxu0 0
  %3466 = vmatpush1.bf16.msra.mxu0 0
  %3467 = vmatprep.subr.bf16.mxu0 0
  %3468 = vmatpush1.bf16.msra.mxu0 0
  %3469 = vmatprep.subr.bf16.mxu0 0
  %3470 = vmatpush1.bf16.msra.mxu0 0
  %3471 = vmatprep.subr.bf16.mxu0 0
  %3472 = vmatpush1.bf16.msra.mxu0 0
  %3473 = vmatprep.subr.bf16.mxu0 0
  %3474 = vmatpush1.bf16.msra.mxu0 0
  %3475 = vmatprep.subr.bf16.mxu0 %v3453
  %3476 = vmatpush1.bf16.msra.mxu0 %v3450
  %3477 = vmatprep.subr.bf16.mxu0 0
  %3478 = vmatpush2.bf16.msra.mxu0 0
  %3479 = vmatprep.subr.bf16.mxu0 0
  %3480 = vmatpush2.bf16.msra.mxu0 0
  %3481 = vmatprep.subr.bf16.mxu0 0
  %3482 = vmatpush2.bf16.msra.mxu0 0
  %3483 = vmatprep.subr.bf16.mxu0 0
  %3484 = vmatpush2.bf16.msra.mxu0 0
  %3485 = vmatprep.subr.bf16.mxu0 0
  %3486 = vmatpush2.bf16.msra.mxu0 0
  %3487 = vmatprep.subr.bf16.mxu0 0
  %3488 = vmatpush2.bf16.msra.mxu0 0
  %3489 = vmatprep.subr.bf16.mxu0 0
  %3490 = vmatpush2.bf16.msra.mxu0 0
  %3491 = vmatprep.subr.bf16.mxu0 0
  %3492 = vmatpush2.bf16.msra.mxu0 0
  %3493 = vmatprep.mubr.bf16.mxu0 0
  %3494 = vmatmul.mubr.bf16.gmra.mxu0 %v3447
  %v3495 = vpop.f32.mrf.mxu0
  %v3496 = vadd.f32 %v3444, %v3495
  %v3497 = vpop.f32.mrf.mxu0
  %v3498 = vadd.f32 %v3444, %v3497
  %v3499 = vpop.f32.mrf.mxu0
  %v3500 = vpop.f32.mrf.mxu0
  %3501 = vdwg.mxu0
  %3502 = vmatprep.subr.bf16.mxu0 0
  %3503 = vmatpush1.bf16.msra.mxu0 0
  %3504 = vmatprep.subr.bf16.mxu0 0
  %3505 = vmatpush1.bf16.msra.mxu0 0
  %3506 = vmatprep.subr.bf16.mxu0 0
  %3507 = vmatpush1.bf16.msra.mxu0 0
  %3508 = vmatprep.subr.bf16.mxu0 0
  %3509 = vmatpush1.bf16.msra.mxu0 0
  %3510 = vmatprep.subr.bf16.mxu0 0
  %3511 = vmatpush1.bf16.msra.mxu0 0
  %3512 = vmatprep.subr.bf16.mxu0 0
  %3513 = vmatpush1.bf16.msra.mxu0 0
  %3514 = vmatprep.subr.bf16.mxu0 0
  %3515 = vmatpush1.bf16.msra.mxu0 0
  %3516 = vmatprep.subr.bf16.mxu0 %v3459
  %3517 = vmatpush1.bf16.msra.mxu0 %v3456
  %3518 = vmatprep.subr.bf16.mxu0 0
  %3519 = vmatpush2.bf16.msra.mxu0 0
  %3520 = vmatprep.subr.bf16.mxu0 0
  %3521 = vmatpush2.bf16.msra.mxu0 0
  %3522 = vmatprep.subr.bf16.mxu0 0
  %3523 = vmatpush2.bf16.msra.mxu0 0
  %3524 = vmatprep.subr.bf16.mxu0 0
  %3525 = vmatpush2.bf16.msra.mxu0 0
  %3526 = vmatprep.subr.bf16.mxu0 0
  %3527 = vmatpush2.bf16.msra.mxu0 0
  %3528 = vmatprep.subr.bf16.mxu0 0
  %3529 = vmatpush2.bf16.msra.mxu0 0
  %3530 = vmatprep.subr.bf16.mxu0 0
  %3531 = vmatpush2.bf16.msra.mxu0 0
  %3532 = vmatprep.subr.bf16.mxu0 0
  %3533 = vmatpush2.bf16.msra.mxu0 0
  %3534 = vmatprep.mubr.bf16.mxu0 0
  %3535 = vmatmul.mubr.bf16.gmra.mxu0 %v3447
  %v3536 = vpop.f32.mrf.mxu0
  %v3537 = vadd.f32 %v3444, %v3536
  %v3538 = vpop.f32.mrf.mxu0
  %v3539 = vadd.f32 %v3444, %v3538
  %v3540 = vpop.f32.mrf.mxu0
  %v3541 = vpop.f32.mrf.mxu0
  %3542 = vdwg.mxu0
  %v3543 = vadd.f32 %v2769, %v3496
  %v3544 = vadd.f32 %v2770, %v3498
  %v3545 = vadd.f32 %v2771, %v3537
  %v3546 = vadd.f32 %v2772, %v3539
  %v3547 = vld [vmem:[%s1 + $0x70] sm:$0xff]
  %v3548 = vpack.c.bf16 %v3547, %v3547
  %v3549 = vpack.c.bf16 %v3543, %v3543
  %v3550 = vpack.c.bf16 %v3544, %v3544
  %v3551 = vpack.c.bf16 %v3545, %v3545
  %v3552 = vpack.c.bf16 %v3546, %v3546
  %v3553 = vld [vmem:[%s1 + $0x78] sm:$0xff]
  %3555 = vset.pattern.permute.xlu0 72
  %3556 = vperm.xlu0 %3555, %v3553
  %v3557 = vpop.permute.xlu0 %3556
  %v3560 = vsel %vm1768, %v3548, 0
  %v3563 = vsel %vm1657, %v3549, 0
  %v3566 = vsel %vm1657, %v3550, 0
  %v3569 = vsel %vm1657, %v3551, 0
  %v3572 = vsel %vm1657, %v3552, 0
  %3574 = vmatprep.subr.bf16.mxu0 0
  %3575 = vmatpush1.bf16.msra.mxu0 0
  %3576 = vmatprep.subr.bf16.mxu0 0
  %3577 = vmatpush1.bf16.msra.mxu0 0
  %3578 = vmatprep.subr.bf16.mxu0 0
  %3579 = vmatpush1.bf16.msra.mxu0 0
  %3580 = vmatprep.subr.bf16.mxu0 0
  %3581 = vmatpush1.bf16.msra.mxu0 0
  %3582 = vmatprep.subr.bf16.mxu0 0
  %3583 = vmatpush1.bf16.msra.mxu0 0
  %3584 = vmatprep.subr.bf16.mxu0 0
  %3585 = vmatpush1.bf16.msra.mxu0 0
  %3586 = vmatprep.subr.bf16.mxu0 0
  %3587 = vmatpush1.bf16.msra.mxu0 0
  %3588 = vmatprep.subr.bf16.mxu0 %v3566
  %3589 = vmatpush1.bf16.msra.mxu0 %v3563
  %3590 = vmatprep.subr.bf16.mxu0 0
  %3591 = vmatpush2.bf16.msra.mxu0 0
  %3592 = vmatprep.subr.bf16.mxu0 0
  %3593 = vmatpush2.bf16.msra.mxu0 0
  %3594 = vmatprep.subr.bf16.mxu0 0
  %3595 = vmatpush2.bf16.msra.mxu0 0
  %3596 = vmatprep.subr.bf16.mxu0 0
  %3597 = vmatpush2.bf16.msra.mxu0 0
  %3598 = vmatprep.subr.bf16.mxu0 0
  %3599 = vmatpush2.bf16.msra.mxu0 0
  %3600 = vmatprep.subr.bf16.mxu0 0
  %3601 = vmatpush2.bf16.msra.mxu0 0
  %3602 = vmatprep.subr.bf16.mxu0 0
  %3603 = vmatpush2.bf16.msra.mxu0 0
  %3604 = vmatprep.subr.bf16.mxu0 0
  %3605 = vmatpush2.bf16.msra.mxu0 0
  %3606 = vmatprep.mubr.bf16.mxu0 0
  %3607 = vmatmul.mubr.bf16.gmra.mxu0 %v3560
  %v3608 = vpop.f32.mrf.mxu0
  %v3609 = vadd.f32 %v3557, %v3608
  %v3610 = vpop.f32.mrf.mxu0
  %v3611 = vadd.f32 %v3557, %v3610
  %v3612 = vpop.f32.mrf.mxu0
  %v3613 = vpop.f32.mrf.mxu0
  %3614 = vdwg.mxu0
  %3615 = vmatprep.subr.bf16.mxu0 0
  %3616 = vmatpush1.bf16.msra.mxu0 0
  %3617 = vmatprep.subr.bf16.mxu0 0
  %3618 = vmatpush1.bf16.msra.mxu0 0
  %3619 = vmatprep.subr.bf16.mxu0 0
  %3620 = vmatpush1.bf16.msra.mxu0 0
  %3621 = vmatprep.subr.bf16.mxu0 0
  %3622 = vmatpush1.bf16.msra.mxu0 0
  %3623 = vmatprep.subr.bf16.mxu0 0
  %3624 = vmatpush1.bf16.msra.mxu0 0
  %3625 = vmatprep.subr.bf16.mxu0 0
  %3626 = vmatpush1.bf16.msra.mxu0 0
  %3627 = vmatprep.subr.bf16.mxu0 0
  %3628 = vmatpush1.bf16.msra.mxu0 0
  %3629 = vmatprep.subr.bf16.mxu0 %v3572
  %3630 = vmatpush1.bf16.msra.mxu0 %v3569
  %3631 = vmatprep.subr.bf16.mxu0 0
  %3632 = vmatpush2.bf16.msra.mxu0 0
  %3633 = vmatprep.subr.bf16.mxu0 0
  %3634 = vmatpush2.bf16.msra.mxu0 0
  %3635 = vmatprep.subr.bf16.mxu0 0
  %3636 = vmatpush2.bf16.msra.mxu0 0
  %3637 = vmatprep.subr.bf16.mxu0 0
  %3638 = vmatpush2.bf16.msra.mxu0 0
  %3639 = vmatprep.subr.bf16.mxu0 0
  %3640 = vmatpush2.bf16.msra.mxu0 0
  %3641 = vmatprep.subr.bf16.mxu0 0
  %3642 = vmatpush2.bf16.msra.mxu0 0
  %3643 = vmatprep.subr.bf16.mxu0 0
  %3644 = vmatpush2.bf16.msra.mxu0 0
  %3645 = vmatprep.subr.bf16.mxu0 0
  %3646 = vmatpush2.bf16.msra.mxu0 0
  %3647 = vmatprep.mubr.bf16.mxu0 0
  %3648 = vmatmul.mubr.bf16.gmra.mxu0 %v3560
  %v3649 = vpop.f32.mrf.mxu0
  %v3650 = vadd.f32 %v3557, %v3649
  %v3651 = vpop.f32.mrf.mxu0
  %v3652 = vadd.f32 %v3557, %v3651
  %v3653 = vpop.f32.mrf.mxu0
  %v3654 = vpop.f32.mrf.mxu0
  %3655 = vdwg.mxu0
  %v3656 = vmax.f32 %v3609, 0.0
  %v3657 = vmax.f32 %v3611, 0.0
  %v3658 = vmax.f32 %v3650, 0.0
  %v3659 = vmax.f32 %v3652, 0.0
  %3660 = vst [vmem:[%s3] sm:$0xff] %v3656
  %3661 = vst [vmem:[%s3 + $0x8] sm:$0xff] %v3657
  %3662 = vst [vmem:[%s3 + $0x10] sm:$0xff] %v3658
  %3663 = vst [vmem:[%s3 + $0x18] sm:$0xff] %v3659
  // Predicated region
  $region14: #{dc_branchl_forward.1} parent=0 // pred_check
    _
  $region15: #{dc_branchl_forward.1} parent=0 // pred_check_branch
    %3665 = sbr.rel (0) target = $region17
  $region16: #{dc_branchl_forward.1} parent=0 // pred_region
    _
  $region17: #{dc_branchl_forward.1} parent=0 // pred_fallthru
    _
  // Predicated region
  $region18: #{dc_branchl_forward.1} parent=0 // pred_check
    _
  $region19: #{dc_branchl_forward.1} parent=0 // pred_check_branch
    %3667 = sbr.rel (0) target = $region21
  $region20: #{dc_branchl_forward.1} parent=0 // pred_region
    _
  $region21: #{dc_branchl_forward.1} parent=0 // pred_fallthru
    _

</llo_original>
